<compile_context>
chip_gen: v7x
topology: tpu7x:2x2x1
jax: 0.10.0
libtpu: 0.0.40
codegen_flags: <defaults>
</compile_context>

<pallas_src>
import functools

import jax
import jax.numpy as jnp
from jax import lax
from jax.experimental import pallas as pl
from jax.experimental.pallas import tpu as pltpu

LAMBD = 0.0051
EPS = 1e-12          # torch.nn.functional.normalize default eps
EPS2 = EPS * EPS     # clamp on the squared norm (||x|| >= eps  <=>  ||x||^2 >= eps^2)


def _pick_tile(dim, candidates):
    for c in candidates:
        if dim % c == 0:
            return c
    return dim


def _vmem_limit_bytes():
    """Generation-aware VMEM scoped limit (48 MiB is too close to v7x's 64 MiB)."""
    cap = None
    try:
        info = pltpu.get_tpu_info()
        cap = getattr(info, "vmem_capacity_bytes", None)
    except Exception:
        cap = None
    if not cap:
        cap = 64 * 1024 * 1024  # conservative: v7x per-TensorCore capacity
    return min(int(cap) * 3 // 4, 96 * 1024 * 1024)


# ---------------------------------------------------------------------------
# Stage 1: row (dim=1) normalization + per-tile column sum-of-squares.
# ---------------------------------------------------------------------------
def _rownorm_colsq_kernel(t_ref, s_ref, trn_ref, srn_ref, ct_ref, cs_ref):
    t = t_ref[...].astype(jnp.float32)
    s = s_ref[...].astype(jnp.float32)

    # F.normalize(x, dim=1): x * rsqrt(max(||row||^2, eps^2))  (rsqrt -> EUP)
    t = t * lax.rsqrt(jnp.maximum(jnp.sum(t * t, axis=1, keepdims=True), EPS2))
    s = s * lax.rsqrt(jnp.maximum(jnp.sum(s * s, axis=1, keepdims=True), EPS2))

    # bf16 operands for the MXU matmul in stage 2 (f32 accumulation there).
    t16 = t.astype(trn_ref.dtype)
    s16 = s.astype(srn_ref.dtype)
    trn_ref[...] = t16
    srn_ref[...] = s16

    # Column sum-of-squares of the *bf16-rounded* features (exactly what the
    # stage-2 MXU consumes).  Per-batch-tile partials (summed in the wrapper)
    # keep this grid axis "parallel" so v7x can shard it across both cores.
    tq = t16.astype(jnp.float32)
    sq = s16.astype(jnp.float32)
    ct_ref[...] = jnp.sum(tq * tq, axis=0, keepdims=True).reshape(ct_ref.shape)
    cs_ref[...] = jnp.sum(sq * sq, axis=0, keepdims=True).reshape(cs_ref.shape)


# ---------------------------------------------------------------------------
# Stage 2: tiled cross-correlation + fused on/off-diagonal loss reduction.
# ---------------------------------------------------------------------------
def _cross_corr_loss_kernel(trn_ref, srn_ref, ict_ref, ics_ref, loss_ref,
                            acc_ref, *, tk):
    i = pl.program_id(0)
    j = pl.program_id(1)
    k = pl.program_id(2)

    @pl.when(k == 0)
    def _():
        acc_ref[...] = jnp.zeros_like(acc_ref)

    # The LHS column strip is resident in VMEM across j and k; slice the
    # current K chunk out of VMEM (no HBM re-read).  Only the RHS chunk
    # (srn_ref) is streamed from HBM per step.
    start = pl.multiple_of(k * tk, tk)
    t_chunk = trn_ref[pl.ds(start, tk), :]

    # Contract over the batch axis of the (TK, TN) bf16 tiles -> (TN, TN) f32.
    # (dim-0/dim-0 contraction lands on the MXU's transposed-LHS path; verify
    # with `grep -o vxpose` in the bundle dump if re-tiling further.)
    acc_ref[...] += lax.dot_general(
        t_chunk, srn_ref[...],
        dimension_numbers=(((0,), (0,)), ((), ())),
        preferred_element_type=jnp.float32,
    )

    @pl.when(k == pl.num_programs(2) - 1)
    def _():
        # dim=0 normalization (with 1/batch_size pre-folded into ict on the
        # host) applied as a rank-1 scaling of the tile.
        c = acc_ref[...] * (ict_ref[...] * ics_ref[...])
        part = jnp.float32(LAMBD) * jnp.sum(c * c)

        @pl.when(i == j)
        def _():
            tn = acc_ref.shape[0]
            is_diag = (lax.broadcasted_iota(jnp.int32, (tn, tn), 0)
                       == lax.broadcasted_iota(jnp.int32, (tn, tn), 1))
            corr = jnp.sum(
                jnp.where(is_diag,
                          (c - 1.0) ** 2 - jnp.float32(LAMBD) * c * c,
                          0.0))
            loss_ref[0, 0] = part + corr

        @pl.when(i != j)
        def _():
            loss_ref[0, 0] = part


# ---------------------------------------------------------------------------
# Wrapper
# ---------------------------------------------------------------------------
def barlow_twins_loss(teacher_feature, student_feature):
    B, D = teacher_feature.shape
    assert student_feature.shape == (B, D)

    vmem_limit = _vmem_limit_bytes()

    # ---- tile selection (VMEM-budget / generation aware) ------------------
    # Stage-1 batch tile: ~32*TB*D bytes of blocks must stay well under budget
    # (double-buffered f32 inputs + f32 temporaries + double-buffered bf16 out).
    TB = None
    for c in (128, 64, 32, 16, 8):
        if B % c == 0 and 32 * c * D <= vmem_limit // 2:
            TB = c
            break
    if TB is None:
        TB = _pick_tile(B, [8, 4, 2, 1])

    # Stage-2 K chunk: large, but keep >= 2 MXU steps per (i, j) tile so the
    # VPU/XLU epilogue amortizes over several matmul steps.
    TK = None
    for c in (1024, 512, 256, 128, 64, 32, 16, 8):
        if B % c == 0 and B // c >= 2:
            TK = c
            break
    if TK is None:
        TK = B

    # Stage-2 output-tile edge: 512 sits at/above the MXU roofline ridge on all
    # generations; cap there and check the resident strip + accumulator +
    # epilogue temporaries against the VMEM budget (tight on v7x).
    TN = None
    for c in (512, 256, 128):
        if D % c != 0:
            continue
        resident = 2 * B * c * 2          # double-buffered bf16 LHS strip
        stream = 2 * TK * c * 2           # double-buffered bf16 RHS chunk
        epilogue = 6 * c * c * 4          # f32 accumulator + epilogue temps
        if resident + stream + epilogue <= vmem_limit // 2:
            TN = c
            break
    if TN is None:
        TN = _pick_tile(D, [128, 64, 32, 16, 8])

    nB = B // TB
    nI = D // TN
    nK = B // TK

    in_bytes = jnp.dtype(teacher_feature.dtype).itemsize

    # ---- stage 1: row normalization + per-tile column sum-of-squares ------
    # TODO(synk): if callers can provide bf16 inputs, stage-1 HBM traffic drops
    # ~40%; the kernel already up-casts whatever dtype arrives.
    t_rn, s_rn, ct_parts, cs_parts = pl.pallas_call(
        _rownorm_colsq_kernel,
        out_shape=(
            jax.ShapeDtypeStruct((B, D), jnp.bfloat16),
            jax.ShapeDtypeStruct((B, D), jnp.bfloat16),
            jax.ShapeDtypeStruct((nB, 1, D), jnp.float32),
            jax.ShapeDtypeStruct((nB, 1, D), jnp.float32),
        ),
        grid_spec=pltpu.PrefetchScalarGridSpec(
            num_scalar_prefetch=0,
            grid=(nB,),
            in_specs=[
                pl.BlockSpec((TB, D), lambda b: (b, 0)),
                pl.BlockSpec((TB, D), lambda b: (b, 0)),
            ],
            out_specs=(
                pl.BlockSpec((TB, D), lambda b: (b, 0)),
                pl.BlockSpec((TB, D), lambda b: (b, 0)),
                pl.BlockSpec((1, 1, D), lambda b: (b, 0, 0)),
                pl.BlockSpec((1, 1, D), lambda b: (b, 0, 0)),
            ),
        ),
        compiler_params=pltpu.CompilerParams(
            dimension_semantics=("parallel",),   # megacore-shardable on v7x
            vmem_limit_bytes=vmem_limit,
        ),
        cost_estimate=pl.CostEstimate(
            flops=12 * B * D,
            transcendentals=2 * B,
            bytes_accessed=2 * B * D * in_bytes + 2 * B * D * 2 + 2 * nB * D * 4,
        ),
    )(teacher_feature, student_feature)

    # Tiny O(D) reductions / rsqrt on the host side.  1/batch_size from the
    # reference is folded into inv_ct so the tile epilogue is a single rank-1
    # scaling; shapes let it broadcast without an in-kernel transpose.
    colsq_t = jnp.sum(ct_parts, axis=0)                                  # (1, D)
    colsq_s = jnp.sum(cs_parts, axis=0)                                  # (1, D)
    inv_ct = (lax.rsqrt(jnp.maximum(colsq_t, EPS2))
              * jnp.float32(1.0 / B)).reshape(D, 1)                      # rows of c
    inv_cs = lax.rsqrt(jnp.maximum(colsq_s, EPS2)).reshape(1, D)         # cols of c

    # ---- stage 2: tiled D x D cross-correlation + fused loss --------------
    kernel = functools.partial(_cross_corr_loss_kernel, tk=TK)
    partials = pl.pallas_call(
        kernel,
        out_shape=jax.ShapeDtypeStruct((nI, nI), jnp.float32),
        grid_spec=pltpu.PrefetchScalarGridSpec(
            num_scalar_prefetch=0,
            grid=(nI, nI, nK),
            in_specs=[
                # Resident full-batch LHS column strip: block index independent
                # of j and k, so Pallas only re-DMAs it when i changes.
                pl.BlockSpec((B, TN), lambda i, j, k: (0, i)),
                # Streamed RHS chunk.  (If the bundle shows exposed DMA stalls
                # at j boundaries on 128-MiB parts, add
                # pipeline_mode=pl.Buffered(3) here.)
                pl.BlockSpec((TK, TN), lambda i, j, k: (k, j)),
                pl.BlockSpec((TN, 1), lambda i, j, k: (i, 0)),   # (1/||t_col||)/B
                pl.BlockSpec((1, TN), lambda i, j, k: (0, j)),   # 1/||s_col||
            ],
            out_specs=pl.BlockSpec((1, 1), lambda i, j, k: (i, j)),
            scratch_shapes=[pltpu.VMEM((TN, TN), jnp.float32)],
        ),
        compiler_params=pltpu.CompilerParams(
            dimension_semantics=("parallel", "parallel", "arbitrary"),
            vmem_limit_bytes=vmem_limit,
        ),
        cost_estimate=pl.CostEstimate(
            flops=2 * B * D * D + 6 * D * D,
            transcendentals=0,
            bytes_accessed=B * D * 2 + nI * B * D * 2 + 2 * D * 4 + nI * nI * 4,
        ),
    )(t_rn, s_rn, inv_ct, inv_cs)

    # TODO(synk): torch.distributed.all_reduce(c) is a multi-host collective;
    # single-device execution here makes it an identity, so it is skipped.
    return jnp.sum(partials)


# ---------------------------------------------------------------------------
# Pure-JAX reference (f32) for verification.
# ---------------------------------------------------------------------------
def _reference_loss(t, s):
    t = t.astype(jnp.float32)
    s = s.astype(jnp.float32)
    t = t / jnp.maximum(jnp.linalg.norm(t, axis=1, keepdims=True), EPS)
    s = s / jnp.maximum(jnp.linalg.norm(s, axis=1, keepdims=True), EPS)
    t = t / jnp.maximum(jnp.linalg.norm(t, axis=0, keepdims=True), EPS)
    s = s / jnp.maximum(jnp.linalg.norm(s, axis=0, keepdims=True), EPS)
    c = (t.T @ s) / t.shape[0]
    on = jnp.sum((jnp.diag(c) - 1.0) ** 2)
    off = jnp.sum(c * c) - jnp.sum(jnp.diag(c) ** 2)
    return on + LAMBD * off


if __name__ == "__main__":
    key = jax.random.PRNGKey(0)
    k1, k2 = jax.random.split(key)
    # Small but tiling-exercising shapes: 2x2 output-tile grid (both the
    # diagonal and off-diagonal epilogue paths), 2 K steps (resident-strip
    # slicing), 4 stage-1 batch tiles.
    B, D = 512, 1024
    teacher = jax.random.normal(k1, (B, D), dtype=jnp.float32)
    student = jax.random.normal(k2, (B, D), dtype=jnp.float32)

    loss = jax.block_until_ready(barlow_twins_loss(teacher, student))
    ref = jax.block_until_ready(_reference_loss(teacher, student))

    assert jnp.allclose(loss, ref, rtol=2e-3, atol=2e-3), (loss, ref)
    print("KERNEL_OK")
</pallas_src>

<mosaic_0001>
module attributes {stable_mosaic.version = 11 : i64} {
  func.func @_rownorm_colsq_kernel(%arg0: i32, %arg1: memref<128x1024xf32, #tpu.memory_space<vmem>>, %arg2: memref<128x1024xf32, #tpu.memory_space<vmem>>, %arg3: memref<128x1024xbf16, #tpu.memory_space<vmem>>, %arg4: memref<128x1024xbf16, #tpu.memory_space<vmem>>, %arg5: memref<1x1x1024xf32, #tpu.memory_space<vmem>>, %arg6: memref<1x1x1024xf32, #tpu.memory_space<vmem>>) attributes {dimension_semantics = [#tpu.dimension_semantics<parallel>], iteration_bounds = array<i64: 4>, scalar_prefetch = 0 : i64, scratch_operands = 0 : i64, tpu.core_type = #tpu.core_type<tc>, window_params = [{transform_indices = @transform_0, window_bounds = array<i64: 128, 1024>}, {transform_indices = @transform_1, window_bounds = array<i64: 128, 1024>}, {transform_indices = @transform_2, window_bounds = array<i64: 128, 1024>}, {transform_indices = @transform_3, window_bounds = array<i64: 128, 1024>}, {transform_indices = @transform_4, window_bounds = array<i64: 1, 1, 1024>}, {transform_indices = @transform_5, window_bounds = array<i64: 1, 1, 1024>}]} {
    %c0 = arith.constant 0 : index
    %c0_0 = arith.constant 0 : index
    %0 = vector.load %arg1[%c0, %c0_0] : memref<128x1024xf32, #tpu.memory_space<vmem>>, vector<128x1024xf32>
    %c0_1 = arith.constant 0 : index
    %c0_2 = arith.constant 0 : index
    %1 = vector.load %arg2[%c0_1, %c0_2] : memref<128x1024xf32, #tpu.memory_space<vmem>>, vector<128x1024xf32>
    %2 = arith.mulf %0, %0 : vector<128x1024xf32>
    %cst = arith.constant dense<0.000000e+00> : vector<128xf32>
    %3 = vector.multi_reduction <add>, %2, %cst [1] : vector<128x1024xf32> to vector<128xf32>
    %4 = vector.shape_cast %3 : vector<128xf32> to vector<128x1xf32>
    %cst_3 = arith.constant 1.000000e-24 : f32
    %5 = vector.broadcast %cst_3 : f32 to vector<128x1xf32>
    %6 = arith.maximumf %4, %5 : vector<128x1xf32>
    %7 = math.rsqrt %6 : vector<128x1xf32>
    %8 = vector.broadcast %7 : vector<128x1xf32> to vector<128x1024xf32>
    %9 = arith.mulf %0, %8 : vector<128x1024xf32>
    %10 = arith.mulf %1, %1 : vector<128x1024xf32>
    %cst_4 = arith.constant dense<0.000000e+00> : vector<128xf32>
    %11 = vector.multi_reduction <add>, %10, %cst_4 [1] : vector<128x1024xf32> to vector<128xf32>
    %12 = vector.shape_cast %11 : vector<128xf32> to vector<128x1xf32>
    %cst_5 = arith.constant 1.000000e-24 : f32
    %13 = vector.broadcast %cst_5 : f32 to vector<128x1xf32>
    %14 = arith.maximumf %12, %13 : vector<128x1xf32>
    %15 = math.rsqrt %14 : vector<128x1xf32>
    %16 = vector.broadcast %15 : vector<128x1xf32> to vector<128x1024xf32>
    %17 = arith.mulf %1, %16 : vector<128x1024xf32>
    %18 = arith.truncf %9 : vector<128x1024xf32> to vector<128x1024xbf16>
    %19 = arith.truncf %17 : vector<128x1024xf32> to vector<128x1024xbf16>
    %c0_6 = arith.constant 0 : index
    %c0_7 = arith.constant 0 : index
    %20 = vector.load %arg3[%c0_6, %c0_7] : memref<128x1024xbf16, #tpu.memory_space<vmem>>, vector<128x1024xbf16>
    tpu.vector_store %arg3[%c0_6, %c0_7], %18 {strides = array<i32>} : memref<128x1024xbf16, #tpu.memory_space<vmem>>, vector<128x1024xbf16>,
    %c0_8 = arith.constant 0 : index
    %c0_9 = arith.constant 0 : index
    %21 = vector.load %arg4[%c0_8, %c0_9] : memref<128x1024xbf16, #tpu.memory_space<vmem>>, vector<128x1024xbf16>
    tpu.vector_store %arg4[%c0_8, %c0_9], %19 {strides = array<i32>} : memref<128x1024xbf16, #tpu.memory_space<vmem>>, vector<128x1024xbf16>,
    %22 = arith.extf %18 : vector<128x1024xbf16> to vector<128x1024xf32>
    %23 = arith.extf %19 : vector<128x1024xbf16> to vector<128x1024xf32>
    %24 = arith.mulf %22, %22 : vector<128x1024xf32>
    %cst_10 = arith.constant dense<0.000000e+00> : vector<1024xf32>
    %25 = vector.multi_reduction <add>, %24, %cst_10 [0] : vector<128x1024xf32> to vector<1024xf32>
    %26 = vector.shape_cast %25 : vector<1024xf32> to vector<1x1024xf32>
    %27 = vector.shape_cast %26 : vector<1x1024xf32> to vector<1x1x1024xf32>
    %c0_11 = arith.constant 0 : index
    %c0_12 = arith.constant 0 : index
    %c0_13 = arith.constant 0 : index
    %28 = vector.load %arg5[%c0_11, %c0_12, %c0_13] : memref<1x1x1024xf32, #tpu.memory_space<vmem>>, vector<1x1x1024xf32>
    tpu.vector_store %arg5[%c0_11, %c0_12, %c0_13], %27 {strides = array<i32>} : memref<1x1x1024xf32, #tpu.memory_space<vmem>>, vector<1x1x1024xf32>,
    %29 = arith.mulf %23, %23 : vector<128x1024xf32>
    %cst_14 = arith.constant dense<0.000000e+00> : vector<1024xf32>
    %30 = vector.multi_reduction <add>, %29, %cst_14 [0] : vector<128x1024xf32> to vector<1024xf32>
    %31 = vector.shape_cast %30 : vector<1024xf32> to vector<1x1024xf32>
    %32 = vector.shape_cast %31 : vector<1x1024xf32> to vector<1x1x1024xf32>
    %c0_15 = arith.constant 0 : index
    %c0_16 = arith.constant 0 : index
    %c0_17 = arith.constant 0 : index
    %33 = vector.load %arg6[%c0_15, %c0_16, %c0_17] : memref<1x1x1024xf32, #tpu.memory_space<vmem>>, vector<1x1x1024xf32>
    tpu.vector_store %arg6[%c0_15, %c0_16, %c0_17], %32 {strides = array<i32>} : memref<1x1x1024xf32, #tpu.memory_space<vmem>>, vector<1x1x1024xf32>,
    return
  }
  func.func @transform_0(%arg0: i32) -> (i32, i32) {
    %c0_i32 = arith.constant 0 : i32
    %c0_i32_0 = arith.constant 0 : i32
    return %arg0, %c0_i32 : i32, i32
  }
  func.func @transform_1(%arg0: i32) -> (i32, i32) {
    %c0_i32 = arith.constant 0 : i32
    %c0_i32_0 = arith.constant 0 : i32
    return %arg0, %c0_i32 : i32, i32
  }
  func.func @transform_2(%arg0: i32) -> (i32, i32) {
    %c0_i32 = arith.constant 0 : i32
    %c0_i32_0 = arith.constant 0 : i32
    return %arg0, %c0_i32 : i32, i32
  }
  func.func @transform_3(%arg0: i32) -> (i32, i32) {
    %c0_i32 = arith.constant 0 : i32
    %c0_i32_0 = arith.constant 0 : i32
    return %arg0, %c0_i32 : i32, i32
  }
  func.func @transform_4(%arg0: i32) -> (i32, i32, i32) {
    %c0_i32 = arith.constant 0 : i32
    %c0_i32_0 = arith.constant 0 : i32
    %c0_i32_1 = arith.constant 0 : i32
    return %arg0, %c0_i32, %c0_i32_0 : i32, i32, i32
  }
  func.func @transform_5(%arg0: i32) -> (i32, i32, i32) {
    %c0_i32 = arith.constant 0 : i32
    %c0_i32_0 = arith.constant 0 : i32
    %c0_i32_1 = arith.constant 0 : i32
    return %arg0, %c0_i32, %c0_i32_0 : i32, i32, i32
  }
}

</mosaic_0001>

<llo_original>
// kernel: tpu_custom_call.1
$region0: #{tpu_custom_call.1}
  #allocation0 [shape = 'u32[]', space=smem, size = 0x4, offset = 0x4, fixed_abs, tag = 'smem constant byte address 0x4 - core index']
  #allocation1 [shape = 'u32[144,128]{1,0:T(1,128)}', space=vmem, size = 0x12000, scoped, tag = 'internal scratch']
  %s0 = inlined_call_operand.hbm [shape: f32[512,1024], index: 0, kind: input, shape index: {}]
  %s1 = inlined_call_operand.hbm [shape: f32[512,1024], index: 1, kind: input, shape index: {}]
  %s2 = inlined_call_operand.hbm [shape: bf16[512,1024], index: 2, kind: output, shape index: {0}]
  %s3 = inlined_call_operand.hbm [shape: bf16[512,1024], index: 3, kind: output, shape index: {1}]
  %s4 = inlined_call_operand.hbm [shape: f32[4,1,1024], index: 4, kind: output, shape index: {2}]
  %s5 = inlined_call_operand.hbm [shape: f32[4,1,1024], index: 5, kind: output, shape index: {3}]
  %6 = xla_tuple %s2, %s3, %s4, %s5
  %s7 = sld [smem:[#allocation0]]
  $region73: #{tpu_custom_call.1} parent=0
    _
  %s9 = ssub.s32 1, %s7
  %s10 = scalar_select 0, %s9, %s7
  $region1: #{tpu_custom_call.1} parent=0
    #allocation2 [shape = 'u8[1048576]{0}', space=vmem, size = 0x100000, scoped, tag = 'input window, operand 0']
    #allocation3 [shape = 's32[2]{0}', space=sflag, size = 0x8, scoped, tag = 'scoped memory for tpu_custom_call.1']
    #allocation4 [shape = 's32[2]{0}', space=sflag, size = 0x8, scoped, tag = 'scoped memory for tpu_custom_call.1']
    #allocation5 [shape = 'u8[1048576]{0}', space=vmem, size = 0x100000, scoped, tag = 'input window, operand 1']
    #allocation6 [shape = 's32[2]{0}', space=sflag, size = 0x8, scoped, tag = 'scoped memory for tpu_custom_call.1']
    #allocation7 [shape = 'u8[524288]{0}', space=vmem, size = 0x80000, scoped, tag = 'output window, operand 0']
    #allocation8 [shape = 'u8[524288]{0}', space=vmem, size = 0x80000, scoped, tag = 'output window, operand 1']
    #allocation9 [shape = 's32[2]{0}', space=sflag, size = 0x8, scoped, tag = 'scoped memory for tpu_custom_call.1']
    #allocation10 [shape = 'u8[8192]{0}', space=vmem, size = 0x2000, scoped, tag = 'output window, operand 2']
    #allocation11 [shape = 'u8[8192]{0}', space=vmem, size = 0x2000, scoped, tag = 'output window, operand 3']
    #allocation12 [shape = 's32[2]{0}', space=sflag, size = 0x8, scoped, tag = 'scoped memory for tpu_custom_call.1']
    %11 = vsyncpa [#allocation3], 0
    %s12 = scalar_lea.sflag [#allocation3], 1
    %13 = vsyncpa %s12, 0
    %14 = vsyncpa [#allocation6], 0
    %s15 = scalar_lea.sflag [#allocation6], 1
    %16 = vsyncpa %s15, 0
    %17 = vsyncpa [#allocation4], 0
    %s18 = scalar_lea.sflag [#allocation4], 1
    %19 = vsyncpa %s18, 0
    %20 = vsyncpa [#allocation9], 0
    %s21 = scalar_lea.sflag [#allocation9], 1
    %22 = vsyncpa %s21, 0
    %23 = vsyncpa [#allocation12], 0
    %s24 = scalar_lea.sflag [#allocation12], 1
    %25 = vsyncpa %s24, 0
    loop: start=0, step=1, limit=6
    $region2: #{tpu_custom_call.1} parent=1 // loop_pre_header
      _
    $region3: #{tpu_custom_call.1} parent=1 // loop_header
      %s27 = sphi 0, %s31
      %p28 = scmp.ge.s32.totalorder %s27, 6
      %s37 = sphi 0, %s39
      %s40 = sphi 0, %s37
      %s41 = sphi 0, %s40
      %s57 = sphi 0, %s41
      %s63 = sphi 0, %s65
      %s66 = sphi 0, %s63
      %s67 = sphi 0, %s66
      %s83 = sphi 0, %s67
      %s89 = sphi 0, %s91
      %s92 = sphi 0, %s89
      %s93 = sphi 0, %s92
      %s109 = sphi 0, %s93
      %s115 = sphi 0, %s117
      %s118 = sphi 0, %s115
      %s119 = sphi 0, %s118
      %s135 = sphi 0, %s119
      %s141 = sphi 0, %s143
      %s144 = sphi 0, %s141
      %s145 = sphi 0, %s144
      %s161 = sphi 0, %s145
      %s167 = sphi 0, %s169
      %s170 = sphi 0, %s167
      %s171 = sphi 0, %s170
      %s187 = sphi 0, %s171
    $region4: #{tpu_custom_call.1} parent=1 // loop_header_branch
      %30 = sbr.rel (%p28) target = $region8
    $region5: #{tpu_custom_call.1} parent=1 // loop_body
      %s32 = ssub.s32 %s27, 1
      %s33 = ssub.s32 %s27, 2
      %s34 = sadd.s32 %s27, 1
      %s35 = ssub.s32 %s27, %s34
      %p36 = scmp.eq.s32.totalorder %s35, 0
      %s38 = sadd.s32 %s37, 1
      %s39 = scalar_select %p36, %s37, %s38
      %p42 = pneg %p36
      %p43 = scmp.eq.s32.totalorder %s27, 3
      %p44 = por %p42, %p43
      %p45 = scmp.ne.s32.totalorder %s37, %s40
      %p46 = scmp.eq.s32.totalorder %s27, 0
      %p47 = por %p45, %p46
      %p48 = scmp.ne.s32.totalorder %s37, %s40
      %p49 = scmp.eq.s32.totalorder %s32, 3
      %p50 = por %p48, %p49
      %p51 = scmp.ne.s32.totalorder %s40, %s41
      %p52 = scmp.eq.s32.totalorder %s32, 0
      %p53 = por %p51, %p52
      %p54 = scmp.ne.s32.totalorder %s40, %s41
      %p55 = scmp.eq.s32.totalorder %s33, 3
      %p56 = por %p54, %p55
      %p58 = scmp.ne.s32.totalorder %s41, %s57
      %p59 = scmp.eq.s32.totalorder %s33, 0
      %p60 = por %p58, %p59
      %s61 = ssub.s32 %s27, %s34
      %p62 = scmp.eq.s32.totalorder %s61, 0
      %s64 = sadd.s32 %s63, 1
      %s65 = scalar_select %p62, %s63, %s64
      %p68 = pneg %p62
      %p69 = scmp.eq.s32.totalorder %s27, 3
      %p70 = por %p68, %p69
      %p71 = scmp.ne.s32.totalorder %s63, %s66
      %p72 = scmp.eq.s32.totalorder %s27, 0
      %p73 = por %p71, %p72
      %p74 = scmp.ne.s32.totalorder %s63, %s66
      %p75 = scmp.eq.s32.totalorder %s32, 3
      %p76 = por %p74, %p75
      %p77 = scmp.ne.s32.totalorder %s66, %s67
      %p78 = scmp.eq.s32.totalorder %s32, 0
      %p79 = por %p77, %p78
      %p80 = scmp.ne.s32.totalorder %s66, %s67
      %p81 = scmp.eq.s32.totalorder %s33, 3
      %p82 = por %p80, %p81
      %p84 = scmp.ne.s32.totalorder %s67, %s83
      %p85 = scmp.eq.s32.totalorder %s33, 0
      %p86 = por %p84, %p85
      %s87 = ssub.s32 %s27, %s34
      %p88 = scmp.eq.s32.totalorder %s87, 0
      %s90 = sadd.s32 %s89, 1
      %s91 = scalar_select %p88, %s89, %s90
      %p94 = pneg %p88
      %p95 = scmp.eq.s32.totalorder %s27, 3
      %p96 = por %p94, %p95
      %p97 = scmp.ne.s32.totalorder %s89, %s92
      %p98 = scmp.eq.s32.totalorder %s27, 0
      %p99 = por %p97, %p98
      %p100 = scmp.ne.s32.totalorder %s89, %s92
      %p101 = scmp.eq.s32.totalorder %s32, 3
      %p102 = por %p100, %p101
      %p103 = scmp.ne.s32.totalorder %s92, %s93
      %p104 = scmp.eq.s32.totalorder %s32, 0
      %p105 = por %p103, %p104
      %p106 = scmp.ne.s32.totalorder %s92, %s93
      %p107 = scmp.eq.s32.totalorder %s33, 3
      %p108 = por %p106, %p107
      %p110 = scmp.ne.s32.totalorder %s93, %s109
      %p111 = scmp.eq.s32.totalorder %s33, 0
      %p112 = por %p110, %p111
      %s113 = ssub.s32 %s27, %s34
      %p114 = scmp.eq.s32.totalorder %s113, 0
      %s116 = sadd.s32 %s115, 1
      %s117 = scalar_select %p114, %s115, %s116
      %p120 = pneg %p114
      %p121 = scmp.eq.s32.totalorder %s27, 3
      %p122 = por %p120, %p121
      %p123 = scmp.ne.s32.totalorder %s115, %s118
      %p124 = scmp.eq.s32.totalorder %s27, 0
      %p125 = por %p123, %p124
      %p126 = scmp.ne.s32.totalorder %s115, %s118
      %p127 = scmp.eq.s32.totalorder %s32, 3
      %p128 = por %p126, %p127
      %p129 = scmp.ne.s32.totalorder %s118, %s119
      %p130 = scmp.eq.s32.totalorder %s32, 0
      %p131 = por %p129, %p130
      %p132 = scmp.ne.s32.totalorder %s118, %s119
      %p133 = scmp.eq.s32.totalorder %s33, 3
      %p134 = por %p132, %p133
      %p136 = scmp.ne.s32.totalorder %s119, %s135
      %p137 = scmp.eq.s32.totalorder %s33, 0
      %p138 = por %p136, %p137
      %s139 = ssub.s32 %s27, %s34
      %p140 = scmp.eq.s32.totalorder %s139, 0
      %s142 = sadd.s32 %s141, 1
      %s143 = scalar_select %p140, %s141, %s142
      %p146 = pneg %p140
      %p147 = scmp.eq.s32.totalorder %s27, 3
      %p148 = por %p146, %p147
      %p149 = scmp.ne.s32.totalorder %s141, %s144
      %p150 = scmp.eq.s32.totalorder %s27, 0
      %p151 = por %p149, %p150
      %p152 = scmp.ne.s32.totalorder %s141, %s144
      %p153 = scmp.eq.s32.totalorder %s32, 3
      %p154 = por %p152, %p153
      %p155 = scmp.ne.s32.totalorder %s144, %s145
      %p156 = scmp.eq.s32.totalorder %s32, 0
      %p157 = por %p155, %p156
      %p158 = scmp.ne.s32.totalorder %s144, %s145
      %p159 = scmp.eq.s32.totalorder %s33, 3
      %p160 = por %p158, %p159
      %p162 = scmp.ne.s32.totalorder %s145, %s161
      %p163 = scmp.eq.s32.totalorder %s33, 0
      %p164 = por %p162, %p163
      %s165 = ssub.s32 %s27, %s34
      %p166 = scmp.eq.s32.totalorder %s165, 0
      %s168 = sadd.s32 %s167, 1
      %s169 = scalar_select %p166, %s167, %s168
      %p172 = pneg %p166
      %p173 = scmp.eq.s32.totalorder %s27, 3
      %p174 = por %p172, %p173
      %p175 = scmp.ne.s32.totalorder %s167, %s170
      %p176 = scmp.eq.s32.totalorder %s27, 0
      %p177 = por %p175, %p176
      %p178 = scmp.ne.s32.totalorder %s167, %s170
      %p179 = scmp.eq.s32.totalorder %s32, 3
      %p180 = por %p178, %p179
      %p181 = scmp.ne.s32.totalorder %s170, %s171
      %p182 = scmp.eq.s32.totalorder %s32, 0
      %p183 = por %p181, %p182
      %p184 = scmp.ne.s32.totalorder %s170, %s171
      %p185 = scmp.eq.s32.totalorder %s33, 3
      %p186 = por %p184, %p185
      %p188 = scmp.ne.s32.totalorder %s171, %s187
      %p189 = scmp.eq.s32.totalorder %s33, 0
      %p190 = por %p188, %p189
      %p191 = scmp.le.s32.totalorder 1, %s27
      %p192 = scmp.lt.s32.totalorder %s27, 5
      %p193 = pnand %p191, %p192
      %p194 = pneg %p193
      // Predicated region
      $region9: #{tpu_custom_call.1} parent=5 // pred_check
        _
      $region10: #{tpu_custom_call.1} parent=5 // pred_check_branch
        %196 = sbr.rel (%p193) target = $region12
      $region11: #{tpu_custom_call.1} parent=5 // pred_region
        %s197 = ssub.s32 %s27, 1
      $region12: #{tpu_custom_call.1} parent=5 // pred_fallthru
        _
      %p198 = scmp.lt.s32.totalorder %s27, 4
      // Predicated region
      $region13: #{tpu_custom_call.1} parent=5 // pred_check
        %p199 = pneg %p198
      $region14: #{tpu_custom_call.1} parent=5 // pred_check_branch
        %201 = sbr.rel (%p199) target = $region16
      $region15: #{tpu_custom_call.1} parent=5 // pred_region
        // Predicated region
        $region17: #{tpu_custom_call.1} parent=15 // pred_check
          %p202 = pneg %p47
        $region18: #{tpu_custom_call.1} parent=15 // pred_check_branch
          %204 = sbr.rel (%p202) target = $region20
        $region19: #{tpu_custom_call.1} parent=15 // pred_region
          %s205 = sand.u32 %s37, 1
          %s206 = scalar_lea.sflag [#allocation3], %s205
          %s207 = sand.u32 %s37, 1
          %s208 = smul.addr %s207, 1024
          %s209 = scalar_lea.vmem [#allocation2], %s208
          %s210 = smul.u32 16, %s27
          %s212 = ssub.s32 16384, 16384
          %213 = vsyncadd %s206, %s212
          %s214 = smul.addr %s210, 8
          %s215 = smul.addr %s214, 128
          %s216 = scalar_lea.hbm %s0, %s215
          %s217 = sshll.u32 %s209, 4
          %s218 = int_to_ptr.vmem [resolvable:$true] %s217
          %223 = dma.hbm_to_vmem [thread:$0]  %s216, 16384, %s218, %s206, 1024, 1024, 64
        $region20: #{tpu_custom_call.1} parent=15 // pred_fallthru
          _
        // Predicated region
        $region21: #{tpu_custom_call.1} parent=15 // pred_check
          %p224 = pneg %p73
        $region22: #{tpu_custom_call.1} parent=15 // pred_check_branch
          %226 = sbr.rel (%p224) target = $region24
        $region23: #{tpu_custom_call.1} parent=15 // pred_region
          %s227 = sand.u32 %s63, 1
          %s228 = scalar_lea.sflag [#allocation6], %s227
          %s229 = sand.u32 %s63, 1
          %s230 = smul.addr %s229, 1024
          %s231 = scalar_lea.vmem [#allocation5], %s230
          %s232 = smul.u32 16, %s27
          %s234 = ssub.s32 16384, 16384
          %235 = vsyncadd %s228, %s234
          %s236 = smul.addr %s232, 8
          %s237 = smul.addr %s236, 128
          %s238 = scalar_lea.hbm %s1, %s237
          %s239 = sshll.u32 %s231, 4
          %s240 = int_to_ptr.vmem [resolvable:$true] %s239
          %245 = dma.hbm_to_vmem [thread:$0]  %s238, 16384, %s240, %s228, 1024, 1024, 64
        $region24: #{tpu_custom_call.1} parent=15 // pred_fallthru
          _
      $region16: #{tpu_custom_call.1} parent=5 // pred_fallthru
        _
      %p246 = scmp.le.s32.totalorder 1, %s27
      %p247 = scmp.lt.s32.totalorder %s27, 5
      %p248 = pnand %p246, %p247
      %p249 = pneg %p248
      // Predicated region
      $region25: #{tpu_custom_call.1} parent=5 // pred_check
        _
      $region26: #{tpu_custom_call.1} parent=5 // pred_check_branch
        %251 = sbr.rel (%p248) target = $region28
      $region27: #{tpu_custom_call.1} parent=5 // pred_region
        %s252 = ssub.s32 %s27, 1
        %s253 = sand.u32 %s40, 1
        %s254 = scalar_lea.sflag [#allocation3], %s253
        %s255 = sand.u32 %s40, 1
        %s256 = smul.addr %s255, 1024
        %s257 = scalar_lea.vmem [#allocation2], %s256
        // Predicated region
        $region29: #{tpu_custom_call.1} parent=27 // pred_check
          %p258 = pneg %p53
        $region30: #{tpu_custom_call.1} parent=27 // pred_check_branch
          %260 = sbr.rel (%p258) target = $region32
        $region31: #{tpu_custom_call.1} parent=27 // pred_region
          %261 = dma.done %s254, 16384
        $region32: #{tpu_custom_call.1} parent=27 // pred_fallthru
          _
        %s262 = sand.u32 %s66, 1
        %s263 = scalar_lea.sflag [#allocation6], %s262
        %s264 = sand.u32 %s66, 1
        %s265 = smul.addr %s264, 1024
        %s266 = scalar_lea.vmem [#allocation5], %s265
        // Predicated region
        $region33: #{tpu_custom_call.1} parent=27 // pred_check
          %p267 = pneg %p79
        $region34: #{tpu_custom_call.1} parent=27 // pred_check_branch
          %269 = sbr.rel (%p267) target = $region36
        $region35: #{tpu_custom_call.1} parent=27 // pred_region
          %270 = dma.done %s263, 16384
        $region36: #{tpu_custom_call.1} parent=27 // pred_fallthru
          _
        %s271 = sand.u32 %s40, 1
        %s272 = scalar_lea.sflag [#allocation3], %s271
        %s273 = sand.u32 %s40, 1
        %s274 = smul.addr %s273, 1024
        %s275 = scalar_lea.vmem [#allocation2], %s274
        %p276 = pneg %p53
        %p277 = pneg %p50
        %s278 = sand.u32 %s66, 1
        %s279 = scalar_lea.sflag [#allocation6], %s278
        %s280 = sand.u32 %s66, 1
        %s281 = smul.addr %s280, 1024
        %s282 = scalar_lea.vmem [#allocation5], %s281
        %p283 = pneg %p79
        %p284 = pneg %p76
        %p285 = pneg %p105
        %p286 = pneg %p102
        %s287 = sand.u32 %s92, 1
        %s288 = scalar_lea.sflag [#allocation4], %s287
        %s289 = sand.u32 %s92, 1
        %s290 = smul.addr %s289, 512
        %s291 = scalar_lea.vmem [#allocation7], %s290
        %p292 = pneg %p131
        %p293 = pneg %p128
        %s294 = sand.u32 %s32, 1
        %s295 = scalar_lea.sflag [#allocation9], %s294
        %s296 = sand.u32 %s118, 1
        %s297 = smul.addr %s296, 512
        %s298 = scalar_lea.vmem [#allocation8], %s297
        %p299 = pneg %p157
        %p300 = pneg %p154
        %s301 = sand.u32 %s32, 1
        %s302 = scalar_lea.sflag [#allocation9], %s301
        %s303 = sand.u32 %s144, 1
        %s304 = smul.addr %s303, 8
        %s305 = scalar_lea.vmem [#allocation10], %s304
        %p306 = pneg %p183
        %p307 = pneg %p180
        %s308 = sand.u32 %s170, 1
        %s309 = scalar_lea.sflag [#allocation12], %s308
        %s310 = sand.u32 %s170, 1
        %s311 = smul.addr %s310, 8
        %s312 = scalar_lea.vmem [#allocation11], %s311
        %s313 = smul.u32 16, %s32
        %s314 = smul.u32 16, %s32
        %s315 = smul.u32 16, %s32
        %s316 = smul.u32 16, %s32
        %v317 = vld [vmem:[%s257] sm:$0xff]
        %v318 = vld [vmem:[%s257 + $0x8] sm:$0xff]
        %v319 = vld [vmem:[%s257 + $0x10] sm:$0xff]
        %v320 = vld [vmem:[%s257 + $0x18] sm:$0xff]
        %v321 = vld [vmem:[%s257 + $0x20] sm:$0xff]
        %v322 = vld [vmem:[%s257 + $0x28] sm:$0xff]
        %v323 = vld [vmem:[%s257 + $0x30] sm:$0xff]
        %v324 = vld [vmem:[%s257 + $0x38] sm:$0xff]
        %v325 = vld [vmem:[%s257 + $0x40] sm:$0xff]
        %v326 = vld [vmem:[%s257 + $0x48] sm:$0xff]
        %v327 = vld [vmem:[%s257 + $0x50] sm:$0xff]
        %v328 = vld [vmem:[%s257 + $0x58] sm:$0xff]
        %v329 = vld [vmem:[%s257 + $0x60] sm:$0xff]
        %v330 = vld [vmem:[%s257 + $0x68] sm:$0xff]
        %v331 = vld [vmem:[%s257 + $0x70] sm:$0xff]
        %v332 = vld [vmem:[%s257 + $0x78] sm:$0xff]
        %v333 = vld [vmem:[%s257 + $0x80] sm:$0xff]
        %v334 = vld [vmem:[%s257 + $0x88] sm:$0xff]
        %v335 = vld [vmem:[%s257 + $0x90] sm:$0xff]
        %v336 = vld [vmem:[%s257 + $0x98] sm:$0xff]
        %v337 = vld [vmem:[%s257 + $0xa0] sm:$0xff]
        %v338 = vld [vmem:[%s257 + $0xa8] sm:$0xff]
        %v339 = vld [vmem:[%s257 + $0xb0] sm:$0xff]
        %v340 = vld [vmem:[%s257 + $0xb8] sm:$0xff]
        %v341 = vld [vmem:[%s257 + $0xc0] sm:$0xff]
        %v342 = vld [vmem:[%s257 + $0xc8] sm:$0xff]
        %v343 = vld [vmem:[%s257 + $0xd0] sm:$0xff]
        %v344 = vld [vmem:[%s257 + $0xd8] sm:$0xff]
        %v345 = vld [vmem:[%s257 + $0xe0] sm:$0xff]
        %v346 = vld [vmem:[%s257 + $0xe8] sm:$0xff]
        %v347 = vld [vmem:[%s257 + $0xf0] sm:$0xff]
        %v348 = vld [vmem:[%s257 + $0xf8] sm:$0xff]
        %v349 = vld [vmem:[%s257 + $0x100] sm:$0xff]
        %v350 = vld [vmem:[%s257 + $0x108] sm:$0xff]
        %v351 = vld [vmem:[%s257 + $0x110] sm:$0xff]
        %v352 = vld [vmem:[%s257 + $0x118] sm:$0xff]
        %v353 = vld [vmem:[%s257 + $0x120] sm:$0xff]
        %v354 = vld [vmem:[%s257 + $0x128] sm:$0xff]
        %v355 = vld [vmem:[%s257 + $0x130] sm:$0xff]
        %v356 = vld [vmem:[%s257 + $0x138] sm:$0xff]
        %v357 = vld [vmem:[%s257 + $0x140] sm:$0xff]
        %v358 = vld [vmem:[%s257 + $0x148] sm:$0xff]
        %v359 = vld [vmem:[%s257 + $0x150] sm:$0xff]
        %v360 = vld [vmem:[%s257 + $0x158] sm:$0xff]
        %v361 = vld [vmem:[%s257 + $0x160] sm:$0xff]
        %v362 = vld [vmem:[%s257 + $0x168] sm:$0xff]
        %v363 = vld [vmem:[%s257 + $0x170] sm:$0xff]
        %v364 = vld [vmem:[%s257 + $0x178] sm:$0xff]
        %v365 = vld [vmem:[%s257 + $0x180] sm:$0xff]
        %v366 = vld [vmem:[%s257 + $0x188] sm:$0xff]
        %v367 = vld [vmem:[%s257 + $0x190] sm:$0xff]
        %v368 = vld [vmem:[%s257 + $0x198] sm:$0xff]
        %v369 = vld [vmem:[%s257 + $0x1a0] sm:$0xff]
        %v370 = vld [vmem:[%s257 + $0x1a8] sm:$0xff]
        %v371 = vld [vmem:[%s257 + $0x1b0] sm:$0xff]
        %v372 = vld [vmem:[%s257 + $0x1b8] sm:$0xff]
        %v373 = vld [vmem:[%s257 + $0x1c0] sm:$0xff]
        %v374 = vld [vmem:[%s257 + $0x1c8] sm:$0xff]
        %v375 = vld [vmem:[%s257 + $0x1d0] sm:$0xff]
        %v376 = vld [vmem:[%s257 + $0x1d8] sm:$0xff]
        %v377 = vld [vmem:[%s257 + $0x1e0] sm:$0xff]
        %v378 = vld [vmem:[%s257 + $0x1e8] sm:$0xff]
        %v379 = vld [vmem:[%s257 + $0x1f0] sm:$0xff]
        %v380 = vld [vmem:[%s257 + $0x1f8] sm:$0xff]
        %v381 = vld [vmem:[%s257 + $0x200] sm:$0xff]
        %v382 = vld [vmem:[%s257 + $0x208] sm:$0xff]
        %v383 = vld [vmem:[%s257 + $0x210] sm:$0xff]
        %v384 = vld [vmem:[%s257 + $0x218] sm:$0xff]
        %v385 = vld [vmem:[%s257 + $0x220] sm:$0xff]
        %v386 = vld [vmem:[%s257 + $0x228] sm:$0xff]
        %v387 = vld [vmem:[%s257 + $0x230] sm:$0xff]
        %v388 = vld [vmem:[%s257 + $0x238] sm:$0xff]
        %v389 = vld [vmem:[%s257 + $0x240] sm:$0xff]
        %v390 = vld [vmem:[%s257 + $0x248] sm:$0xff]
        %v391 = vld [vmem:[%s257 + $0x250] sm:$0xff]
        %v392 = vld [vmem:[%s257 + $0x258] sm:$0xff]
        %v393 = vld [vmem:[%s257 + $0x260] sm:$0xff]
        %v394 = vld [vmem:[%s257 + $0x268] sm:$0xff]
        %v395 = vld [vmem:[%s257 + $0x270] sm:$0xff]
        %v396 = vld [vmem:[%s257 + $0x278] sm:$0xff]
        %v397 = vld [vmem:[%s257 + $0x280] sm:$0xff]
        %v398 = vld [vmem:[%s257 + $0x288] sm:$0xff]
        %v399 = vld [vmem:[%s257 + $0x290] sm:$0xff]
        %v400 = vld [vmem:[%s257 + $0x298] sm:$0xff]
        %v401 = vld [vmem:[%s257 + $0x2a0] sm:$0xff]
        %v402 = vld [vmem:[%s257 + $0x2a8] sm:$0xff]
        %v403 = vld [vmem:[%s257 + $0x2b0] sm:$0xff]
        %v404 = vld [vmem:[%s257 + $0x2b8] sm:$0xff]
        %v405 = vld [vmem:[%s257 + $0x2c0] sm:$0xff]
        %v406 = vld [vmem:[%s257 + $0x2c8] sm:$0xff]
        %v407 = vld [vmem:[%s257 + $0x2d0] sm:$0xff]
        %v408 = vld [vmem:[%s257 + $0x2d8] sm:$0xff]
        %v409 = vld [vmem:[%s257 + $0x2e0] sm:$0xff]
        %v410 = vld [vmem:[%s257 + $0x2e8] sm:$0xff]
        %v411 = vld [vmem:[%s257 + $0x2f0] sm:$0xff]
        %v412 = vld [vmem:[%s257 + $0x2f8] sm:$0xff]
        %v413 = vld [vmem:[%s257 + $0x300] sm:$0xff]
        %v414 = vld [vmem:[%s257 + $0x308] sm:$0xff]
        %v415 = vld [vmem:[%s257 + $0x310] sm:$0xff]
        %v416 = vld [vmem:[%s257 + $0x318] sm:$0xff]
        %v417 = vld [vmem:[%s257 + $0x320] sm:$0xff]
        %v418 = vld [vmem:[%s257 + $0x328] sm:$0xff]
        %v419 = vld [vmem:[%s257 + $0x330] sm:$0xff]
        %v420 = vld [vmem:[%s257 + $0x338] sm:$0xff]
        %v421 = vld [vmem:[%s257 + $0x340] sm:$0xff]
        %v422 = vld [vmem:[%s257 + $0x348] sm:$0xff]
        %v423 = vld [vmem:[%s257 + $0x350] sm:$0xff]
        %v424 = vld [vmem:[%s257 + $0x358] sm:$0xff]
        %v425 = vld [vmem:[%s257 + $0x360] sm:$0xff]
        %v426 = vld [vmem:[%s257 + $0x368] sm:$0xff]
        %v427 = vld [vmem:[%s257 + $0x370] sm:$0xff]
        %v428 = vld [vmem:[%s257 + $0x378] sm:$0xff]
        %v429 = vld [vmem:[%s257 + $0x380] sm:$0xff]
        %v430 = vld [vmem:[%s257 + $0x388] sm:$0xff]
        %v431 = vld [vmem:[%s257 + $0x390] sm:$0xff]
        %v432 = vld [vmem:[%s257 + $0x398] sm:$0xff]
        %v433 = vld [vmem:[%s257 + $0x3a0] sm:$0xff]
        %v434 = vld [vmem:[%s257 + $0x3a8] sm:$0xff]
        %v435 = vld [vmem:[%s257 + $0x3b0] sm:$0xff]
        %v436 = vld [vmem:[%s257 + $0x3b8] sm:$0xff]
        %v437 = vld [vmem:[%s257 + $0x3c0] sm:$0xff]
        %v438 = vld [vmem:[%s257 + $0x3c8] sm:$0xff]
        %v439 = vld [vmem:[%s257 + $0x3d0] sm:$0xff]
        %v440 = vld [vmem:[%s257 + $0x3d8] sm:$0xff]
        %v441 = vld [vmem:[%s257 + $0x3e0] sm:$0xff]
        %v442 = vld [vmem:[%s257 + $0x3e8] sm:$0xff]
        %v443 = vld [vmem:[%s257 + $0x3f0] sm:$0xff]
        %v444 = vld [vmem:[%s257 + $0x3f8] sm:$0xff]
        %v445 = vld [vmem:[%s266] sm:$0xff]
        %v446 = vld [vmem:[%s266 + $0x8] sm:$0xff]
        %v447 = vld [vmem:[%s266 + $0x10] sm:$0xff]
        %v448 = vld [vmem:[%s266 + $0x18] sm:$0xff]
        %v449 = vld [vmem:[%s266 + $0x20] sm:$0xff]
        %v450 = vld [vmem:[%s266 + $0x28] sm:$0xff]
        %v451 = vld [vmem:[%s266 + $0x30] sm:$0xff]
        %v452 = vld [vmem:[%s266 + $0x38] sm:$0xff]
        %v453 = vld [vmem:[%s266 + $0x40] sm:$0xff]
        %v454 = vld [vmem:[%s266 + $0x48] sm:$0xff]
        %v455 = vld [vmem:[%s266 + $0x50] sm:$0xff]
        %v456 = vld [vmem:[%s266 + $0x58] sm:$0xff]
        %v457 = vld [vmem:[%s266 + $0x60] sm:$0xff]
        %v458 = vld [vmem:[%s266 + $0x68] sm:$0xff]
        %v459 = vld [vmem:[%s266 + $0x70] sm:$0xff]
        %v460 = vld [vmem:[%s266 + $0x78] sm:$0xff]
        %v461 = vld [vmem:[%s266 + $0x80] sm:$0xff]
        %v462 = vld [vmem:[%s266 + $0x88] sm:$0xff]
        %v463 = vld [vmem:[%s266 + $0x90] sm:$0xff]
        %v464 = vld [vmem:[%s266 + $0x98] sm:$0xff]
        %v465 = vld [vmem:[%s266 + $0xa0] sm:$0xff]
        %v466 = vld [vmem:[%s266 + $0xa8] sm:$0xff]
        %v467 = vld [vmem:[%s266 + $0xb0] sm:$0xff]
        %v468 = vld [vmem:[%s266 + $0xb8] sm:$0xff]
        %v469 = vld [vmem:[%s266 + $0xc0] sm:$0xff]
        %v470 = vld [vmem:[%s266 + $0xc8] sm:$0xff]
        %v471 = vld [vmem:[%s266 + $0xd0] sm:$0xff]
        %v472 = vld [vmem:[%s266 + $0xd8] sm:$0xff]
        %v473 = vld [vmem:[%s266 + $0xe0] sm:$0xff]
        %v474 = vld [vmem:[%s266 + $0xe8] sm:$0xff]
        %v475 = vld [vmem:[%s266 + $0xf0] sm:$0xff]
        %v476 = vld [vmem:[%s266 + $0xf8] sm:$0xff]
        %v477 = vld [vmem:[%s266 + $0x100] sm:$0xff]
        %v478 = vld [vmem:[%s266 + $0x108] sm:$0xff]
        %v479 = vld [vmem:[%s266 + $0x110] sm:$0xff]
        %v480 = vld [vmem:[%s266 + $0x118] sm:$0xff]
        %v481 = vld [vmem:[%s266 + $0x120] sm:$0xff]
        %v482 = vld [vmem:[%s266 + $0x128] sm:$0xff]
        %v483 = vld [vmem:[%s266 + $0x130] sm:$0xff]
        %v484 = vld [vmem:[%s266 + $0x138] sm:$0xff]
        %v485 = vld [vmem:[%s266 + $0x140] sm:$0xff]
        %v486 = vld [vmem:[%s266 + $0x148] sm:$0xff]
        %v487 = vld [vmem:[%s266 + $0x150] sm:$0xff]
        %v488 = vld [vmem:[%s266 + $0x158] sm:$0xff]
        %v489 = vld [vmem:[%s266 + $0x160] sm:$0xff]
        %v490 = vld [vmem:[%s266 + $0x168] sm:$0xff]
        %v491 = vld [vmem:[%s266 + $0x170] sm:$0xff]
        %v492 = vld [vmem:[%s266 + $0x178] sm:$0xff]
        %v493 = vld [vmem:[%s266 + $0x180] sm:$0xff]
        %v494 = vld [vmem:[%s266 + $0x188] sm:$0xff]
        %v495 = vld [vmem:[%s266 + $0x190] sm:$0xff]
        %v496 = vld [vmem:[%s266 + $0x198] sm:$0xff]
        %v497 = vld [vmem:[%s266 + $0x1a0] sm:$0xff]
        %v498 = vld [vmem:[%s266 + $0x1a8] sm:$0xff]
        %v499 = vld [vmem:[%s266 + $0x1b0] sm:$0xff]
        %v500 = vld [vmem:[%s266 + $0x1b8] sm:$0xff]
        %v501 = vld [vmem:[%s266 + $0x1c0] sm:$0xff]
        %v502 = vld [vmem:[%s266 + $0x1c8] sm:$0xff]
        %v503 = vld [vmem:[%s266 + $0x1d0] sm:$0xff]
        %v504 = vld [vmem:[%s266 + $0x1d8] sm:$0xff]
        %v505 = vld [vmem:[%s266 + $0x1e0] sm:$0xff]
        %v506 = vld [vmem:[%s266 + $0x1e8] sm:$0xff]
        %v507 = vld [vmem:[%s266 + $0x1f0] sm:$0xff]
        %v508 = vld [vmem:[%s266 + $0x1f8] sm:$0xff]
        %v509 = vld [vmem:[%s266 + $0x200] sm:$0xff]
        %v510 = vld [vmem:[%s266 + $0x208] sm:$0xff]
        %v511 = vld [vmem:[%s266 + $0x210] sm:$0xff]
        %v512 = vld [vmem:[%s266 + $0x218] sm:$0xff]
        %v513 = vld [vmem:[%s266 + $0x220] sm:$0xff]
        %v514 = vld [vmem:[%s266 + $0x228] sm:$0xff]
        %v515 = vld [vmem:[%s266 + $0x230] sm:$0xff]
        %v516 = vld [vmem:[%s266 + $0x238] sm:$0xff]
        %v517 = vld [vmem:[%s266 + $0x240] sm:$0xff]
        %v518 = vld [vmem:[%s266 + $0x248] sm:$0xff]
        %v519 = vld [vmem:[%s266 + $0x250] sm:$0xff]
        %v520 = vld [vmem:[%s266 + $0x258] sm:$0xff]
        %v521 = vld [vmem:[%s266 + $0x260] sm:$0xff]
        %v522 = vld [vmem:[%s266 + $0x268] sm:$0xff]
        %v523 = vld [vmem:[%s266 + $0x270] sm:$0xff]
        %v524 = vld [vmem:[%s266 + $0x278] sm:$0xff]
        %v525 = vld [vmem:[%s266 + $0x280] sm:$0xff]
        %v526 = vld [vmem:[%s266 + $0x288] sm:$0xff]
        %v527 = vld [vmem:[%s266 + $0x290] sm:$0xff]
        %v528 = vld [vmem:[%s266 + $0x298] sm:$0xff]
        %v529 = vld [vmem:[%s266 + $0x2a0] sm:$0xff]
        %v530 = vld [vmem:[%s266 + $0x2a8] sm:$0xff]
        %v531 = vld [vmem:[%s266 + $0x2b0] sm:$0xff]
        %v532 = vld [vmem:[%s266 + $0x2b8] sm:$0xff]
        %v533 = vld [vmem:[%s266 + $0x2c0] sm:$0xff]
        %v534 = vld [vmem:[%s266 + $0x2c8] sm:$0xff]
        %v535 = vld [vmem:[%s266 + $0x2d0] sm:$0xff]
        %v536 = vld [vmem:[%s266 + $0x2d8] sm:$0xff]
        %v537 = vld [vmem:[%s266 + $0x2e0] sm:$0xff]
        %v538 = vld [vmem:[%s266 + $0x2e8] sm:$0xff]
        %v539 = vld [vmem:[%s266 + $0x2f0] sm:$0xff]
        %v540 = vld [vmem:[%s266 + $0x2f8] sm:$0xff]
        %v541 = vld [vmem:[%s266 + $0x300] sm:$0xff]
        %v542 = vld [vmem:[%s266 + $0x308] sm:$0xff]
        %v543 = vld [vmem:[%s266 + $0x310] sm:$0xff]
        %v544 = vld [vmem:[%s266 + $0x318] sm:$0xff]
        %v545 = vld [vmem:[%s266 + $0x320] sm:$0xff]
        %v546 = vld [vmem:[%s266 + $0x328] sm:$0xff]
        %v547 = vld [vmem:[%s266 + $0x330] sm:$0xff]
        %v548 = vld [vmem:[%s266 + $0x338] sm:$0xff]
        %v549 = vld [vmem:[%s266 + $0x340] sm:$0xff]
        %v550 = vld [vmem:[%s266 + $0x348] sm:$0xff]
        %v551 = vld [vmem:[%s266 + $0x350] sm:$0xff]
        %v552 = vld [vmem:[%s266 + $0x358] sm:$0xff]
        %v553 = vld [vmem:[%s266 + $0x360] sm:$0xff]
        %v554 = vld [vmem:[%s266 + $0x368] sm:$0xff]
        %v555 = vld [vmem:[%s266 + $0x370] sm:$0xff]
        %v556 = vld [vmem:[%s266 + $0x378] sm:$0xff]
        %v557 = vld [vmem:[%s266 + $0x380] sm:$0xff]
        %v558 = vld [vmem:[%s266 + $0x388] sm:$0xff]
        %v559 = vld [vmem:[%s266 + $0x390] sm:$0xff]
        %v560 = vld [vmem:[%s266 + $0x398] sm:$0xff]
        %v561 = vld [vmem:[%s266 + $0x3a0] sm:$0xff]
        %v562 = vld [vmem:[%s266 + $0x3a8] sm:$0xff]
        %v563 = vld [vmem:[%s266 + $0x3b0] sm:$0xff]
        %v564 = vld [vmem:[%s266 + $0x3b8] sm:$0xff]
        %v565 = vld [vmem:[%s266 + $0x3c0] sm:$0xff]
        %v566 = vld [vmem:[%s266 + $0x3c8] sm:$0xff]
        %v567 = vld [vmem:[%s266 + $0x3d0] sm:$0xff]
        %v568 = vld [vmem:[%s266 + $0x3d8] sm:$0xff]
        %v569 = vld [vmem:[%s266 + $0x3e0] sm:$0xff]
        %v570 = vld [vmem:[%s266 + $0x3e8] sm:$0xff]
        %v571 = vld [vmem:[%s266 + $0x3f0] sm:$0xff]
        %v572 = vld [vmem:[%s266 + $0x3f8] sm:$0xff]
        %v573 = vmul.f32 %v317, %v317
        %v574 = vmul.f32 %v318, %v318
        %v575 = vmul.f32 %v319, %v319
        %v576 = vmul.f32 %v320, %v320
        %v577 = vmul.f32 %v321, %v321
        %v578 = vmul.f32 %v322, %v322
        %v579 = vmul.f32 %v323, %v323
        %v580 = vmul.f32 %v324, %v324
        %v581 = vmul.f32 %v325, %v325
        %v582 = vmul.f32 %v326, %v326
        %v583 = vmul.f32 %v327, %v327
        %v584 = vmul.f32 %v328, %v328
        %v585 = vmul.f32 %v329, %v329
        %v586 = vmul.f32 %v330, %v330
        %v587 = vmul.f32 %v331, %v331
        %v588 = vmul.f32 %v332, %v332
        %v589 = vmul.f32 %v333, %v333
        %v590 = vmul.f32 %v334, %v334
        %v591 = vmul.f32 %v335, %v335
        %v592 = vmul.f32 %v336, %v336
        %v593 = vmul.f32 %v337, %v337
        %v594 = vmul.f32 %v338, %v338
        %v595 = vmul.f32 %v339, %v339
        %v596 = vmul.f32 %v340, %v340
        %v597 = vmul.f32 %v341, %v341
        %v598 = vmul.f32 %v342, %v342
        %v599 = vmul.f32 %v343, %v343
        %v600 = vmul.f32 %v344, %v344
        %v601 = vmul.f32 %v345, %v345
        %v602 = vmul.f32 %v346, %v346
        %v603 = vmul.f32 %v347, %v347
        %v604 = vmul.f32 %v348, %v348
        %v605 = vmul.f32 %v349, %v349
        %v606 = vmul.f32 %v350, %v350
        %v607 = vmul.f32 %v351, %v351
        %v608 = vmul.f32 %v352, %v352
        %v609 = vmul.f32 %v353, %v353
        %v610 = vmul.f32 %v354, %v354
        %v611 = vmul.f32 %v355, %v355
        %v612 = vmul.f32 %v356, %v356
        %v613 = vmul.f32 %v357, %v357
        %v614 = vmul.f32 %v358, %v358
        %v615 = vmul.f32 %v359, %v359
        %v616 = vmul.f32 %v360, %v360
        %v617 = vmul.f32 %v361, %v361
        %v618 = vmul.f32 %v362, %v362
        %v619 = vmul.f32 %v363, %v363
        %v620 = vmul.f32 %v364, %v364
        %v621 = vmul.f32 %v365, %v365
        %v622 = vmul.f32 %v366, %v366
        %v623 = vmul.f32 %v367, %v367
        %v624 = vmul.f32 %v368, %v368
        %v625 = vmul.f32 %v369, %v369
        %v626 = vmul.f32 %v370, %v370
        %v627 = vmul.f32 %v371, %v371
        %v628 = vmul.f32 %v372, %v372
        %v629 = vmul.f32 %v373, %v373
        %v630 = vmul.f32 %v374, %v374
        %v631 = vmul.f32 %v375, %v375
        %v632 = vmul.f32 %v376, %v376
        %v633 = vmul.f32 %v377, %v377
        %v634 = vmul.f32 %v378, %v378
        %v635 = vmul.f32 %v379, %v379
        %v636 = vmul.f32 %v380, %v380
        %v637 = vmul.f32 %v381, %v381
        %v638 = vmul.f32 %v382, %v382
        %v639 = vmul.f32 %v383, %v383
        %v640 = vmul.f32 %v384, %v384
        %v641 = vmul.f32 %v385, %v385
        %v642 = vmul.f32 %v386, %v386
        %v643 = vmul.f32 %v387, %v387
        %v644 = vmul.f32 %v388, %v388
        %v645 = vmul.f32 %v389, %v389
        %v646 = vmul.f32 %v390, %v390
        %v647 = vmul.f32 %v391, %v391
        %v648 = vmul.f32 %v392, %v392
        %v649 = vmul.f32 %v393, %v393
        %v650 = vmul.f32 %v394, %v394
        %v651 = vmul.f32 %v395, %v395
        %v652 = vmul.f32 %v396, %v396
        %v653 = vmul.f32 %v397, %v397
        %v654 = vmul.f32 %v398, %v398
        %v655 = vmul.f32 %v399, %v399
        %v656 = vmul.f32 %v400, %v400
        %v657 = vmul.f32 %v401, %v401
        %v658 = vmul.f32 %v402, %v402
        %v659 = vmul.f32 %v403, %v403
        %v660 = vmul.f32 %v404, %v404
        %v661 = vmul.f32 %v405, %v405
        %v662 = vmul.f32 %v406, %v406
        %v663 = vmul.f32 %v407, %v407
        %v664 = vmul.f32 %v408, %v408
        %v665 = vmul.f32 %v409, %v409
        %v666 = vmul.f32 %v410, %v410
        %v667 = vmul.f32 %v411, %v411
        %v668 = vmul.f32 %v412, %v412
        %v669 = vmul.f32 %v413, %v413
        %v670 = vmul.f32 %v414, %v414
        %v671 = vmul.f32 %v415, %v415
        %v672 = vmul.f32 %v416, %v416
        %v673 = vmul.f32 %v417, %v417
        %v674 = vmul.f32 %v418, %v418
        %v675 = vmul.f32 %v419, %v419
        %v676 = vmul.f32 %v420, %v420
        %v677 = vmul.f32 %v421, %v421
        %v678 = vmul.f32 %v422, %v422
        %v679 = vmul.f32 %v423, %v423
        %v680 = vmul.f32 %v424, %v424
        %v681 = vmul.f32 %v425, %v425
        %v682 = vmul.f32 %v426, %v426
        %v683 = vmul.f32 %v427, %v427
        %v684 = vmul.f32 %v428, %v428
        %v685 = vmul.f32 %v429, %v429
        %v686 = vmul.f32 %v430, %v430
        %v687 = vmul.f32 %v431, %v431
        %v688 = vmul.f32 %v432, %v432
        %v689 = vmul.f32 %v433, %v433
        %v690 = vmul.f32 %v434, %v434
        %v691 = vmul.f32 %v435, %v435
        %v692 = vmul.f32 %v436, %v436
        %v693 = vmul.f32 %v437, %v437
        %v694 = vmul.f32 %v438, %v438
        %v695 = vmul.f32 %v439, %v439
        %v696 = vmul.f32 %v440, %v440
        %v697 = vmul.f32 %v441, %v441
        %v698 = vmul.f32 %v442, %v442
        %v699 = vmul.f32 %v443, %v443
        %v700 = vmul.f32 %v444, %v444
        %v701 = vadd.f32 %v573, %v574
        %v702 = vadd.f32 %v701, %v575
        %v703 = vadd.f32 %v702, %v576
        %v704 = vadd.f32 %v703, %v577
        %v705 = vadd.f32 %v704, %v578
        %v706 = vadd.f32 %v705, %v579
        %v707 = vadd.f32 %v706, %v580
        %708 = vadd.xlane.f32.xlu0 %v707
        %v709 = vpop.xlane.xlu0 %708
        %v710 = vadd.f32 %v581, %v582
        %v711 = vadd.f32 %v710, %v583
        %v712 = vadd.f32 %v711, %v584
        %v713 = vadd.f32 %v712, %v585
        %v714 = vadd.f32 %v713, %v586
        %v715 = vadd.f32 %v714, %v587
        %v716 = vadd.f32 %v715, %v588
        %717 = vadd.xlane.f32.xlu0 %v716
        %v718 = vpop.xlane.xlu0 %717
        %v719 = vadd.f32 %v589, %v590
        %v720 = vadd.f32 %v719, %v591
        %v721 = vadd.f32 %v720, %v592
        %v722 = vadd.f32 %v721, %v593
        %v723 = vadd.f32 %v722, %v594
        %v724 = vadd.f32 %v723, %v595
        %v725 = vadd.f32 %v724, %v596
        %726 = vadd.xlane.f32.xlu0 %v725
        %v727 = vpop.xlane.xlu0 %726
        %v728 = vadd.f32 %v597, %v598
        %v729 = vadd.f32 %v728, %v599
        %v730 = vadd.f32 %v729, %v600
        %v731 = vadd.f32 %v730, %v601
        %v732 = vadd.f32 %v731, %v602
        %v733 = vadd.f32 %v732, %v603
        %v734 = vadd.f32 %v733, %v604
        %735 = vadd.xlane.f32.xlu0 %v734
        %v736 = vpop.xlane.xlu0 %735
        %v737 = vadd.f32 %v605, %v606
        %v738 = vadd.f32 %v737, %v607
        %v739 = vadd.f32 %v738, %v608
        %v740 = vadd.f32 %v739, %v609
        %v741 = vadd.f32 %v740, %v610
        %v742 = vadd.f32 %v741, %v611
        %v743 = vadd.f32 %v742, %v612
        %744 = vadd.xlane.f32.xlu0 %v743
        %v745 = vpop.xlane.xlu0 %744
        %v746 = vadd.f32 %v613, %v614
        %v747 = vadd.f32 %v746, %v615
        %v748 = vadd.f32 %v747, %v616
        %v749 = vadd.f32 %v748, %v617
        %v750 = vadd.f32 %v749, %v618
        %v751 = vadd.f32 %v750, %v619
        %v752 = vadd.f32 %v751, %v620
        %753 = vadd.xlane.f32.xlu0 %v752
        %v754 = vpop.xlane.xlu0 %753
        %v755 = vadd.f32 %v621, %v622
        %v756 = vadd.f32 %v755, %v623
        %v757 = vadd.f32 %v756, %v624
        %v758 = vadd.f32 %v757, %v625
        %v759 = vadd.f32 %v758, %v626
        %v760 = vadd.f32 %v759, %v627
        %v761 = vadd.f32 %v760, %v628
        %762 = vadd.xlane.f32.xlu0 %v761
        %v763 = vpop.xlane.xlu0 %762
        %v764 = vadd.f32 %v629, %v630
        %v765 = vadd.f32 %v764, %v631
        %v766 = vadd.f32 %v765, %v632
        %v767 = vadd.f32 %v766, %v633
        %v768 = vadd.f32 %v767, %v634
        %v769 = vadd.f32 %v768, %v635
        %v770 = vadd.f32 %v769, %v636
        %771 = vadd.xlane.f32.xlu0 %v770
        %v772 = vpop.xlane.xlu0 %771
        %v773 = vadd.f32 %v637, %v638
        %v774 = vadd.f32 %v773, %v639
        %v775 = vadd.f32 %v774, %v640
        %v776 = vadd.f32 %v775, %v641
        %v777 = vadd.f32 %v776, %v642
        %v778 = vadd.f32 %v777, %v643
        %v779 = vadd.f32 %v778, %v644
        %780 = vadd.xlane.f32.xlu0 %v779
        %v781 = vpop.xlane.xlu0 %780
        %v782 = vadd.f32 %v645, %v646
        %v783 = vadd.f32 %v782, %v647
        %v784 = vadd.f32 %v783, %v648
        %v785 = vadd.f32 %v784, %v649
        %v786 = vadd.f32 %v785, %v650
        %v787 = vadd.f32 %v786, %v651
        %v788 = vadd.f32 %v787, %v652
        %789 = vadd.xlane.f32.xlu0 %v788
        %v790 = vpop.xlane.xlu0 %789
        %v791 = vadd.f32 %v653, %v654
        %v792 = vadd.f32 %v791, %v655
        %v793 = vadd.f32 %v792, %v656
        %v794 = vadd.f32 %v793, %v657
        %v795 = vadd.f32 %v794, %v658
        %v796 = vadd.f32 %v795, %v659
        %v797 = vadd.f32 %v796, %v660
        %798 = vadd.xlane.f32.xlu0 %v797
        %v799 = vpop.xlane.xlu0 %798
        %v800 = vadd.f32 %v661, %v662
        %v801 = vadd.f32 %v800, %v663
        %v802 = vadd.f32 %v801, %v664
        %v803 = vadd.f32 %v802, %v665
        %v804 = vadd.f32 %v803, %v666
        %v805 = vadd.f32 %v804, %v667
        %v806 = vadd.f32 %v805, %v668
        %807 = vadd.xlane.f32.xlu0 %v806
        %v808 = vpop.xlane.xlu0 %807
        %v809 = vadd.f32 %v669, %v670
        %v810 = vadd.f32 %v809, %v671
        %v811 = vadd.f32 %v810, %v672
        %v812 = vadd.f32 %v811, %v673
        %v813 = vadd.f32 %v812, %v674
        %v814 = vadd.f32 %v813, %v675
        %v815 = vadd.f32 %v814, %v676
        %816 = vadd.xlane.f32.xlu0 %v815
        %v817 = vpop.xlane.xlu0 %816
        %v818 = vadd.f32 %v677, %v678
        %v819 = vadd.f32 %v818, %v679
        %v820 = vadd.f32 %v819, %v680
        %v821 = vadd.f32 %v820, %v681
        %v822 = vadd.f32 %v821, %v682
        %v823 = vadd.f32 %v822, %v683
        %v824 = vadd.f32 %v823, %v684
        %825 = vadd.xlane.f32.xlu0 %v824
        %v826 = vpop.xlane.xlu0 %825
        %v827 = vadd.f32 %v685, %v686
        %v828 = vadd.f32 %v827, %v687
        %v829 = vadd.f32 %v828, %v688
        %v830 = vadd.f32 %v829, %v689
        %v831 = vadd.f32 %v830, %v690
        %v832 = vadd.f32 %v831, %v691
        %v833 = vadd.f32 %v832, %v692
        %834 = vadd.xlane.f32.xlu0 %v833
        %v835 = vpop.xlane.xlu0 %834
        %v836 = vadd.f32 %v693, %v694
        %v837 = vadd.f32 %v836, %v695
        %v838 = vadd.f32 %v837, %v696
        %v839 = vadd.f32 %v838, %v697
        %v840 = vadd.f32 %v839, %v698
        %v841 = vadd.f32 %v840, %v699
        %v842 = vadd.f32 %v841, %v700
        %843 = vadd.xlane.f32.xlu0 %v842
        %v844 = vpop.xlane.xlu0 %843
        %v845 = vmax.f32 %v709, 1e-24
        %v846 = vmax.f32 %v718, 1e-24
        %v847 = vmax.f32 %v727, 1e-24
        %v848 = vmax.f32 %v736, 1e-24
        %v849 = vmax.f32 %v745, 1e-24
        %v850 = vmax.f32 %v754, 1e-24
        %v851 = vmax.f32 %v763, 1e-24
        %v852 = vmax.f32 %v772, 1e-24
        %v853 = vmax.f32 %v781, 1e-24
        %v854 = vmax.f32 %v790, 1e-24
        %v855 = vmax.f32 %v799, 1e-24
        %v856 = vmax.f32 %v808, 1e-24
        %v857 = vmax.f32 %v817, 1e-24
        %v858 = vmax.f32 %v826, 1e-24
        %v859 = vmax.f32 %v835, 1e-24
        %v860 = vmax.f32 %v844, 1e-24
        %v861 = vrsqrt.pop %v845
        %v862 = vrsqrt.pop %v846
        %v863 = vrsqrt.pop %v847
        %v864 = vrsqrt.pop %v848
        %v865 = vrsqrt.pop %v849
        %v866 = vrsqrt.pop %v850
        %v867 = vrsqrt.pop %v851
        %v868 = vrsqrt.pop %v852
        %v869 = vrsqrt.pop %v853
        %v870 = vrsqrt.pop %v854
        %v871 = vrsqrt.pop %v855
        %v872 = vrsqrt.pop %v856
        %v873 = vrsqrt.pop %v857
        %v874 = vrsqrt.pop %v858
        %v875 = vrsqrt.pop %v859
        %v876 = vrsqrt.pop %v860
        %v877 = vmul.f32 %v317, %v861
        %v878 = vmul.f32 %v318, %v861
        %v879 = vmul.f32 %v319, %v861
        %v880 = vmul.f32 %v320, %v861
        %v881 = vmul.f32 %v321, %v861
        %v882 = vmul.f32 %v322, %v861
        %v883 = vmul.f32 %v323, %v861
        %v884 = vmul.f32 %v324, %v861
        %v885 = vmul.f32 %v325, %v862
        %v886 = vmul.f32 %v326, %v862
        %v887 = vmul.f32 %v327, %v862
        %v888 = vmul.f32 %v328, %v862
        %v889 = vmul.f32 %v329, %v862
        %v890 = vmul.f32 %v330, %v862
        %v891 = vmul.f32 %v331, %v862
        %v892 = vmul.f32 %v332, %v862
        %v893 = vmul.f32 %v333, %v863
        %v894 = vmul.f32 %v334, %v863
        %v895 = vmul.f32 %v335, %v863
        %v896 = vmul.f32 %v336, %v863
        %v897 = vmul.f32 %v337, %v863
        %v898 = vmul.f32 %v338, %v863
        %v899 = vmul.f32 %v339, %v863
        %v900 = vmul.f32 %v340, %v863
        %v901 = vmul.f32 %v341, %v864
        %v902 = vmul.f32 %v342, %v864
        %v903 = vmul.f32 %v343, %v864
        %v904 = vmul.f32 %v344, %v864
        %v905 = vmul.f32 %v345, %v864
        %v906 = vmul.f32 %v346, %v864
        %v907 = vmul.f32 %v347, %v864
        %v908 = vmul.f32 %v348, %v864
        %v909 = vmul.f32 %v349, %v865
        %v910 = vmul.f32 %v350, %v865
        %v911 = vmul.f32 %v351, %v865
        %v912 = vmul.f32 %v352, %v865
        %v913 = vmul.f32 %v353, %v865
        %v914 = vmul.f32 %v354, %v865
        %v915 = vmul.f32 %v355, %v865
        %v916 = vmul.f32 %v356, %v865
        %v917 = vmul.f32 %v357, %v866
        %v918 = vmul.f32 %v358, %v866
        %v919 = vmul.f32 %v359, %v866
        %v920 = vmul.f32 %v360, %v866
        %v921 = vmul.f32 %v361, %v866
        %v922 = vmul.f32 %v362, %v866
        %v923 = vmul.f32 %v363, %v866
        %v924 = vmul.f32 %v364, %v866
        %v925 = vmul.f32 %v365, %v867
        %v926 = vmul.f32 %v366, %v867
        %v927 = vmul.f32 %v367, %v867
        %v928 = vmul.f32 %v368, %v867
        %v929 = vmul.f32 %v369, %v867
        %v930 = vmul.f32 %v370, %v867
        %v931 = vmul.f32 %v371, %v867
        %v932 = vmul.f32 %v372, %v867
        %v933 = vmul.f32 %v373, %v868
        %v934 = vmul.f32 %v374, %v868
        %v935 = vmul.f32 %v375, %v868
        %v936 = vmul.f32 %v376, %v868
        %v937 = vmul.f32 %v377, %v868
        %v938 = vmul.f32 %v378, %v868
        %v939 = vmul.f32 %v379, %v868
        %v940 = vmul.f32 %v380, %v868
        %v941 = vmul.f32 %v381, %v869
        %v942 = vmul.f32 %v382, %v869
        %v943 = vmul.f32 %v383, %v869
        %v944 = vmul.f32 %v384, %v869
        %v945 = vmul.f32 %v385, %v869
        %v946 = vmul.f32 %v386, %v869
        %v947 = vmul.f32 %v387, %v869
        %v948 = vmul.f32 %v388, %v869
        %v949 = vmul.f32 %v389, %v870
        %v950 = vmul.f32 %v390, %v870
        %v951 = vmul.f32 %v391, %v870
        %v952 = vmul.f32 %v392, %v870
        %v953 = vmul.f32 %v393, %v870
        %v954 = vmul.f32 %v394, %v870
        %v955 = vmul.f32 %v395, %v870
        %v956 = vmul.f32 %v396, %v870
        %v957 = vmul.f32 %v397, %v871
        %v958 = vmul.f32 %v398, %v871
        %v959 = vmul.f32 %v399, %v871
        %v960 = vmul.f32 %v400, %v871
        %v961 = vmul.f32 %v401, %v871
        %v962 = vmul.f32 %v402, %v871
        %v963 = vmul.f32 %v403, %v871
        %v964 = vmul.f32 %v404, %v871
        %v965 = vmul.f32 %v405, %v872
        %v966 = vmul.f32 %v406, %v872
        %v967 = vmul.f32 %v407, %v872
        %v968 = vmul.f32 %v408, %v872
        %v969 = vmul.f32 %v409, %v872
        %v970 = vmul.f32 %v410, %v872
        %v971 = vmul.f32 %v411, %v872
        %v972 = vmul.f32 %v412, %v872
        %v973 = vmul.f32 %v413, %v873
        %v974 = vmul.f32 %v414, %v873
        %v975 = vmul.f32 %v415, %v873
        %v976 = vmul.f32 %v416, %v873
        %v977 = vmul.f32 %v417, %v873
        %v978 = vmul.f32 %v418, %v873
        %v979 = vmul.f32 %v419, %v873
        %v980 = vmul.f32 %v420, %v873
        %v981 = vmul.f32 %v421, %v874
        %v982 = vmul.f32 %v422, %v874
        %v983 = vmul.f32 %v423, %v874
        %v984 = vmul.f32 %v424, %v874
        %v985 = vmul.f32 %v425, %v874
        %v986 = vmul.f32 %v426, %v874
        %v987 = vmul.f32 %v427, %v874
        %v988 = vmul.f32 %v428, %v874
        %v989 = vmul.f32 %v429, %v875
        %v990 = vmul.f32 %v430, %v875
        %v991 = vmul.f32 %v431, %v875
        %v992 = vmul.f32 %v432, %v875
        %v993 = vmul.f32 %v433, %v875
        %v994 = vmul.f32 %v434, %v875
        %v995 = vmul.f32 %v435, %v875
        %v996 = vmul.f32 %v436, %v875
        %v997 = vmul.f32 %v437, %v876
        %v998 = vmul.f32 %v438, %v876
        %v999 = vmul.f32 %v439, %v876
        %v1000 = vmul.f32 %v440, %v876
        %v1001 = vmul.f32 %v441, %v876
        %v1002 = vmul.f32 %v442, %v876
        %v1003 = vmul.f32 %v443, %v876
        %v1004 = vmul.f32 %v444, %v876
        %v1005 = vmul.f32 %v445, %v445
        %v1006 = vmul.f32 %v446, %v446
        %v1007 = vmul.f32 %v447, %v447
        %v1008 = vmul.f32 %v448, %v448
        %v1009 = vmul.f32 %v449, %v449
        %v1010 = vmul.f32 %v450, %v450
        %v1011 = vmul.f32 %v451, %v451
        %v1012 = vmul.f32 %v452, %v452
        %v1013 = vmul.f32 %v453, %v453
        %v1014 = vmul.f32 %v454, %v454
        %v1015 = vmul.f32 %v455, %v455
        %v1016 = vmul.f32 %v456, %v456
        %v1017 = vmul.f32 %v457, %v457
        %v1018 = vmul.f32 %v458, %v458
        %v1019 = vmul.f32 %v459, %v459
        %v1020 = vmul.f32 %v460, %v460
        %v1021 = vmul.f32 %v461, %v461
        %v1022 = vmul.f32 %v462, %v462
        %v1023 = vmul.f32 %v463, %v463
        %v1024 = vmul.f32 %v464, %v464
        %v1025 = vmul.f32 %v465, %v465
        %v1026 = vmul.f32 %v466, %v466
        %v1027 = vmul.f32 %v467, %v467
        %v1028 = vmul.f32 %v468, %v468
        %v1029 = vmul.f32 %v469, %v469
        %v1030 = vmul.f32 %v470, %v470
        %v1031 = vmul.f32 %v471, %v471
        %v1032 = vmul.f32 %v472, %v472
        %v1033 = vmul.f32 %v473, %v473
        %v1034 = vmul.f32 %v474, %v474
        %v1035 = vmul.f32 %v475, %v475
        %v1036 = vmul.f32 %v476, %v476
        %v1037 = vmul.f32 %v477, %v477
        %v1038 = vmul.f32 %v478, %v478
        %v1039 = vmul.f32 %v479, %v479
        %v1040 = vmul.f32 %v480, %v480
        %v1041 = vmul.f32 %v481, %v481
        %v1042 = vmul.f32 %v482, %v482
        %v1043 = vmul.f32 %v483, %v483
        %v1044 = vmul.f32 %v484, %v484
        %v1045 = vmul.f32 %v485, %v485
        %v1046 = vmul.f32 %v486, %v486
        %v1047 = vmul.f32 %v487, %v487
        %v1048 = vmul.f32 %v488, %v488
        %v1049 = vmul.f32 %v489, %v489
        %v1050 = vmul.f32 %v490, %v490
        %v1051 = vmul.f32 %v491, %v491
        %v1052 = vmul.f32 %v492, %v492
        %v1053 = vmul.f32 %v493, %v493
        %v1054 = vmul.f32 %v494, %v494
        %v1055 = vmul.f32 %v495, %v495
        %v1056 = vmul.f32 %v496, %v496
        %v1057 = vmul.f32 %v497, %v497
        %v1058 = vmul.f32 %v498, %v498
        %v1059 = vmul.f32 %v499, %v499
        %v1060 = vmul.f32 %v500, %v500
        %v1061 = vmul.f32 %v501, %v501
        %v1062 = vmul.f32 %v502, %v502
        %v1063 = vmul.f32 %v503, %v503
        %v1064 = vmul.f32 %v504, %v504
        %v1065 = vmul.f32 %v505, %v505
        %v1066 = vmul.f32 %v506, %v506
        %v1067 = vmul.f32 %v507, %v507
        %v1068 = vmul.f32 %v508, %v508
        %v1069 = vmul.f32 %v509, %v509
        %v1070 = vmul.f32 %v510, %v510
        %v1071 = vmul.f32 %v511, %v511
        %v1072 = vmul.f32 %v512, %v512
        %v1073 = vmul.f32 %v513, %v513
        %v1074 = vmul.f32 %v514, %v514
        %v1075 = vmul.f32 %v515, %v515
        %v1076 = vmul.f32 %v516, %v516
        %v1077 = vmul.f32 %v517, %v517
        %v1078 = vmul.f32 %v518, %v518
        %v1079 = vmul.f32 %v519, %v519
        %v1080 = vmul.f32 %v520, %v520
        %v1081 = vmul.f32 %v521, %v521
        %v1082 = vmul.f32 %v522, %v522
        %v1083 = vmul.f32 %v523, %v523
        %v1084 = vmul.f32 %v524, %v524
        %v1085 = vmul.f32 %v525, %v525
        %v1086 = vmul.f32 %v526, %v526
        %v1087 = vmul.f32 %v527, %v527
        %v1088 = vmul.f32 %v528, %v528
        %v1089 = vmul.f32 %v529, %v529
        %v1090 = vmul.f32 %v530, %v530
        %v1091 = vmul.f32 %v531, %v531
        %v1092 = vmul.f32 %v532, %v532
        %v1093 = vmul.f32 %v533, %v533
        %v1094 = vmul.f32 %v534, %v534
        %v1095 = vmul.f32 %v535, %v535
        %v1096 = vmul.f32 %v536, %v536
        %v1097 = vmul.f32 %v537, %v537
        %v1098 = vmul.f32 %v538, %v538
        %v1099 = vmul.f32 %v539, %v539
        %v1100 = vmul.f32 %v540, %v540
        %v1101 = vmul.f32 %v541, %v541
        %v1102 = vmul.f32 %v542, %v542
        %v1103 = vmul.f32 %v543, %v543
        %v1104 = vmul.f32 %v544, %v544
        %v1105 = vmul.f32 %v545, %v545
        %v1106 = vmul.f32 %v546, %v546
        %v1107 = vmul.f32 %v547, %v547
        %v1108 = vmul.f32 %v548, %v548
        %v1109 = vmul.f32 %v549, %v549
        %v1110 = vmul.f32 %v550, %v550
        %v1111 = vmul.f32 %v551, %v551
        %v1112 = vmul.f32 %v552, %v552
        %v1113 = vmul.f32 %v553, %v553
        %v1114 = vmul.f32 %v554, %v554
        %v1115 = vmul.f32 %v555, %v555
        %v1116 = vmul.f32 %v556, %v556
        %v1117 = vmul.f32 %v557, %v557
        %v1118 = vmul.f32 %v558, %v558
        %v1119 = vmul.f32 %v559, %v559
        %v1120 = vmul.f32 %v560, %v560
        %v1121 = vmul.f32 %v561, %v561
        %v1122 = vmul.f32 %v562, %v562
        %v1123 = vmul.f32 %v563, %v563
        %v1124 = vmul.f32 %v564, %v564
        %v1125 = vmul.f32 %v565, %v565
        %v1126 = vmul.f32 %v566, %v566
        %v1127 = vmul.f32 %v567, %v567
        %v1128 = vmul.f32 %v568, %v568
        %v1129 = vmul.f32 %v569, %v569
        %v1130 = vmul.f32 %v570, %v570
        %v1131 = vmul.f32 %v571, %v571
        %v1132 = vmul.f32 %v572, %v572
        %v1133 = vadd.f32 %v1005, %v1006
        %v1134 = vadd.f32 %v1133, %v1007
        %v1135 = vadd.f32 %v1134, %v1008
        %v1136 = vadd.f32 %v1135, %v1009
        %v1137 = vadd.f32 %v1136, %v1010
        %v1138 = vadd.f32 %v1137, %v1011
        %v1139 = vadd.f32 %v1138, %v1012
        %1140 = vadd.xlane.f32.xlu0 %v1139
        %v1141 = vpop.xlane.xlu0 %1140
        %v1142 = vadd.f32 %v1013, %v1014
        %v1143 = vadd.f32 %v1142, %v1015
        %v1144 = vadd.f32 %v1143, %v1016
        %v1145 = vadd.f32 %v1144, %v1017
        %v1146 = vadd.f32 %v1145, %v1018
        %v1147 = vadd.f32 %v1146, %v1019
        %v1148 = vadd.f32 %v1147, %v1020
        %1149 = vadd.xlane.f32.xlu0 %v1148
        %v1150 = vpop.xlane.xlu0 %1149
        %v1151 = vadd.f32 %v1021, %v1022
        %v1152 = vadd.f32 %v1151, %v1023
        %v1153 = vadd.f32 %v1152, %v1024
        %v1154 = vadd.f32 %v1153, %v1025
        %v1155 = vadd.f32 %v1154, %v1026
        %v1156 = vadd.f32 %v1155, %v1027
        %v1157 = vadd.f32 %v1156, %v1028
        %1158 = vadd.xlane.f32.xlu0 %v1157
        %v1159 = vpop.xlane.xlu0 %1158
        %v1160 = vadd.f32 %v1029, %v1030
        %v1161 = vadd.f32 %v1160, %v1031
        %v1162 = vadd.f32 %v1161, %v1032
        %v1163 = vadd.f32 %v1162, %v1033
        %v1164 = vadd.f32 %v1163, %v1034
        %v1165 = vadd.f32 %v1164, %v1035
        %v1166 = vadd.f32 %v1165, %v1036
        %1167 = vadd.xlane.f32.xlu0 %v1166
        %v1168 = vpop.xlane.xlu0 %1167
        %v1169 = vadd.f32 %v1037, %v1038
        %v1170 = vadd.f32 %v1169, %v1039
        %v1171 = vadd.f32 %v1170, %v1040
        %v1172 = vadd.f32 %v1171, %v1041
        %v1173 = vadd.f32 %v1172, %v1042
        %v1174 = vadd.f32 %v1173, %v1043
        %v1175 = vadd.f32 %v1174, %v1044
        %1176 = vadd.xlane.f32.xlu0 %v1175
        %v1177 = vpop.xlane.xlu0 %1176
        %v1178 = vadd.f32 %v1045, %v1046
        %v1179 = vadd.f32 %v1178, %v1047
        %v1180 = vadd.f32 %v1179, %v1048
        %v1181 = vadd.f32 %v1180, %v1049
        %v1182 = vadd.f32 %v1181, %v1050
        %v1183 = vadd.f32 %v1182, %v1051
        %v1184 = vadd.f32 %v1183, %v1052
        %1185 = vadd.xlane.f32.xlu0 %v1184
        %v1186 = vpop.xlane.xlu0 %1185
        %v1187 = vadd.f32 %v1053, %v1054
        %v1188 = vadd.f32 %v1187, %v1055
        %v1189 = vadd.f32 %v1188, %v1056
        %v1190 = vadd.f32 %v1189, %v1057
        %v1191 = vadd.f32 %v1190, %v1058
        %v1192 = vadd.f32 %v1191, %v1059
        %v1193 = vadd.f32 %v1192, %v1060
        %1194 = vadd.xlane.f32.xlu0 %v1193
        %v1195 = vpop.xlane.xlu0 %1194
        %v1196 = vadd.f32 %v1061, %v1062
        %v1197 = vadd.f32 %v1196, %v1063
        %v1198 = vadd.f32 %v1197, %v1064
        %v1199 = vadd.f32 %v1198, %v1065
        %v1200 = vadd.f32 %v1199, %v1066
        %v1201 = vadd.f32 %v1200, %v1067
        %v1202 = vadd.f32 %v1201, %v1068
        %1203 = vadd.xlane.f32.xlu0 %v1202
        %v1204 = vpop.xlane.xlu0 %1203
        %v1205 = vadd.f32 %v1069, %v1070
        %v1206 = vadd.f32 %v1205, %v1071
        %v1207 = vadd.f32 %v1206, %v1072
        %v1208 = vadd.f32 %v1207, %v1073
        %v1209 = vadd.f32 %v1208, %v1074
        %v1210 = vadd.f32 %v1209, %v1075
        %v1211 = vadd.f32 %v1210, %v1076
        %1212 = vadd.xlane.f32.xlu0 %v1211
        %v1213 = vpop.xlane.xlu0 %1212
        %v1214 = vadd.f32 %v1077, %v1078
        %v1215 = vadd.f32 %v1214, %v1079
        %v1216 = vadd.f32 %v1215, %v1080
        %v1217 = vadd.f32 %v1216, %v1081
        %v1218 = vadd.f32 %v1217, %v1082
        %v1219 = vadd.f32 %v1218, %v1083
        %v1220 = vadd.f32 %v1219, %v1084
        %1221 = vadd.xlane.f32.xlu0 %v1220
        %v1222 = vpop.xlane.xlu0 %1221
        %v1223 = vadd.f32 %v1085, %v1086
        %v1224 = vadd.f32 %v1223, %v1087
        %v1225 = vadd.f32 %v1224, %v1088
        %v1226 = vadd.f32 %v1225, %v1089
        %v1227 = vadd.f32 %v1226, %v1090
        %v1228 = vadd.f32 %v1227, %v1091
        %v1229 = vadd.f32 %v1228, %v1092
        %1230 = vadd.xlane.f32.xlu0 %v1229
        %v1231 = vpop.xlane.xlu0 %1230
        %v1232 = vadd.f32 %v1093, %v1094
        %v1233 = vadd.f32 %v1232, %v1095
        %v1234 = vadd.f32 %v1233, %v1096
        %v1235 = vadd.f32 %v1234, %v1097
        %v1236 = vadd.f32 %v1235, %v1098
        %v1237 = vadd.f32 %v1236, %v1099
        %v1238 = vadd.f32 %v1237, %v1100
        %1239 = vadd.xlane.f32.xlu0 %v1238
        %v1240 = vpop.xlane.xlu0 %1239
        %v1241 = vadd.f32 %v1101, %v1102
        %v1242 = vadd.f32 %v1241, %v1103
        %v1243 = vadd.f32 %v1242, %v1104
        %v1244 = vadd.f32 %v1243, %v1105
        %v1245 = vadd.f32 %v1244, %v1106
        %v1246 = vadd.f32 %v1245, %v1107
        %v1247 = vadd.f32 %v1246, %v1108
        %1248 = vadd.xlane.f32.xlu0 %v1247
        %v1249 = vpop.xlane.xlu0 %1248
        %v1250 = vadd.f32 %v1109, %v1110
        %v1251 = vadd.f32 %v1250, %v1111
        %v1252 = vadd.f32 %v1251, %v1112
        %v1253 = vadd.f32 %v1252, %v1113
        %v1254 = vadd.f32 %v1253, %v1114
        %v1255 = vadd.f32 %v1254, %v1115
        %v1256 = vadd.f32 %v1255, %v1116
        %1257 = vadd.xlane.f32.xlu0 %v1256
        %v1258 = vpop.xlane.xlu0 %1257
        %v1259 = vadd.f32 %v1117, %v1118
        %v1260 = vadd.f32 %v1259, %v1119
        %v1261 = vadd.f32 %v1260, %v1120
        %v1262 = vadd.f32 %v1261, %v1121
        %v1263 = vadd.f32 %v1262, %v1122
        %v1264 = vadd.f32 %v1263, %v1123
        %v1265 = vadd.f32 %v1264, %v1124
        %1266 = vadd.xlane.f32.xlu0 %v1265
        %v1267 = vpop.xlane.xlu0 %1266
        %v1268 = vadd.f32 %v1125, %v1126
        %v1269 = vadd.f32 %v1268, %v1127
        %v1270 = vadd.f32 %v1269, %v1128
        %v1271 = vadd.f32 %v1270, %v1129
        %v1272 = vadd.f32 %v1271, %v1130
        %v1273 = vadd.f32 %v1272, %v1131
        %v1274 = vadd.f32 %v1273, %v1132
        %1275 = vadd.xlane.f32.xlu0 %v1274
        %v1276 = vpop.xlane.xlu0 %1275
        %v1277 = vmax.f32 %v1141, 1e-24
        %v1278 = vmax.f32 %v1150, 1e-24
        %v1279 = vmax.f32 %v1159, 1e-24
        %v1280 = vmax.f32 %v1168, 1e-24
        %v1281 = vmax.f32 %v1177, 1e-24
        %v1282 = vmax.f32 %v1186, 1e-24
        %v1283 = vmax.f32 %v1195, 1e-24
        %v1284 = vmax.f32 %v1204, 1e-24
        %v1285 = vmax.f32 %v1213, 1e-24
        %v1286 = vmax.f32 %v1222, 1e-24
        %v1287 = vmax.f32 %v1231, 1e-24
        %v1288 = vmax.f32 %v1240, 1e-24
        %v1289 = vmax.f32 %v1249, 1e-24
        %v1290 = vmax.f32 %v1258, 1e-24
        %v1291 = vmax.f32 %v1267, 1e-24
        %v1292 = vmax.f32 %v1276, 1e-24
        %v1293 = vrsqrt.pop %v1277
        %v1294 = vrsqrt.pop %v1278
        %v1295 = vrsqrt.pop %v1279
        %v1296 = vrsqrt.pop %v1280
        %v1297 = vrsqrt.pop %v1281
        %v1298 = vrsqrt.pop %v1282
        %v1299 = vrsqrt.pop %v1283
        %v1300 = vrsqrt.pop %v1284
        %v1301 = vrsqrt.pop %v1285
        %v1302 = vrsqrt.pop %v1286
        %v1303 = vrsqrt.pop %v1287
        %v1304 = vrsqrt.pop %v1288
        %v1305 = vrsqrt.pop %v1289
        %v1306 = vrsqrt.pop %v1290
        %v1307 = vrsqrt.pop %v1291
        %v1308 = vrsqrt.pop %v1292
        %v1309 = vmul.f32 %v445, %v1293
        %v1310 = vmul.f32 %v446, %v1293
        %v1311 = vmul.f32 %v447, %v1293
        %v1312 = vmul.f32 %v448, %v1293
        %v1313 = vmul.f32 %v449, %v1293
        %v1314 = vmul.f32 %v450, %v1293
        %v1315 = vmul.f32 %v451, %v1293
        %v1316 = vmul.f32 %v452, %v1293
        %v1317 = vmul.f32 %v453, %v1294
        %v1318 = vmul.f32 %v454, %v1294
        %v1319 = vmul.f32 %v455, %v1294
        %v1320 = vmul.f32 %v456, %v1294
        %v1321 = vmul.f32 %v457, %v1294
        %v1322 = vmul.f32 %v458, %v1294
        %v1323 = vmul.f32 %v459, %v1294
        %v1324 = vmul.f32 %v460, %v1294
        %v1325 = vmul.f32 %v461, %v1295
        %v1326 = vmul.f32 %v462, %v1295
        %v1327 = vmul.f32 %v463, %v1295
        %v1328 = vmul.f32 %v464, %v1295
        %v1329 = vmul.f32 %v465, %v1295
        %v1330 = vmul.f32 %v466, %v1295
        %v1331 = vmul.f32 %v467, %v1295
        %v1332 = vmul.f32 %v468, %v1295
        %v1333 = vmul.f32 %v469, %v1296
        %v1334 = vmul.f32 %v470, %v1296
        %v1335 = vmul.f32 %v471, %v1296
        %v1336 = vmul.f32 %v472, %v1296
        %v1337 = vmul.f32 %v473, %v1296
        %v1338 = vmul.f32 %v474, %v1296
        %v1339 = vmul.f32 %v475, %v1296
        %v1340 = vmul.f32 %v476, %v1296
        %v1341 = vmul.f32 %v477, %v1297
        %v1342 = vmul.f32 %v478, %v1297
        %v1343 = vmul.f32 %v479, %v1297
        %v1344 = vmul.f32 %v480, %v1297
        %v1345 = vmul.f32 %v481, %v1297
        %v1346 = vmul.f32 %v482, %v1297
        %v1347 = vmul.f32 %v483, %v1297
        %v1348 = vmul.f32 %v484, %v1297
        %v1349 = vmul.f32 %v485, %v1298
        %v1350 = vmul.f32 %v486, %v1298
        %v1351 = vmul.f32 %v487, %v1298
        %v1352 = vmul.f32 %v488, %v1298
        %v1353 = vmul.f32 %v489, %v1298
        %v1354 = vmul.f32 %v490, %v1298
        %v1355 = vmul.f32 %v491, %v1298
        %v1356 = vmul.f32 %v492, %v1298
        %v1357 = vmul.f32 %v493, %v1299
        %v1358 = vmul.f32 %v494, %v1299
        %v1359 = vmul.f32 %v495, %v1299
        %v1360 = vmul.f32 %v496, %v1299
        %v1361 = vmul.f32 %v497, %v1299
        %v1362 = vmul.f32 %v498, %v1299
        %v1363 = vmul.f32 %v499, %v1299
        %v1364 = vmul.f32 %v500, %v1299
        %v1365 = vmul.f32 %v501, %v1300
        %v1366 = vmul.f32 %v502, %v1300
        %v1367 = vmul.f32 %v503, %v1300
        %v1368 = vmul.f32 %v504, %v1300
        %v1369 = vmul.f32 %v505, %v1300
        %v1370 = vmul.f32 %v506, %v1300
        %v1371 = vmul.f32 %v507, %v1300
        %v1372 = vmul.f32 %v508, %v1300
        %v1373 = vmul.f32 %v509, %v1301
        %v1374 = vmul.f32 %v510, %v1301
        %v1375 = vmul.f32 %v511, %v1301
        %v1376 = vmul.f32 %v512, %v1301
        %v1377 = vmul.f32 %v513, %v1301
        %v1378 = vmul.f32 %v514, %v1301
        %v1379 = vmul.f32 %v515, %v1301
        %v1380 = vmul.f32 %v516, %v1301
        %v1381 = vmul.f32 %v517, %v1302
        %v1382 = vmul.f32 %v518, %v1302
        %v1383 = vmul.f32 %v519, %v1302
        %v1384 = vmul.f32 %v520, %v1302
        %v1385 = vmul.f32 %v521, %v1302
        %v1386 = vmul.f32 %v522, %v1302
        %v1387 = vmul.f32 %v523, %v1302
        %v1388 = vmul.f32 %v524, %v1302
        %v1389 = vmul.f32 %v525, %v1303
        %v1390 = vmul.f32 %v526, %v1303
        %v1391 = vmul.f32 %v527, %v1303
        %v1392 = vmul.f32 %v528, %v1303
        %v1393 = vmul.f32 %v529, %v1303
        %v1394 = vmul.f32 %v530, %v1303
        %v1395 = vmul.f32 %v531, %v1303
        %v1396 = vmul.f32 %v532, %v1303
        %v1397 = vmul.f32 %v533, %v1304
        %v1398 = vmul.f32 %v534, %v1304
        %v1399 = vmul.f32 %v535, %v1304
        %v1400 = vmul.f32 %v536, %v1304
        %v1401 = vmul.f32 %v537, %v1304
        %v1402 = vmul.f32 %v538, %v1304
        %v1403 = vmul.f32 %v539, %v1304
        %v1404 = vmul.f32 %v540, %v1304
        %v1405 = vmul.f32 %v541, %v1305
        %v1406 = vmul.f32 %v542, %v1305
        %v1407 = vmul.f32 %v543, %v1305
        %v1408 = vmul.f32 %v544, %v1305
        %v1409 = vmul.f32 %v545, %v1305
        %v1410 = vmul.f32 %v546, %v1305
        %v1411 = vmul.f32 %v547, %v1305
        %v1412 = vmul.f32 %v548, %v1305
        %v1413 = vmul.f32 %v549, %v1306
        %v1414 = vmul.f32 %v550, %v1306
        %v1415 = vmul.f32 %v551, %v1306
        %v1416 = vmul.f32 %v552, %v1306
        %v1417 = vmul.f32 %v553, %v1306
        %v1418 = vmul.f32 %v554, %v1306
        %v1419 = vmul.f32 %v555, %v1306
        %v1420 = vmul.f32 %v556, %v1306
        %v1421 = vmul.f32 %v557, %v1307
        %v1422 = vmul.f32 %v558, %v1307
        %v1423 = vmul.f32 %v559, %v1307
        %v1424 = vmul.f32 %v560, %v1307
        %v1425 = vmul.f32 %v561, %v1307
        %v1426 = vmul.f32 %v562, %v1307
        %v1427 = vmul.f32 %v563, %v1307
        %v1428 = vmul.f32 %v564, %v1307
        %v1429 = vmul.f32 %v565, %v1308
        %v1430 = vmul.f32 %v566, %v1308
        %v1431 = vmul.f32 %v567, %v1308
        %v1432 = vmul.f32 %v568, %v1308
        %v1433 = vmul.f32 %v569, %v1308
        %v1434 = vmul.f32 %v570, %v1308
        %v1435 = vmul.f32 %v571, %v1308
        %v1436 = vmul.f32 %v572, %v1308
        %v1437 = vpack.c.bf16 %v885, %v877
        %v1438 = vpack.c.bf16 %v886, %v878
        %v1439 = vpack.c.bf16 %v887, %v879
        %v1440 = vpack.c.bf16 %v888, %v880
        %v1441 = vpack.c.bf16 %v889, %v881
        %v1442 = vpack.c.bf16 %v890, %v882
        %v1443 = vpack.c.bf16 %v891, %v883
        %v1444 = vpack.c.bf16 %v892, %v884
        %v1445 = vpack.c.bf16 %v901, %v893
        %v1446 = vpack.c.bf16 %v902, %v894
        %v1447 = vpack.c.bf16 %v903, %v895
        %v1448 = vpack.c.bf16 %v904, %v896
        %v1449 = vpack.c.bf16 %v905, %v897
        %v1450 = vpack.c.bf16 %v906, %v898
        %v1451 = vpack.c.bf16 %v907, %v899
        %v1452 = vpack.c.bf16 %v908, %v900
        %v1453 = vpack.c.bf16 %v917, %v909
        %v1454 = vpack.c.bf16 %v918, %v910
        %v1455 = vpack.c.bf16 %v919, %v911
        %v1456 = vpack.c.bf16 %v920, %v912
        %v1457 = vpack.c.bf16 %v921, %v913
        %v1458 = vpack.c.bf16 %v922, %v914
        %v1459 = vpack.c.bf16 %v923, %v915
        %v1460 = vpack.c.bf16 %v924, %v916
        %v1461 = vpack.c.bf16 %v933, %v925
        %v1462 = vpack.c.bf16 %v934, %v926
        %v1463 = vpack.c.bf16 %v935, %v927
        %v1464 = vpack.c.bf16 %v936, %v928
        %v1465 = vpack.c.bf16 %v937, %v929
        %v1466 = vpack.c.bf16 %v938, %v930
        %v1467 = vpack.c.bf16 %v939, %v931
        %v1468 = vpack.c.bf16 %v940, %v932
        %v1469 = vpack.c.bf16 %v949, %v941
        %v1470 = vpack.c.bf16 %v950, %v942
        %v1471 = vpack.c.bf16 %v951, %v943
        %v1472 = vpack.c.bf16 %v952, %v944
        %v1473 = vpack.c.bf16 %v953, %v945
        %v1474 = vpack.c.bf16 %v954, %v946
        %v1475 = vpack.c.bf16 %v955, %v947
        %v1476 = vpack.c.bf16 %v956, %v948
        %v1477 = vpack.c.bf16 %v965, %v957
        %v1478 = vpack.c.bf16 %v966, %v958
        %v1479 = vpack.c.bf16 %v967, %v959
        %v1480 = vpack.c.bf16 %v968, %v960
        %v1481 = vpack.c.bf16 %v969, %v961
        %v1482 = vpack.c.bf16 %v970, %v962
        %v1483 = vpack.c.bf16 %v971, %v963
        %v1484 = vpack.c.bf16 %v972, %v964
        %v1485 = vpack.c.bf16 %v981, %v973
        %v1486 = vpack.c.bf16 %v982, %v974
        %v1487 = vpack.c.bf16 %v983, %v975
        %v1488 = vpack.c.bf16 %v984, %v976
        %v1489 = vpack.c.bf16 %v985, %v977
        %v1490 = vpack.c.bf16 %v986, %v978
        %v1491 = vpack.c.bf16 %v987, %v979
        %v1492 = vpack.c.bf16 %v988, %v980
        %v1493 = vpack.c.bf16 %v997, %v989
        %v1494 = vpack.c.bf16 %v998, %v990
        %v1495 = vpack.c.bf16 %v999, %v991
        %v1496 = vpack.c.bf16 %v1000, %v992
        %v1497 = vpack.c.bf16 %v1001, %v993
        %v1498 = vpack.c.bf16 %v1002, %v994
        %v1499 = vpack.c.bf16 %v1003, %v995
        %v1500 = vpack.c.bf16 %v1004, %v996
        %v1501 = vpack.c.bf16 %v1317, %v1309
        %v1502 = vpack.c.bf16 %v1318, %v1310
        %v1503 = vpack.c.bf16 %v1319, %v1311
        %v1504 = vpack.c.bf16 %v1320, %v1312
        %v1505 = vpack.c.bf16 %v1321, %v1313
        %v1506 = vpack.c.bf16 %v1322, %v1314
        %v1507 = vpack.c.bf16 %v1323, %v1315
        %v1508 = vpack.c.bf16 %v1324, %v1316
        %v1509 = vpack.c.bf16 %v1333, %v1325
        %v1510 = vpack.c.bf16 %v1334, %v1326
        %v1511 = vpack.c.bf16 %v1335, %v1327
        %v1512 = vpack.c.bf16 %v1336, %v1328
        %v1513 = vpack.c.bf16 %v1337, %v1329
        %v1514 = vpack.c.bf16 %v1338, %v1330
        %v1515 = vpack.c.bf16 %v1339, %v1331
        %v1516 = vpack.c.bf16 %v1340, %v1332
        %v1517 = vpack.c.bf16 %v1349, %v1341
        %v1518 = vpack.c.bf16 %v1350, %v1342
        %v1519 = vpack.c.bf16 %v1351, %v1343
        %v1520 = vpack.c.bf16 %v1352, %v1344
        %v1521 = vpack.c.bf16 %v1353, %v1345
        %v1522 = vpack.c.bf16 %v1354, %v1346
        %v1523 = vpack.c.bf16 %v1355, %v1347
        %v1524 = vpack.c.bf16 %v1356, %v1348
        %v1525 = vpack.c.bf16 %v1365, %v1357
        %v1526 = vpack.c.bf16 %v1366, %v1358
        %v1527 = vpack.c.bf16 %v1367, %v1359
        %v1528 = vpack.c.bf16 %v1368, %v1360
        %v1529 = vpack.c.bf16 %v1369, %v1361
        %v1530 = vpack.c.bf16 %v1370, %v1362
        %v1531 = vpack.c.bf16 %v1371, %v1363
        %v1532 = vpack.c.bf16 %v1372, %v1364
        %v1533 = vpack.c.bf16 %v1381, %v1373
        %v1534 = vpack.c.bf16 %v1382, %v1374
        %v1535 = vpack.c.bf16 %v1383, %v1375
        %v1536 = vpack.c.bf16 %v1384, %v1376
        %v1537 = vpack.c.bf16 %v1385, %v1377
        %v1538 = vpack.c.bf16 %v1386, %v1378
        %v1539 = vpack.c.bf16 %v1387, %v1379
        %v1540 = vpack.c.bf16 %v1388, %v1380
        %v1541 = vpack.c.bf16 %v1397, %v1389
        %v1542 = vpack.c.bf16 %v1398, %v1390
        %v1543 = vpack.c.bf16 %v1399, %v1391
        %v1544 = vpack.c.bf16 %v1400, %v1392
        %v1545 = vpack.c.bf16 %v1401, %v1393
        %v1546 = vpack.c.bf16 %v1402, %v1394
        %v1547 = vpack.c.bf16 %v1403, %v1395
        %v1548 = vpack.c.bf16 %v1404, %v1396
        %v1549 = vpack.c.bf16 %v1413, %v1405
        %v1550 = vpack.c.bf16 %v1414, %v1406
        %v1551 = vpack.c.bf16 %v1415, %v1407
        %v1552 = vpack.c.bf16 %v1416, %v1408
        %v1553 = vpack.c.bf16 %v1417, %v1409
        %v1554 = vpack.c.bf16 %v1418, %v1410
        %v1555 = vpack.c.bf16 %v1419, %v1411
        %v1556 = vpack.c.bf16 %v1420, %v1412
        %v1557 = vpack.c.bf16 %v1429, %v1421
        %v1558 = vpack.c.bf16 %v1430, %v1422
        %v1559 = vpack.c.bf16 %v1431, %v1423
        %v1560 = vpack.c.bf16 %v1432, %v1424
        %v1561 = vpack.c.bf16 %v1433, %v1425
        %v1562 = vpack.c.bf16 %v1434, %v1426
        %v1563 = vpack.c.bf16 %v1435, %v1427
        %v1564 = vpack.c.bf16 %v1436, %v1428
        %v1629 = vunpack.c.l.b16 %v1437
        %v1630 = vunpack.c.l.b16 %v1438
        %v1631 = vunpack.c.l.b16 %v1439
        %v1632 = vunpack.c.l.b16 %v1440
        %v1633 = vunpack.c.l.b16 %v1441
        %v1634 = vunpack.c.l.b16 %v1442
        %v1635 = vunpack.c.l.b16 %v1443
        %v1636 = vunpack.c.l.b16 %v1444
        %v1637 = vunpack.c.h.b16 %v1437
        %v1638 = vunpack.c.h.b16 %v1438
        %v1639 = vunpack.c.h.b16 %v1439
        %v1640 = vunpack.c.h.b16 %v1440
        %v1641 = vunpack.c.h.b16 %v1441
        %v1642 = vunpack.c.h.b16 %v1442
        %v1643 = vunpack.c.h.b16 %v1443
        %v1644 = vunpack.c.h.b16 %v1444
        %v1645 = vunpack.c.l.b16 %v1445
        %v1646 = vunpack.c.l.b16 %v1446
        %v1647 = vunpack.c.l.b16 %v1447
        %v1648 = vunpack.c.l.b16 %v1448
        %v1649 = vunpack.c.l.b16 %v1449
        %v1650 = vunpack.c.l.b16 %v1450
        %v1651 = vunpack.c.l.b16 %v1451
        %v1652 = vunpack.c.l.b16 %v1452
        %v1653 = vunpack.c.h.b16 %v1445
        %v1654 = vunpack.c.h.b16 %v1446
        %v1655 = vunpack.c.h.b16 %v1447
        %v1656 = vunpack.c.h.b16 %v1448
        %v1657 = vunpack.c.h.b16 %v1449
        %v1658 = vunpack.c.h.b16 %v1450
        %v1659 = vunpack.c.h.b16 %v1451
        %v1660 = vunpack.c.h.b16 %v1452
        %v1661 = vunpack.c.l.b16 %v1453
        %v1662 = vunpack.c.l.b16 %v1454
        %v1663 = vunpack.c.l.b16 %v1455
        %v1664 = vunpack.c.l.b16 %v1456
        %v1665 = vunpack.c.l.b16 %v1457
        %v1666 = vunpack.c.l.b16 %v1458
        %v1667 = vunpack.c.l.b16 %v1459
        %v1668 = vunpack.c.l.b16 %v1460
        %v1669 = vunpack.c.h.b16 %v1453
        %v1670 = vunpack.c.h.b16 %v1454
        %v1671 = vunpack.c.h.b16 %v1455
        %v1672 = vunpack.c.h.b16 %v1456
        %v1673 = vunpack.c.h.b16 %v1457
        %v1674 = vunpack.c.h.b16 %v1458
        %v1675 = vunpack.c.h.b16 %v1459
        %v1676 = vunpack.c.h.b16 %v1460
        %v1677 = vunpack.c.l.b16 %v1461
        %v1678 = vunpack.c.l.b16 %v1462
        %v1679 = vunpack.c.l.b16 %v1463
        %v1680 = vunpack.c.l.b16 %v1464
        %v1681 = vunpack.c.l.b16 %v1465
        %v1682 = vunpack.c.l.b16 %v1466
        %v1683 = vunpack.c.l.b16 %v1467
        %v1684 = vunpack.c.l.b16 %v1468
        %v1685 = vunpack.c.h.b16 %v1461
        %v1686 = vunpack.c.h.b16 %v1462
        %v1687 = vunpack.c.h.b16 %v1463
        %v1688 = vunpack.c.h.b16 %v1464
        %v1689 = vunpack.c.h.b16 %v1465
        %v1690 = vunpack.c.h.b16 %v1466
        %v1691 = vunpack.c.h.b16 %v1467
        %v1692 = vunpack.c.h.b16 %v1468
        %v1693 = vunpack.c.l.b16 %v1469
        %v1694 = vunpack.c.l.b16 %v1470
        %v1695 = vunpack.c.l.b16 %v1471
        %v1696 = vunpack.c.l.b16 %v1472
        %v1697 = vunpack.c.l.b16 %v1473
        %v1698 = vunpack.c.l.b16 %v1474
        %v1699 = vunpack.c.l.b16 %v1475
        %v1700 = vunpack.c.l.b16 %v1476
        %v1701 = vunpack.c.h.b16 %v1469
        %v1702 = vunpack.c.h.b16 %v1470
        %v1703 = vunpack.c.h.b16 %v1471
        %v1704 = vunpack.c.h.b16 %v1472
        %v1705 = vunpack.c.h.b16 %v1473
        %v1706 = vunpack.c.h.b16 %v1474
        %v1707 = vunpack.c.h.b16 %v1475
        %v1708 = vunpack.c.h.b16 %v1476
        %v1709 = vunpack.c.l.b16 %v1477
        %v1710 = vunpack.c.l.b16 %v1478
        %v1711 = vunpack.c.l.b16 %v1479
        %v1712 = vunpack.c.l.b16 %v1480
        %v1713 = vunpack.c.l.b16 %v1481
        %v1714 = vunpack.c.l.b16 %v1482
        %v1715 = vunpack.c.l.b16 %v1483
        %v1716 = vunpack.c.l.b16 %v1484
        %v1717 = vunpack.c.h.b16 %v1477
        %v1718 = vunpack.c.h.b16 %v1478
        %v1719 = vunpack.c.h.b16 %v1479
        %v1720 = vunpack.c.h.b16 %v1480
        %v1721 = vunpack.c.h.b16 %v1481
        %v1722 = vunpack.c.h.b16 %v1482
        %v1723 = vunpack.c.h.b16 %v1483
        %v1724 = vunpack.c.h.b16 %v1484
        %v1725 = vunpack.c.l.b16 %v1485
        %v1726 = vunpack.c.l.b16 %v1486
        %v1727 = vunpack.c.l.b16 %v1487
        %v1728 = vunpack.c.l.b16 %v1488
        %v1729 = vunpack.c.l.b16 %v1489
        %v1730 = vunpack.c.l.b16 %v1490
        %v1731 = vunpack.c.l.b16 %v1491
        %v1732 = vunpack.c.l.b16 %v1492
        %v1733 = vunpack.c.h.b16 %v1485
        %v1734 = vunpack.c.h.b16 %v1486
        %v1735 = vunpack.c.h.b16 %v1487
        %v1736 = vunpack.c.h.b16 %v1488
        %v1737 = vunpack.c.h.b16 %v1489
        %v1738 = vunpack.c.h.b16 %v1490
        %v1739 = vunpack.c.h.b16 %v1491
        %v1740 = vunpack.c.h.b16 %v1492
        %v1741 = vunpack.c.l.b16 %v1493
        %v1742 = vunpack.c.l.b16 %v1494
        %v1743 = vunpack.c.l.b16 %v1495
        %v1744 = vunpack.c.l.b16 %v1496
        %v1745 = vunpack.c.l.b16 %v1497
        %v1746 = vunpack.c.l.b16 %v1498
        %v1747 = vunpack.c.l.b16 %v1499
        %v1748 = vunpack.c.l.b16 %v1500
        %v1749 = vunpack.c.h.b16 %v1493
        %v1750 = vunpack.c.h.b16 %v1494
        %v1751 = vunpack.c.h.b16 %v1495
        %v1752 = vunpack.c.h.b16 %v1496
        %v1753 = vunpack.c.h.b16 %v1497
        %v1754 = vunpack.c.h.b16 %v1498
        %v1755 = vunpack.c.h.b16 %v1499
        %v1756 = vunpack.c.h.b16 %v1500
        %v1757 = vpack.c.b16 %v1630, %v1629
        %v1758 = vpack.c.b16 %v1632, %v1631
        %v1759 = vpack.c.b16 %v1634, %v1633
        %v1760 = vpack.c.b16 %v1636, %v1635
        %v1761 = vpack.c.b16 %v1638, %v1637
        %v1762 = vpack.c.b16 %v1640, %v1639
        %v1763 = vpack.c.b16 %v1642, %v1641
        %v1764 = vpack.c.b16 %v1644, %v1643
        %v1765 = vpack.c.b16 %v1646, %v1645
        %v1766 = vpack.c.b16 %v1648, %v1647
        %v1767 = vpack.c.b16 %v1650, %v1649
        %v1768 = vpack.c.b16 %v1652, %v1651
        %v1769 = vpack.c.b16 %v1654, %v1653
        %v1770 = vpack.c.b16 %v1656, %v1655
        %v1771 = vpack.c.b16 %v1658, %v1657
        %v1772 = vpack.c.b16 %v1660, %v1659
        %v1773 = vpack.c.b16 %v1662, %v1661
        %v1774 = vpack.c.b16 %v1664, %v1663
        %v1775 = vpack.c.b16 %v1666, %v1665
        %v1776 = vpack.c.b16 %v1668, %v1667
        %v1777 = vpack.c.b16 %v1670, %v1669
        %v1778 = vpack.c.b16 %v1672, %v1671
        %v1779 = vpack.c.b16 %v1674, %v1673
        %v1780 = vpack.c.b16 %v1676, %v1675
        %v1781 = vpack.c.b16 %v1678, %v1677
        %v1782 = vpack.c.b16 %v1680, %v1679
        %v1783 = vpack.c.b16 %v1682, %v1681
        %v1784 = vpack.c.b16 %v1684, %v1683
        %v1785 = vpack.c.b16 %v1686, %v1685
        %v1786 = vpack.c.b16 %v1688, %v1687
        %v1787 = vpack.c.b16 %v1690, %v1689
        %v1788 = vpack.c.b16 %v1692, %v1691
        %v1789 = vpack.c.b16 %v1694, %v1693
        %v1790 = vpack.c.b16 %v1696, %v1695
        %v1791 = vpack.c.b16 %v1698, %v1697
        %v1792 = vpack.c.b16 %v1700, %v1699
        %v1793 = vpack.c.b16 %v1702, %v1701
        %v1794 = vpack.c.b16 %v1704, %v1703
        %v1795 = vpack.c.b16 %v1706, %v1705
        %v1796 = vpack.c.b16 %v1708, %v1707
        %v1797 = vpack.c.b16 %v1710, %v1709
        %v1798 = vpack.c.b16 %v1712, %v1711
        %v1799 = vpack.c.b16 %v1714, %v1713
        %v1800 = vpack.c.b16 %v1716, %v1715
        %v1801 = vpack.c.b16 %v1718, %v1717
        %v1802 = vpack.c.b16 %v1720, %v1719
        %v1803 = vpack.c.b16 %v1722, %v1721
        %v1804 = vpack.c.b16 %v1724, %v1723
        %v1805 = vpack.c.b16 %v1726, %v1725
        %v1806 = vpack.c.b16 %v1728, %v1727
        %v1807 = vpack.c.b16 %v1730, %v1729
        %v1808 = vpack.c.b16 %v1732, %v1731
        %v1809 = vpack.c.b16 %v1734, %v1733
        %v1810 = vpack.c.b16 %v1736, %v1735
        %v1811 = vpack.c.b16 %v1738, %v1737
        %v1812 = vpack.c.b16 %v1740, %v1739
        %v1813 = vpack.c.b16 %v1742, %v1741
        %v1814 = vpack.c.b16 %v1744, %v1743
        %v1815 = vpack.c.b16 %v1746, %v1745
        %v1816 = vpack.c.b16 %v1748, %v1747
        %v1817 = vpack.c.b16 %v1750, %v1749
        %v1818 = vpack.c.b16 %v1752, %v1751
        %v1819 = vpack.c.b16 %v1754, %v1753
        %v1820 = vpack.c.b16 %v1756, %v1755
        %1885 = vst [vmem:[%s291] sm:$0xff] %v1757
        %1886 = vst [vmem:[%s291 + $0x8] sm:$0xff] %v1758
        %1887 = vst [vmem:[%s291 + $0x10] sm:$0xff] %v1759
        %1888 = vst [vmem:[%s291 + $0x18] sm:$0xff] %v1760
        %1889 = vst [vmem:[%s291 + $0x20] sm:$0xff] %v1761
        %1890 = vst [vmem:[%s291 + $0x28] sm:$0xff] %v1762
        %1891 = vst [vmem:[%s291 + $0x30] sm:$0xff] %v1763
        %1892 = vst [vmem:[%s291 + $0x38] sm:$0xff] %v1764
        %1893 = vst [vmem:[%s291 + $0x40] sm:$0xff] %v1765
        %1894 = vst [vmem:[%s291 + $0x48] sm:$0xff] %v1766
        %1895 = vst [vmem:[%s291 + $0x50] sm:$0xff] %v1767
        %1896 = vst [vmem:[%s291 + $0x58] sm:$0xff] %v1768
        %1897 = vst [vmem:[%s291 + $0x60] sm:$0xff] %v1769
        %1898 = vst [vmem:[%s291 + $0x68] sm:$0xff] %v1770
        %1899 = vst [vmem:[%s291 + $0x70] sm:$0xff] %v1771
        %1900 = vst [vmem:[%s291 + $0x78] sm:$0xff] %v1772
        %1901 = vst [vmem:[%s291 + $0x80] sm:$0xff] %v1773
        %1902 = vst [vmem:[%s291 + $0x88] sm:$0xff] %v1774
        %1903 = vst [vmem:[%s291 + $0x90] sm:$0xff] %v1775
        %1904 = vst [vmem:[%s291 + $0x98] sm:$0xff] %v1776
        %1905 = vst [vmem:[%s291 + $0xa0] sm:$0xff] %v1777
        %1906 = vst [vmem:[%s291 + $0xa8] sm:$0xff] %v1778
        %1907 = vst [vmem:[%s291 + $0xb0] sm:$0xff] %v1779
        %1908 = vst [vmem:[%s291 + $0xb8] sm:$0xff] %v1780
        %1909 = vst [vmem:[%s291 + $0xc0] sm:$0xff] %v1781
        %1910 = vst [vmem:[%s291 + $0xc8] sm:$0xff] %v1782
        %1911 = vst [vmem:[%s291 + $0xd0] sm:$0xff] %v1783
        %1912 = vst [vmem:[%s291 + $0xd8] sm:$0xff] %v1784
        %1913 = vst [vmem:[%s291 + $0xe0] sm:$0xff] %v1785
        %1914 = vst [vmem:[%s291 + $0xe8] sm:$0xff] %v1786
        %1915 = vst [vmem:[%s291 + $0xf0] sm:$0xff] %v1787
        %1916 = vst [vmem:[%s291 + $0xf8] sm:$0xff] %v1788
        %1917 = vst [vmem:[%s291 + $0x100] sm:$0xff] %v1789
        %1918 = vst [vmem:[%s291 + $0x108] sm:$0xff] %v1790
        %1919 = vst [vmem:[%s291 + $0x110] sm:$0xff] %v1791
        %1920 = vst [vmem:[%s291 + $0x118] sm:$0xff] %v1792
        %1921 = vst [vmem:[%s291 + $0x120] sm:$0xff] %v1793
        %1922 = vst [vmem:[%s291 + $0x128] sm:$0xff] %v1794
        %1923 = vst [vmem:[%s291 + $0x130] sm:$0xff] %v1795
        %1924 = vst [vmem:[%s291 + $0x138] sm:$0xff] %v1796
        %1925 = vst [vmem:[%s291 + $0x140] sm:$0xff] %v1797
        %1926 = vst [vmem:[%s291 + $0x148] sm:$0xff] %v1798
        %1927 = vst [vmem:[%s291 + $0x150] sm:$0xff] %v1799
        %1928 = vst [vmem:[%s291 + $0x158] sm:$0xff] %v1800
        %1929 = vst [vmem:[%s291 + $0x160] sm:$0xff] %v1801
        %1930 = vst [vmem:[%s291 + $0x168] sm:$0xff] %v1802
        %1931 = vst [vmem:[%s291 + $0x170] sm:$0xff] %v1803
        %1932 = vst [vmem:[%s291 + $0x178] sm:$0xff] %v1804
        %1933 = vst [vmem:[%s291 + $0x180] sm:$0xff] %v1805
        %1934 = vst [vmem:[%s291 + $0x188] sm:$0xff] %v1806
        %1935 = vst [vmem:[%s291 + $0x190] sm:$0xff] %v1807
        %1936 = vst [vmem:[%s291 + $0x198] sm:$0xff] %v1808
        %1937 = vst [vmem:[%s291 + $0x1a0] sm:$0xff] %v1809
        %1938 = vst [vmem:[%s291 + $0x1a8] sm:$0xff] %v1810
        %1939 = vst [vmem:[%s291 + $0x1b0] sm:$0xff] %v1811
        %1940 = vst [vmem:[%s291 + $0x1b8] sm:$0xff] %v1812
        %1941 = vst [vmem:[%s291 + $0x1c0] sm:$0xff] %v1813
        %1942 = vst [vmem:[%s291 + $0x1c8] sm:$0xff] %v1814
        %1943 = vst [vmem:[%s291 + $0x1d0] sm:$0xff] %v1815
        %1944 = vst [vmem:[%s291 + $0x1d8] sm:$0xff] %v1816
        %1945 = vst [vmem:[%s291 + $0x1e0] sm:$0xff] %v1817
        %1946 = vst [vmem:[%s291 + $0x1e8] sm:$0xff] %v1818
        %1947 = vst [vmem:[%s291 + $0x1f0] sm:$0xff] %v1819
        %1948 = vst [vmem:[%s291 + $0x1f8] sm:$0xff] %v1820
        %v2013 = vunpack.c.l.b16 %v1501
        %v2014 = vunpack.c.l.b16 %v1502
        %v2015 = vunpack.c.l.b16 %v1503
        %v2016 = vunpack.c.l.b16 %v1504
        %v2017 = vunpack.c.l.b16 %v1505
        %v2018 = vunpack.c.l.b16 %v1506
        %v2019 = vunpack.c.l.b16 %v1507
        %v2020 = vunpack.c.l.b16 %v1508
        %v2021 = vunpack.c.h.b16 %v1501
        %v2022 = vunpack.c.h.b16 %v1502
        %v2023 = vunpack.c.h.b16 %v1503
        %v2024 = vunpack.c.h.b16 %v1504
        %v2025 = vunpack.c.h.b16 %v1505
        %v2026 = vunpack.c.h.b16 %v1506
        %v2027 = vunpack.c.h.b16 %v1507
        %v2028 = vunpack.c.h.b16 %v1508
        %v2029 = vunpack.c.l.b16 %v1509
        %v2030 = vunpack.c.l.b16 %v1510
        %v2031 = vunpack.c.l.b16 %v1511
        %v2032 = vunpack.c.l.b16 %v1512
        %v2033 = vunpack.c.l.b16 %v1513
        %v2034 = vunpack.c.l.b16 %v1514
        %v2035 = vunpack.c.l.b16 %v1515
        %v2036 = vunpack.c.l.b16 %v1516
        %v2037 = vunpack.c.h.b16 %v1509
        %v2038 = vunpack.c.h.b16 %v1510
        %v2039 = vunpack.c.h.b16 %v1511
        %v2040 = vunpack.c.h.b16 %v1512
        %v2041 = vunpack.c.h.b16 %v1513
        %v2042 = vunpack.c.h.b16 %v1514
        %v2043 = vunpack.c.h.b16 %v1515
        %v2044 = vunpack.c.h.b16 %v1516
        %v2045 = vunpack.c.l.b16 %v1517
        %v2046 = vunpack.c.l.b16 %v1518
        %v2047 = vunpack.c.l.b16 %v1519
        %v2048 = vunpack.c.l.b16 %v1520
        %v2049 = vunpack.c.l.b16 %v1521
        %v2050 = vunpack.c.l.b16 %v1522
        %v2051 = vunpack.c.l.b16 %v1523
        %v2052 = vunpack.c.l.b16 %v1524
        %v2053 = vunpack.c.h.b16 %v1517
        %v2054 = vunpack.c.h.b16 %v1518
        %v2055 = vunpack.c.h.b16 %v1519
        %v2056 = vunpack.c.h.b16 %v1520
        %v2057 = vunpack.c.h.b16 %v1521
        %v2058 = vunpack.c.h.b16 %v1522
        %v2059 = vunpack.c.h.b16 %v1523
        %v2060 = vunpack.c.h.b16 %v1524
        %v2061 = vunpack.c.l.b16 %v1525
        %v2062 = vunpack.c.l.b16 %v1526
        %v2063 = vunpack.c.l.b16 %v1527
        %v2064 = vunpack.c.l.b16 %v1528
        %v2065 = vunpack.c.l.b16 %v1529
        %v2066 = vunpack.c.l.b16 %v1530
        %v2067 = vunpack.c.l.b16 %v1531
        %v2068 = vunpack.c.l.b16 %v1532
        %v2069 = vunpack.c.h.b16 %v1525
        %v2070 = vunpack.c.h.b16 %v1526
        %v2071 = vunpack.c.h.b16 %v1527
        %v2072 = vunpack.c.h.b16 %v1528
        %v2073 = vunpack.c.h.b16 %v1529
        %v2074 = vunpack.c.h.b16 %v1530
        %v2075 = vunpack.c.h.b16 %v1531
        %v2076 = vunpack.c.h.b16 %v1532
        %v2077 = vunpack.c.l.b16 %v1533
        %v2078 = vunpack.c.l.b16 %v1534
        %v2079 = vunpack.c.l.b16 %v1535
        %v2080 = vunpack.c.l.b16 %v1536
        %v2081 = vunpack.c.l.b16 %v1537
        %v2082 = vunpack.c.l.b16 %v1538
        %v2083 = vunpack.c.l.b16 %v1539
        %v2084 = vunpack.c.l.b16 %v1540
        %v2085 = vunpack.c.h.b16 %v1533
        %v2086 = vunpack.c.h.b16 %v1534
        %v2087 = vunpack.c.h.b16 %v1535
        %v2088 = vunpack.c.h.b16 %v1536
        %v2089 = vunpack.c.h.b16 %v1537
        %v2090 = vunpack.c.h.b16 %v1538
        %v2091 = vunpack.c.h.b16 %v1539
        %v2092 = vunpack.c.h.b16 %v1540
        %v2093 = vunpack.c.l.b16 %v1541
        %v2094 = vunpack.c.l.b16 %v1542
        %v2095 = vunpack.c.l.b16 %v1543
        %v2096 = vunpack.c.l.b16 %v1544
        %v2097 = vunpack.c.l.b16 %v1545
        %v2098 = vunpack.c.l.b16 %v1546
        %v2099 = vunpack.c.l.b16 %v1547
        %v2100 = vunpack.c.l.b16 %v1548
        %v2101 = vunpack.c.h.b16 %v1541
        %v2102 = vunpack.c.h.b16 %v1542
        %v2103 = vunpack.c.h.b16 %v1543
        %v2104 = vunpack.c.h.b16 %v1544
        %v2105 = vunpack.c.h.b16 %v1545
        %v2106 = vunpack.c.h.b16 %v1546
        %v2107 = vunpack.c.h.b16 %v1547
        %v2108 = vunpack.c.h.b16 %v1548
        %v2109 = vunpack.c.l.b16 %v1549
        %v2110 = vunpack.c.l.b16 %v1550
        %v2111 = vunpack.c.l.b16 %v1551
        %v2112 = vunpack.c.l.b16 %v1552
        %v2113 = vunpack.c.l.b16 %v1553
        %v2114 = vunpack.c.l.b16 %v1554
        %v2115 = vunpack.c.l.b16 %v1555
        %v2116 = vunpack.c.l.b16 %v1556
        %v2117 = vunpack.c.h.b16 %v1549
        %v2118 = vunpack.c.h.b16 %v1550
        %v2119 = vunpack.c.h.b16 %v1551
        %v2120 = vunpack.c.h.b16 %v1552
        %v2121 = vunpack.c.h.b16 %v1553
        %v2122 = vunpack.c.h.b16 %v1554
        %v2123 = vunpack.c.h.b16 %v1555
        %v2124 = vunpack.c.h.b16 %v1556
        %v2125 = vunpack.c.l.b16 %v1557
        %v2126 = vunpack.c.l.b16 %v1558
        %v2127 = vunpack.c.l.b16 %v1559
        %v2128 = vunpack.c.l.b16 %v1560
        %v2129 = vunpack.c.l.b16 %v1561
        %v2130 = vunpack.c.l.b16 %v1562
        %v2131 = vunpack.c.l.b16 %v1563
        %v2132 = vunpack.c.l.b16 %v1564
        %v2133 = vunpack.c.h.b16 %v1557
        %v2134 = vunpack.c.h.b16 %v1558
        %v2135 = vunpack.c.h.b16 %v1559
        %v2136 = vunpack.c.h.b16 %v1560
        %v2137 = vunpack.c.h.b16 %v1561
        %v2138 = vunpack.c.h.b16 %v1562
        %v2139 = vunpack.c.h.b16 %v1563
        %v2140 = vunpack.c.h.b16 %v1564
        %v2141 = vpack.c.b16 %v2014, %v2013
        %v2142 = vpack.c.b16 %v2016, %v2015
        %v2143 = vpack.c.b16 %v2018, %v2017
        %v2144 = vpack.c.b16 %v2020, %v2019
        %v2145 = vpack.c.b16 %v2022, %v2021
        %v2146 = vpack.c.b16 %v2024, %v2023
        %v2147 = vpack.c.b16 %v2026, %v2025
        %v2148 = vpack.c.b16 %v2028, %v2027
        %v2149 = vpack.c.b16 %v2030, %v2029
        %v2150 = vpack.c.b16 %v2032, %v2031
        %v2151 = vpack.c.b16 %v2034, %v2033
        %v2152 = vpack.c.b16 %v2036, %v2035
        %v2153 = vpack.c.b16 %v2038, %v2037
        %v2154 = vpack.c.b16 %v2040, %v2039
        %v2155 = vpack.c.b16 %v2042, %v2041
        %v2156 = vpack.c.b16 %v2044, %v2043
        %v2157 = vpack.c.b16 %v2046, %v2045
        %v2158 = vpack.c.b16 %v2048, %v2047
        %v2159 = vpack.c.b16 %v2050, %v2049
        %v2160 = vpack.c.b16 %v2052, %v2051
        %v2161 = vpack.c.b16 %v2054, %v2053
        %v2162 = vpack.c.b16 %v2056, %v2055
        %v2163 = vpack.c.b16 %v2058, %v2057
        %v2164 = vpack.c.b16 %v2060, %v2059
        %v2165 = vpack.c.b16 %v2062, %v2061
        %v2166 = vpack.c.b16 %v2064, %v2063
        %v2167 = vpack.c.b16 %v2066, %v2065
        %v2168 = vpack.c.b16 %v2068, %v2067
        %v2169 = vpack.c.b16 %v2070, %v2069
        %v2170 = vpack.c.b16 %v2072, %v2071
        %v2171 = vpack.c.b16 %v2074, %v2073
        %v2172 = vpack.c.b16 %v2076, %v2075
        %v2173 = vpack.c.b16 %v2078, %v2077
        %v2174 = vpack.c.b16 %v2080, %v2079
        %v2175 = vpack.c.b16 %v2082, %v2081
        %v2176 = vpack.c.b16 %v2084, %v2083
        %v2177 = vpack.c.b16 %v2086, %v2085
        %v2178 = vpack.c.b16 %v2088, %v2087
        %v2179 = vpack.c.b16 %v2090, %v2089
        %v2180 = vpack.c.b16 %v2092, %v2091
        %v2181 = vpack.c.b16 %v2094, %v2093
        %v2182 = vpack.c.b16 %v2096, %v2095
        %v2183 = vpack.c.b16 %v2098, %v2097
        %v2184 = vpack.c.b16 %v2100, %v2099
        %v2185 = vpack.c.b16 %v2102, %v2101
        %v2186 = vpack.c.b16 %v2104, %v2103
        %v2187 = vpack.c.b16 %v2106, %v2105
        %v2188 = vpack.c.b16 %v2108, %v2107
        %v2189 = vpack.c.b16 %v2110, %v2109
        %v2190 = vpack.c.b16 %v2112, %v2111
        %v2191 = vpack.c.b16 %v2114, %v2113
        %v2192 = vpack.c.b16 %v2116, %v2115
        %v2193 = vpack.c.b16 %v2118, %v2117
        %v2194 = vpack.c.b16 %v2120, %v2119
        %v2195 = vpack.c.b16 %v2122, %v2121
        %v2196 = vpack.c.b16 %v2124, %v2123
        %v2197 = vpack.c.b16 %v2126, %v2125
        %v2198 = vpack.c.b16 %v2128, %v2127
        %v2199 = vpack.c.b16 %v2130, %v2129
        %v2200 = vpack.c.b16 %v2132, %v2131
        %v2201 = vpack.c.b16 %v2134, %v2133
        %v2202 = vpack.c.b16 %v2136, %v2135
        %v2203 = vpack.c.b16 %v2138, %v2137
        %v2204 = vpack.c.b16 %v2140, %v2139
        %2269 = vst [vmem:[%s298] sm:$0xff] %v2141
        %2270 = vst [vmem:[%s298 + $0x8] sm:$0xff] %v2142
        %2271 = vst [vmem:[%s298 + $0x10] sm:$0xff] %v2143
        %2272 = vst [vmem:[%s298 + $0x18] sm:$0xff] %v2144
        %2273 = vst [vmem:[%s298 + $0x20] sm:$0xff] %v2145
        %2274 = vst [vmem:[%s298 + $0x28] sm:$0xff] %v2146
        %2275 = vst [vmem:[%s298 + $0x30] sm:$0xff] %v2147
        %2276 = vst [vmem:[%s298 + $0x38] sm:$0xff] %v2148
        %2277 = vst [vmem:[%s298 + $0x40] sm:$0xff] %v2149
        %2278 = vst [vmem:[%s298 + $0x48] sm:$0xff] %v2150
        %2279 = vst [vmem:[%s298 + $0x50] sm:$0xff] %v2151
        %2280 = vst [vmem:[%s298 + $0x58] sm:$0xff] %v2152
        %2281 = vst [vmem:[%s298 + $0x60] sm:$0xff] %v2153
        %2282 = vst [vmem:[%s298 + $0x68] sm:$0xff] %v2154
        %2283 = vst [vmem:[%s298 + $0x70] sm:$0xff] %v2155
        %2284 = vst [vmem:[%s298 + $0x78] sm:$0xff] %v2156
        %2285 = vst [vmem:[%s298 + $0x80] sm:$0xff] %v2157
        %2286 = vst [vmem:[%s298 + $0x88] sm:$0xff] %v2158
        %2287 = vst [vmem:[%s298 + $0x90] sm:$0xff] %v2159
        %2288 = vst [vmem:[%s298 + $0x98] sm:$0xff] %v2160
        %2289 = vst [vmem:[%s298 + $0xa0] sm:$0xff] %v2161
        %2290 = vst [vmem:[%s298 + $0xa8] sm:$0xff] %v2162
        %2291 = vst [vmem:[%s298 + $0xb0] sm:$0xff] %v2163
        %2292 = vst [vmem:[%s298 + $0xb8] sm:$0xff] %v2164
        %2293 = vst [vmem:[%s298 + $0xc0] sm:$0xff] %v2165
        %2294 = vst [vmem:[%s298 + $0xc8] sm:$0xff] %v2166
        %2295 = vst [vmem:[%s298 + $0xd0] sm:$0xff] %v2167
        %2296 = vst [vmem:[%s298 + $0xd8] sm:$0xff] %v2168
        %2297 = vst [vmem:[%s298 + $0xe0] sm:$0xff] %v2169
        %2298 = vst [vmem:[%s298 + $0xe8] sm:$0xff] %v2170
        %2299 = vst [vmem:[%s298 + $0xf0] sm:$0xff] %v2171
        %2300 = vst [vmem:[%s298 + $0xf8] sm:$0xff] %v2172
        %2301 = vst [vmem:[%s298 + $0x100] sm:$0xff] %v2173
        %2302 = vst [vmem:[%s298 + $0x108] sm:$0xff] %v2174
        %2303 = vst [vmem:[%s298 + $0x110] sm:$0xff] %v2175
        %2304 = vst [vmem:[%s298 + $0x118] sm:$0xff] %v2176
        %2305 = vst [vmem:[%s298 + $0x120] sm:$0xff] %v2177
        %2306 = vst [vmem:[%s298 + $0x128] sm:$0xff] %v2178
        %2307 = vst [vmem:[%s298 + $0x130] sm:$0xff] %v2179
        %2308 = vst [vmem:[%s298 + $0x138] sm:$0xff] %v2180
        %2309 = vst [vmem:[%s298 + $0x140] sm:$0xff] %v2181
        %2310 = vst [vmem:[%s298 + $0x148] sm:$0xff] %v2182
        %2311 = vst [vmem:[%s298 + $0x150] sm:$0xff] %v2183
        %2312 = vst [vmem:[%s298 + $0x158] sm:$0xff] %v2184
        %2313 = vst [vmem:[%s298 + $0x160] sm:$0xff] %v2185
        %2314 = vst [vmem:[%s298 + $0x168] sm:$0xff] %v2186
        %2315 = vst [vmem:[%s298 + $0x170] sm:$0xff] %v2187
        %2316 = vst [vmem:[%s298 + $0x178] sm:$0xff] %v2188
        %2317 = vst [vmem:[%s298 + $0x180] sm:$0xff] %v2189
        %2318 = vst [vmem:[%s298 + $0x188] sm:$0xff] %v2190
        %2319 = vst [vmem:[%s298 + $0x190] sm:$0xff] %v2191
        %2320 = vst [vmem:[%s298 + $0x198] sm:$0xff] %v2192
        %2321 = vst [vmem:[%s298 + $0x1a0] sm:$0xff] %v2193
        %2322 = vst [vmem:[%s298 + $0x1a8] sm:$0xff] %v2194
        %2323 = vst [vmem:[%s298 + $0x1b0] sm:$0xff] %v2195
        %2324 = vst [vmem:[%s298 + $0x1b8] sm:$0xff] %v2196
        %2325 = vst [vmem:[%s298 + $0x1c0] sm:$0xff] %v2197
        %2326 = vst [vmem:[%s298 + $0x1c8] sm:$0xff] %v2198
        %2327 = vst [vmem:[%s298 + $0x1d0] sm:$0xff] %v2199
        %2328 = vst [vmem:[%s298 + $0x1d8] sm:$0xff] %v2200
        %2329 = vst [vmem:[%s298 + $0x1e0] sm:$0xff] %v2201
        %2330 = vst [vmem:[%s298 + $0x1e8] sm:$0xff] %v2202
        %2331 = vst [vmem:[%s298 + $0x1f0] sm:$0xff] %v2203
        %2332 = vst [vmem:[%s298 + $0x1f8] sm:$0xff] %v2204
        %v2333 = vunpack.c.l.bf16 %v1437
        %v2334 = vunpack.c.l.bf16 %v1438
        %v2335 = vunpack.c.l.bf16 %v1439
        %v2336 = vunpack.c.l.bf16 %v1440
        %v2337 = vunpack.c.l.bf16 %v1441
        %v2338 = vunpack.c.l.bf16 %v1442
        %v2339 = vunpack.c.l.bf16 %v1443
        %v2340 = vunpack.c.l.bf16 %v1444
        %v2341 = vunpack.c.h.bf16 %v1437
        %v2342 = vunpack.c.h.bf16 %v1438
        %v2343 = vunpack.c.h.bf16 %v1439
        %v2344 = vunpack.c.h.bf16 %v1440
        %v2345 = vunpack.c.h.bf16 %v1441
        %v2346 = vunpack.c.h.bf16 %v1442
        %v2347 = vunpack.c.h.bf16 %v1443
        %v2348 = vunpack.c.h.bf16 %v1444
        %v2349 = vunpack.c.l.bf16 %v1445
        %v2350 = vunpack.c.l.bf16 %v1446
        %v2351 = vunpack.c.l.bf16 %v1447
        %v2352 = vunpack.c.l.bf16 %v1448
        %v2353 = vunpack.c.l.bf16 %v1449
        %v2354 = vunpack.c.l.bf16 %v1450
        %v2355 = vunpack.c.l.bf16 %v1451
        %v2356 = vunpack.c.l.bf16 %v1452
        %v2357 = vunpack.c.h.bf16 %v1445
        %v2358 = vunpack.c.h.bf16 %v1446
        %v2359 = vunpack.c.h.bf16 %v1447
        %v2360 = vunpack.c.h.bf16 %v1448
        %v2361 = vunpack.c.h.bf16 %v1449
        %v2362 = vunpack.c.h.bf16 %v1450
        %v2363 = vunpack.c.h.bf16 %v1451
        %v2364 = vunpack.c.h.bf16 %v1452
        %v2365 = vunpack.c.l.bf16 %v1453
        %v2366 = vunpack.c.l.bf16 %v1454
        %v2367 = vunpack.c.l.bf16 %v1455
        %v2368 = vunpack.c.l.bf16 %v1456
        %v2369 = vunpack.c.l.bf16 %v1457
        %v2370 = vunpack.c.l.bf16 %v1458
        %v2371 = vunpack.c.l.bf16 %v1459
        %v2372 = vunpack.c.l.bf16 %v1460
        %v2373 = vunpack.c.h.bf16 %v1453
        %v2374 = vunpack.c.h.bf16 %v1454
        %v2375 = vunpack.c.h.bf16 %v1455
        %v2376 = vunpack.c.h.bf16 %v1456
        %v2377 = vunpack.c.h.bf16 %v1457
        %v2378 = vunpack.c.h.bf16 %v1458
        %v2379 = vunpack.c.h.bf16 %v1459
        %v2380 = vunpack.c.h.bf16 %v1460
        %v2381 = vunpack.c.l.bf16 %v1461
        %v2382 = vunpack.c.l.bf16 %v1462
        %v2383 = vunpack.c.l.bf16 %v1463
        %v2384 = vunpack.c.l.bf16 %v1464
        %v2385 = vunpack.c.l.bf16 %v1465
        %v2386 = vunpack.c.l.bf16 %v1466
        %v2387 = vunpack.c.l.bf16 %v1467
        %v2388 = vunpack.c.l.bf16 %v1468
        %v2389 = vunpack.c.h.bf16 %v1461
        %v2390 = vunpack.c.h.bf16 %v1462
        %v2391 = vunpack.c.h.bf16 %v1463
        %v2392 = vunpack.c.h.bf16 %v1464
        %v2393 = vunpack.c.h.bf16 %v1465
        %v2394 = vunpack.c.h.bf16 %v1466
        %v2395 = vunpack.c.h.bf16 %v1467
        %v2396 = vunpack.c.h.bf16 %v1468
        %v2397 = vunpack.c.l.bf16 %v1469
        %v2398 = vunpack.c.l.bf16 %v1470
        %v2399 = vunpack.c.l.bf16 %v1471
        %v2400 = vunpack.c.l.bf16 %v1472
        %v2401 = vunpack.c.l.bf16 %v1473
        %v2402 = vunpack.c.l.bf16 %v1474
        %v2403 = vunpack.c.l.bf16 %v1475
        %v2404 = vunpack.c.l.bf16 %v1476
        %v2405 = vunpack.c.h.bf16 %v1469
        %v2406 = vunpack.c.h.bf16 %v1470
        %v2407 = vunpack.c.h.bf16 %v1471
        %v2408 = vunpack.c.h.bf16 %v1472
        %v2409 = vunpack.c.h.bf16 %v1473
        %v2410 = vunpack.c.h.bf16 %v1474
        %v2411 = vunpack.c.h.bf16 %v1475
        %v2412 = vunpack.c.h.bf16 %v1476
        %v2413 = vunpack.c.l.bf16 %v1477
        %v2414 = vunpack.c.l.bf16 %v1478
        %v2415 = vunpack.c.l.bf16 %v1479
        %v2416 = vunpack.c.l.bf16 %v1480
        %v2417 = vunpack.c.l.bf16 %v1481
        %v2418 = vunpack.c.l.bf16 %v1482
        %v2419 = vunpack.c.l.bf16 %v1483
        %v2420 = vunpack.c.l.bf16 %v1484
        %v2421 = vunpack.c.h.bf16 %v1477
        %v2422 = vunpack.c.h.bf16 %v1478
        %v2423 = vunpack.c.h.bf16 %v1479
        %v2424 = vunpack.c.h.bf16 %v1480
        %v2425 = vunpack.c.h.bf16 %v1481
        %v2426 = vunpack.c.h.bf16 %v1482
        %v2427 = vunpack.c.h.bf16 %v1483
        %v2428 = vunpack.c.h.bf16 %v1484
        %v2429 = vunpack.c.l.bf16 %v1485
        %v2430 = vunpack.c.l.bf16 %v1486
        %v2431 = vunpack.c.l.bf16 %v1487
        %v2432 = vunpack.c.l.bf16 %v1488
        %v2433 = vunpack.c.l.bf16 %v1489
        %v2434 = vunpack.c.l.bf16 %v1490
        %v2435 = vunpack.c.l.bf16 %v1491
        %v2436 = vunpack.c.l.bf16 %v1492
        %v2437 = vunpack.c.h.bf16 %v1485
        %v2438 = vunpack.c.h.bf16 %v1486
        %v2439 = vunpack.c.h.bf16 %v1487
        %v2440 = vunpack.c.h.bf16 %v1488
        %v2441 = vunpack.c.h.bf16 %v1489
        %v2442 = vunpack.c.h.bf16 %v1490
        %v2443 = vunpack.c.h.bf16 %v1491
        %v2444 = vunpack.c.h.bf16 %v1492
        %v2445 = vunpack.c.l.bf16 %v1493
        %v2446 = vunpack.c.l.bf16 %v1494
        %v2447 = vunpack.c.l.bf16 %v1495
        %v2448 = vunpack.c.l.bf16 %v1496
        %v2449 = vunpack.c.l.bf16 %v1497
        %v2450 = vunpack.c.l.bf16 %v1498
        %v2451 = vunpack.c.l.bf16 %v1499
        %v2452 = vunpack.c.l.bf16 %v1500
        %v2453 = vunpack.c.h.bf16 %v1493
        %v2454 = vunpack.c.h.bf16 %v1494
        %v2455 = vunpack.c.h.bf16 %v1495
        %v2456 = vunpack.c.h.bf16 %v1496
        %v2457 = vunpack.c.h.bf16 %v1497
        %v2458 = vunpack.c.h.bf16 %v1498
        %v2459 = vunpack.c.h.bf16 %v1499
        %v2460 = vunpack.c.h.bf16 %v1500
        %v2461 = vunpack.c.l.bf16 %v1501
        %v2462 = vunpack.c.l.bf16 %v1502
        %v2463 = vunpack.c.l.bf16 %v1503
        %v2464 = vunpack.c.l.bf16 %v1504
        %v2465 = vunpack.c.l.bf16 %v1505
        %v2466 = vunpack.c.l.bf16 %v1506
        %v2467 = vunpack.c.l.bf16 %v1507
        %v2468 = vunpack.c.l.bf16 %v1508
        %v2469 = vunpack.c.h.bf16 %v1501
        %v2470 = vunpack.c.h.bf16 %v1502
        %v2471 = vunpack.c.h.bf16 %v1503
        %v2472 = vunpack.c.h.bf16 %v1504
        %v2473 = vunpack.c.h.bf16 %v1505
        %v2474 = vunpack.c.h.bf16 %v1506
        %v2475 = vunpack.c.h.bf16 %v1507
        %v2476 = vunpack.c.h.bf16 %v1508
        %v2477 = vunpack.c.l.bf16 %v1509
        %v2478 = vunpack.c.l.bf16 %v1510
        %v2479 = vunpack.c.l.bf16 %v1511
        %v2480 = vunpack.c.l.bf16 %v1512
        %v2481 = vunpack.c.l.bf16 %v1513
        %v2482 = vunpack.c.l.bf16 %v1514
        %v2483 = vunpack.c.l.bf16 %v1515
        %v2484 = vunpack.c.l.bf16 %v1516
        %v2485 = vunpack.c.h.bf16 %v1509
        %v2486 = vunpack.c.h.bf16 %v1510
        %v2487 = vunpack.c.h.bf16 %v1511
        %v2488 = vunpack.c.h.bf16 %v1512
        %v2489 = vunpack.c.h.bf16 %v1513
        %v2490 = vunpack.c.h.bf16 %v1514
        %v2491 = vunpack.c.h.bf16 %v1515
        %v2492 = vunpack.c.h.bf16 %v1516
        %v2493 = vunpack.c.l.bf16 %v1517
        %v2494 = vunpack.c.l.bf16 %v1518
        %v2495 = vunpack.c.l.bf16 %v1519
        %v2496 = vunpack.c.l.bf16 %v1520
        %v2497 = vunpack.c.l.bf16 %v1521
        %v2498 = vunpack.c.l.bf16 %v1522
        %v2499 = vunpack.c.l.bf16 %v1523
        %v2500 = vunpack.c.l.bf16 %v1524
        %v2501 = vunpack.c.h.bf16 %v1517
        %v2502 = vunpack.c.h.bf16 %v1518
        %v2503 = vunpack.c.h.bf16 %v1519
        %v2504 = vunpack.c.h.bf16 %v1520
        %v2505 = vunpack.c.h.bf16 %v1521
        %v2506 = vunpack.c.h.bf16 %v1522
        %v2507 = vunpack.c.h.bf16 %v1523
        %v2508 = vunpack.c.h.bf16 %v1524
        %v2509 = vunpack.c.l.bf16 %v1525
        %v2510 = vunpack.c.l.bf16 %v1526
        %v2511 = vunpack.c.l.bf16 %v1527
        %v2512 = vunpack.c.l.bf16 %v1528
        %v2513 = vunpack.c.l.bf16 %v1529
        %v2514 = vunpack.c.l.bf16 %v1530
        %v2515 = vunpack.c.l.bf16 %v1531
        %v2516 = vunpack.c.l.bf16 %v1532
        %v2517 = vunpack.c.h.bf16 %v1525
        %v2518 = vunpack.c.h.bf16 %v1526
        %v2519 = vunpack.c.h.bf16 %v1527
        %v2520 = vunpack.c.h.bf16 %v1528
        %v2521 = vunpack.c.h.bf16 %v1529
        %v2522 = vunpack.c.h.bf16 %v1530
        %v2523 = vunpack.c.h.bf16 %v1531
        %v2524 = vunpack.c.h.bf16 %v1532
        %v2525 = vunpack.c.l.bf16 %v1533
        %v2526 = vunpack.c.l.bf16 %v1534
        %v2527 = vunpack.c.l.bf16 %v1535
        %v2528 = vunpack.c.l.bf16 %v1536
        %v2529 = vunpack.c.l.bf16 %v1537
        %v2530 = vunpack.c.l.bf16 %v1538
        %v2531 = vunpack.c.l.bf16 %v1539
        %v2532 = vunpack.c.l.bf16 %v1540
        %v2533 = vunpack.c.h.bf16 %v1533
        %v2534 = vunpack.c.h.bf16 %v1534
        %v2535 = vunpack.c.h.bf16 %v1535
        %v2536 = vunpack.c.h.bf16 %v1536
        %v2537 = vunpack.c.h.bf16 %v1537
        %v2538 = vunpack.c.h.bf16 %v1538
        %v2539 = vunpack.c.h.bf16 %v1539
        %v2540 = vunpack.c.h.bf16 %v1540
        %v2541 = vunpack.c.l.bf16 %v1541
        %v2542 = vunpack.c.l.bf16 %v1542
        %v2543 = vunpack.c.l.bf16 %v1543
        %v2544 = vunpack.c.l.bf16 %v1544
        %v2545 = vunpack.c.l.bf16 %v1545
        %v2546 = vunpack.c.l.bf16 %v1546
        %v2547 = vunpack.c.l.bf16 %v1547
        %v2548 = vunpack.c.l.bf16 %v1548
        %v2549 = vunpack.c.h.bf16 %v1541
        %v2550 = vunpack.c.h.bf16 %v1542
        %v2551 = vunpack.c.h.bf16 %v1543
        %v2552 = vunpack.c.h.bf16 %v1544
        %v2553 = vunpack.c.h.bf16 %v1545
        %v2554 = vunpack.c.h.bf16 %v1546
        %v2555 = vunpack.c.h.bf16 %v1547
        %v2556 = vunpack.c.h.bf16 %v1548
        %v2557 = vunpack.c.l.bf16 %v1549
        %v2558 = vunpack.c.l.bf16 %v1550
        %v2559 = vunpack.c.l.bf16 %v1551
        %v2560 = vunpack.c.l.bf16 %v1552
        %v2561 = vunpack.c.l.bf16 %v1553
        %v2562 = vunpack.c.l.bf16 %v1554
        %v2563 = vunpack.c.l.bf16 %v1555
        %v2564 = vunpack.c.l.bf16 %v1556
        %v2565 = vunpack.c.h.bf16 %v1549
        %v2566 = vunpack.c.h.bf16 %v1550
        %v2567 = vunpack.c.h.bf16 %v1551
        %v2568 = vunpack.c.h.bf16 %v1552
        %v2569 = vunpack.c.h.bf16 %v1553
        %v2570 = vunpack.c.h.bf16 %v1554
        %v2571 = vunpack.c.h.bf16 %v1555
        %v2572 = vunpack.c.h.bf16 %v1556
        %v2573 = vunpack.c.l.bf16 %v1557
        %v2574 = vunpack.c.l.bf16 %v1558
        %v2575 = vunpack.c.l.bf16 %v1559
        %v2576 = vunpack.c.l.bf16 %v1560
        %v2577 = vunpack.c.l.bf16 %v1561
        %v2578 = vunpack.c.l.bf16 %v1562
        %v2579 = vunpack.c.l.bf16 %v1563
        %v2580 = vunpack.c.l.bf16 %v1564
        %v2581 = vunpack.c.h.bf16 %v1557
        %v2582 = vunpack.c.h.bf16 %v1558
        %v2583 = vunpack.c.h.bf16 %v1559
        %v2584 = vunpack.c.h.bf16 %v1560
        %v2585 = vunpack.c.h.bf16 %v1561
        %v2586 = vunpack.c.h.bf16 %v1562
        %v2587 = vunpack.c.h.bf16 %v1563
        %v2588 = vunpack.c.h.bf16 %v1564
        %v2589 = vmul.f32 %v2333, %v2333
        %v2590 = vmul.f32 %v2334, %v2334
        %v2591 = vmul.f32 %v2335, %v2335
        %v2592 = vmul.f32 %v2336, %v2336
        %v2593 = vmul.f32 %v2337, %v2337
        %v2594 = vmul.f32 %v2338, %v2338
        %v2595 = vmul.f32 %v2339, %v2339
        %v2596 = vmul.f32 %v2340, %v2340
        %v2597 = vmul.f32 %v2341, %v2341
        %v2598 = vmul.f32 %v2342, %v2342
        %v2599 = vmul.f32 %v2343, %v2343
        %v2600 = vmul.f32 %v2344, %v2344
        %v2601 = vmul.f32 %v2345, %v2345
        %v2602 = vmul.f32 %v2346, %v2346
        %v2603 = vmul.f32 %v2347, %v2347
        %v2604 = vmul.f32 %v2348, %v2348
        %v2605 = vmul.f32 %v2349, %v2349
        %v2606 = vmul.f32 %v2350, %v2350
        %v2607 = vmul.f32 %v2351, %v2351
        %v2608 = vmul.f32 %v2352, %v2352
        %v2609 = vmul.f32 %v2353, %v2353
        %v2610 = vmul.f32 %v2354, %v2354
        %v2611 = vmul.f32 %v2355, %v2355
        %v2612 = vmul.f32 %v2356, %v2356
        %v2613 = vmul.f32 %v2357, %v2357
        %v2614 = vmul.f32 %v2358, %v2358
        %v2615 = vmul.f32 %v2359, %v2359
        %v2616 = vmul.f32 %v2360, %v2360
        %v2617 = vmul.f32 %v2361, %v2361
        %v2618 = vmul.f32 %v2362, %v2362
        %v2619 = vmul.f32 %v2363, %v2363
        %v2620 = vmul.f32 %v2364, %v2364
        %v2621 = vmul.f32 %v2365, %v2365
        %v2622 = vmul.f32 %v2366, %v2366
        %v2623 = vmul.f32 %v2367, %v2367
        %v2624 = vmul.f32 %v2368, %v2368
        %v2625 = vmul.f32 %v2369, %v2369
        %v2626 = vmul.f32 %v2370, %v2370
        %v2627 = vmul.f32 %v2371, %v2371
        %v2628 = vmul.f32 %v2372, %v2372
        %v2629 = vmul.f32 %v2373, %v2373
        %v2630 = vmul.f32 %v2374, %v2374
        %v2631 = vmul.f32 %v2375, %v2375
        %v2632 = vmul.f32 %v2376, %v2376
        %v2633 = vmul.f32 %v2377, %v2377
        %v2634 = vmul.f32 %v2378, %v2378
        %v2635 = vmul.f32 %v2379, %v2379
        %v2636 = vmul.f32 %v2380, %v2380
        %v2637 = vmul.f32 %v2381, %v2381
        %v2638 = vmul.f32 %v2382, %v2382
        %v2639 = vmul.f32 %v2383, %v2383
        %v2640 = vmul.f32 %v2384, %v2384
        %v2641 = vmul.f32 %v2385, %v2385
        %v2642 = vmul.f32 %v2386, %v2386
        %v2643 = vmul.f32 %v2387, %v2387
        %v2644 = vmul.f32 %v2388, %v2388
        %v2645 = vmul.f32 %v2389, %v2389
        %v2646 = vmul.f32 %v2390, %v2390
        %v2647 = vmul.f32 %v2391, %v2391
        %v2648 = vmul.f32 %v2392, %v2392
        %v2649 = vmul.f32 %v2393, %v2393
        %v2650 = vmul.f32 %v2394, %v2394
        %v2651 = vmul.f32 %v2395, %v2395
        %v2652 = vmul.f32 %v2396, %v2396
        %v2653 = vmul.f32 %v2397, %v2397
        %v2654 = vmul.f32 %v2398, %v2398
        %v2655 = vmul.f32 %v2399, %v2399
        %v2656 = vmul.f32 %v2400, %v2400
        %v2657 = vmul.f32 %v2401, %v2401
        %v2658 = vmul.f32 %v2402, %v2402
        %v2659 = vmul.f32 %v2403, %v2403
        %v2660 = vmul.f32 %v2404, %v2404
        %v2661 = vmul.f32 %v2405, %v2405
        %v2662 = vmul.f32 %v2406, %v2406
        %v2663 = vmul.f32 %v2407, %v2407
        %v2664 = vmul.f32 %v2408, %v2408
        %v2665 = vmul.f32 %v2409, %v2409
        %v2666 = vmul.f32 %v2410, %v2410
        %v2667 = vmul.f32 %v2411, %v2411
        %v2668 = vmul.f32 %v2412, %v2412
        %v2669 = vmul.f32 %v2413, %v2413
        %v2670 = vmul.f32 %v2414, %v2414
        %v2671 = vmul.f32 %v2415, %v2415
        %v2672 = vmul.f32 %v2416, %v2416
        %v2673 = vmul.f32 %v2417, %v2417
        %v2674 = vmul.f32 %v2418, %v2418
        %v2675 = vmul.f32 %v2419, %v2419
        %v2676 = vmul.f32 %v2420, %v2420
        %v2677 = vmul.f32 %v2421, %v2421
        %v2678 = vmul.f32 %v2422, %v2422
        %v2679 = vmul.f32 %v2423, %v2423
        %v2680 = vmul.f32 %v2424, %v2424
        %v2681 = vmul.f32 %v2425, %v2425
        %v2682 = vmul.f32 %v2426, %v2426
        %v2683 = vmul.f32 %v2427, %v2427
        %v2684 = vmul.f32 %v2428, %v2428
        %v2685 = vmul.f32 %v2429, %v2429
        %v2686 = vmul.f32 %v2430, %v2430
        %v2687 = vmul.f32 %v2431, %v2431
        %v2688 = vmul.f32 %v2432, %v2432
        %v2689 = vmul.f32 %v2433, %v2433
        %v2690 = vmul.f32 %v2434, %v2434
        %v2691 = vmul.f32 %v2435, %v2435
        %v2692 = vmul.f32 %v2436, %v2436
        %v2693 = vmul.f32 %v2437, %v2437
        %v2694 = vmul.f32 %v2438, %v2438
        %v2695 = vmul.f32 %v2439, %v2439
        %v2696 = vmul.f32 %v2440, %v2440
        %v2697 = vmul.f32 %v2441, %v2441
        %v2698 = vmul.f32 %v2442, %v2442
        %v2699 = vmul.f32 %v2443, %v2443
        %v2700 = vmul.f32 %v2444, %v2444
        %v2701 = vmul.f32 %v2445, %v2445
        %v2702 = vmul.f32 %v2446, %v2446
        %v2703 = vmul.f32 %v2447, %v2447
        %v2704 = vmul.f32 %v2448, %v2448
        %v2705 = vmul.f32 %v2449, %v2449
        %v2706 = vmul.f32 %v2450, %v2450
        %v2707 = vmul.f32 %v2451, %v2451
        %v2708 = vmul.f32 %v2452, %v2452
        %v2709 = vmul.f32 %v2453, %v2453
        %v2710 = vmul.f32 %v2454, %v2454
        %v2711 = vmul.f32 %v2455, %v2455
        %v2712 = vmul.f32 %v2456, %v2456
        %v2713 = vmul.f32 %v2457, %v2457
        %v2714 = vmul.f32 %v2458, %v2458
        %v2715 = vmul.f32 %v2459, %v2459
        %v2716 = vmul.f32 %v2460, %v2460
        %v2717 = vadd.f32 %v2589, %v2597
        %v2718 = vadd.f32 %v2717, %v2605
        %v2719 = vadd.f32 %v2718, %v2613
        %v2720 = vadd.f32 %v2719, %v2621
        %v2721 = vadd.f32 %v2720, %v2629
        %v2722 = vadd.f32 %v2721, %v2637
        %v2723 = vadd.f32 %v2722, %v2645
        %v2724 = vadd.f32 %v2723, %v2653
        %v2725 = vadd.f32 %v2724, %v2661
        %v2726 = vadd.f32 %v2725, %v2669
        %v2727 = vadd.f32 %v2726, %v2677
        %v2728 = vadd.f32 %v2727, %v2685
        %v2729 = vadd.f32 %v2728, %v2693
        %v2730 = vadd.f32 %v2729, %v2701
        %v2731 = vadd.f32 %v2730, %v2709
        %v2732 = vrot.slane %v2731, 4
        %v2733 = vadd.f32 %v2731, %v2732
        %v2734 = vrot.slane %v2733, 2
        %v2735 = vadd.f32 %v2733, %v2734
        %v2736 = vrot.slane %v2735, 1
        %v2737 = vadd.f32 %v2735, %v2736
        %v2738 = vadd.f32 %v2590, %v2598
        %v2739 = vadd.f32 %v2738, %v2606
        %v2740 = vadd.f32 %v2739, %v2614
        %v2741 = vadd.f32 %v2740, %v2622
        %v2742 = vadd.f32 %v2741, %v2630
        %v2743 = vadd.f32 %v2742, %v2638
        %v2744 = vadd.f32 %v2743, %v2646
        %v2745 = vadd.f32 %v2744, %v2654
        %v2746 = vadd.f32 %v2745, %v2662
        %v2747 = vadd.f32 %v2746, %v2670
        %v2748 = vadd.f32 %v2747, %v2678
        %v2749 = vadd.f32 %v2748, %v2686
        %v2750 = vadd.f32 %v2749, %v2694
        %v2751 = vadd.f32 %v2750, %v2702
        %v2752 = vadd.f32 %v2751, %v2710
        %v2753 = vrot.slane %v2752, 4
        %v2754 = vadd.f32 %v2752, %v2753
        %v2755 = vrot.slane %v2754, 2
        %v2756 = vadd.f32 %v2754, %v2755
        %v2757 = vrot.slane %v2756, 1
        %v2758 = vadd.f32 %v2756, %v2757
        %v2759 = vadd.f32 %v2591, %v2599
        %v2760 = vadd.f32 %v2759, %v2607
        %v2761 = vadd.f32 %v2760, %v2615
        %v2762 = vadd.f32 %v2761, %v2623
        %v2763 = vadd.f32 %v2762, %v2631
        %v2764 = vadd.f32 %v2763, %v2639
        %v2765 = vadd.f32 %v2764, %v2647
        %v2766 = vadd.f32 %v2765, %v2655
        %v2767 = vadd.f32 %v2766, %v2663
        %v2768 = vadd.f32 %v2767, %v2671
        %v2769 = vadd.f32 %v2768, %v2679
        %v2770 = vadd.f32 %v2769, %v2687
        %v2771 = vadd.f32 %v2770, %v2695
        %v2772 = vadd.f32 %v2771, %v2703
        %v2773 = vadd.f32 %v2772, %v2711
        %v2774 = vrot.slane %v2773, 4
        %v2775 = vadd.f32 %v2773, %v2774
        %v2776 = vrot.slane %v2775, 2
        %v2777 = vadd.f32 %v2775, %v2776
        %v2778 = vrot.slane %v2777, 1
        %v2779 = vadd.f32 %v2777, %v2778
        %v2780 = vadd.f32 %v2592, %v2600
        %v2781 = vadd.f32 %v2780, %v2608
        %v2782 = vadd.f32 %v2781, %v2616
        %v2783 = vadd.f32 %v2782, %v2624
        %v2784 = vadd.f32 %v2783, %v2632
        %v2785 = vadd.f32 %v2784, %v2640
        %v2786 = vadd.f32 %v2785, %v2648
        %v2787 = vadd.f32 %v2786, %v2656
        %v2788 = vadd.f32 %v2787, %v2664
        %v2789 = vadd.f32 %v2788, %v2672
        %v2790 = vadd.f32 %v2789, %v2680
        %v2791 = vadd.f32 %v2790, %v2688
        %v2792 = vadd.f32 %v2791, %v2696
        %v2793 = vadd.f32 %v2792, %v2704
        %v2794 = vadd.f32 %v2793, %v2712
        %v2795 = vrot.slane %v2794, 4
        %v2796 = vadd.f32 %v2794, %v2795
        %v2797 = vrot.slane %v2796, 2
        %v2798 = vadd.f32 %v2796, %v2797
        %v2799 = vrot.slane %v2798, 1
        %v2800 = vadd.f32 %v2798, %v2799
        %v2801 = vadd.f32 %v2593, %v2601
        %v2802 = vadd.f32 %v2801, %v2609
        %v2803 = vadd.f32 %v2802, %v2617
        %v2804 = vadd.f32 %v2803, %v2625
        %v2805 = vadd.f32 %v2804, %v2633
        %v2806 = vadd.f32 %v2805, %v2641
        %v2807 = vadd.f32 %v2806, %v2649
        %v2808 = vadd.f32 %v2807, %v2657
        %v2809 = vadd.f32 %v2808, %v2665
        %v2810 = vadd.f32 %v2809, %v2673
        %v2811 = vadd.f32 %v2810, %v2681
        %v2812 = vadd.f32 %v2811, %v2689
        %v2813 = vadd.f32 %v2812, %v2697
        %v2814 = vadd.f32 %v2813, %v2705
        %v2815 = vadd.f32 %v2814, %v2713
        %v2816 = vrot.slane %v2815, 4
        %v2817 = vadd.f32 %v2815, %v2816
        %v2818 = vrot.slane %v2817, 2
        %v2819 = vadd.f32 %v2817, %v2818
        %v2820 = vrot.slane %v2819, 1
        %v2821 = vadd.f32 %v2819, %v2820
        %v2822 = vadd.f32 %v2594, %v2602
        %v2823 = vadd.f32 %v2822, %v2610
        %v2824 = vadd.f32 %v2823, %v2618
        %v2825 = vadd.f32 %v2824, %v2626
        %v2826 = vadd.f32 %v2825, %v2634
        %v2827 = vadd.f32 %v2826, %v2642
        %v2828 = vadd.f32 %v2827, %v2650
        %v2829 = vadd.f32 %v2828, %v2658
        %v2830 = vadd.f32 %v2829, %v2666
        %v2831 = vadd.f32 %v2830, %v2674
        %v2832 = vadd.f32 %v2831, %v2682
        %v2833 = vadd.f32 %v2832, %v2690
        %v2834 = vadd.f32 %v2833, %v2698
        %v2835 = vadd.f32 %v2834, %v2706
        %v2836 = vadd.f32 %v2835, %v2714
        %v2837 = vrot.slane %v2836, 4
        %v2838 = vadd.f32 %v2836, %v2837
        %v2839 = vrot.slane %v2838, 2
        %v2840 = vadd.f32 %v2838, %v2839
        %v2841 = vrot.slane %v2840, 1
        %v2842 = vadd.f32 %v2840, %v2841
        %v2843 = vadd.f32 %v2595, %v2603
        %v2844 = vadd.f32 %v2843, %v2611
        %v2845 = vadd.f32 %v2844, %v2619
        %v2846 = vadd.f32 %v2845, %v2627
        %v2847 = vadd.f32 %v2846, %v2635
        %v2848 = vadd.f32 %v2847, %v2643
        %v2849 = vadd.f32 %v2848, %v2651
        %v2850 = vadd.f32 %v2849, %v2659
        %v2851 = vadd.f32 %v2850, %v2667
        %v2852 = vadd.f32 %v2851, %v2675
        %v2853 = vadd.f32 %v2852, %v2683
        %v2854 = vadd.f32 %v2853, %v2691
        %v2855 = vadd.f32 %v2854, %v2699
        %v2856 = vadd.f32 %v2855, %v2707
        %v2857 = vadd.f32 %v2856, %v2715
        %v2858 = vrot.slane %v2857, 4
        %v2859 = vadd.f32 %v2857, %v2858
        %v2860 = vrot.slane %v2859, 2
        %v2861 = vadd.f32 %v2859, %v2860
        %v2862 = vrot.slane %v2861, 1
        %v2863 = vadd.f32 %v2861, %v2862
        %v2864 = vadd.f32 %v2596, %v2604
        %v2865 = vadd.f32 %v2864, %v2612
        %v2866 = vadd.f32 %v2865, %v2620
        %v2867 = vadd.f32 %v2866, %v2628
        %v2868 = vadd.f32 %v2867, %v2636
        %v2869 = vadd.f32 %v2868, %v2644
        %v2870 = vadd.f32 %v2869, %v2652
        %v2871 = vadd.f32 %v2870, %v2660
        %v2872 = vadd.f32 %v2871, %v2668
        %v2873 = vadd.f32 %v2872, %v2676
        %v2874 = vadd.f32 %v2873, %v2684
        %v2875 = vadd.f32 %v2874, %v2692
        %v2876 = vadd.f32 %v2875, %v2700
        %v2877 = vadd.f32 %v2876, %v2708
        %v2878 = vadd.f32 %v2877, %v2716
        %v2879 = vrot.slane %v2878, 4
        %v2880 = vadd.f32 %v2878, %v2879
        %v2881 = vrot.slane %v2880, 2
        %v2882 = vadd.f32 %v2880, %v2881
        %v2883 = vrot.slane %v2882, 1
        %v2884 = vadd.f32 %v2882, %v2883
        %v2893 = vcombine.low %v2737, %v2758
        %v2894 = vcombine.low %v2779, %v2800
        %v2895 = vcombine.low %v2821, %v2842
        %v2896 = vcombine.low %v2863, %v2884
        %v2898 = vunpack.c.l.s4 1966171168
        %v2899 = vunpack.c.0.s8 %v2898
        %v2900 = vlaneseq
        %v2901 = vshrl.u32 %v2900, 7
        %v2902 = vsub.s32 %v2899, %v2901
        %v2903 = vrot.slane %v2893, %v2902
        %v2905 = vunpack.c.l.s4 1966171168
        %v2906 = vunpack.c.0.s8 %v2905
        %v2907 = vlaneseq
        %v2908 = vshrl.u32 %v2907, 7
        %v2909 = vsub.s32 %v2906, %v2908
        %v2910 = vrot.slane %v2894, %v2909
        %v2912 = vunpack.c.l.s4 1966171168
        %v2913 = vunpack.c.0.s8 %v2912
        %v2914 = vlaneseq
        %v2915 = vshrl.u32 %v2914, 7
        %v2916 = vsub.s32 %v2913, %v2915
        %v2917 = vrot.slane %v2895, %v2916
        %v2919 = vunpack.c.l.s4 1966171168
        %v2920 = vunpack.c.0.s8 %v2919
        %v2921 = vlaneseq
        %v2922 = vshrl.u32 %v2921, 7
        %v2923 = vsub.s32 %v2920, %v2922
        %v2924 = vrot.slane %v2896, %v2923
        %v2925 = vcombine.low %v2903, %v2910
        %v2926 = vcombine.low %v2917, %v2924
        %v2928 = vunpack.c.l.s4 1966171168
        %v2929 = vunpack.c.0.s8 %v2928
        %v2930 = vlaneseq
        %v2931 = vshrl.u32 %v2930, 7
        %v2932 = vsub.s32 %v2929, %v2931
        %v2933 = vrot.slane %v2925, %v2932
        %v2935 = vunpack.c.l.s4 1966171168
        %v2936 = vunpack.c.0.s8 %v2935
        %v2937 = vlaneseq
        %v2938 = vshrl.u32 %v2937, 7
        %v2939 = vsub.s32 %v2936, %v2938
        %v2940 = vrot.slane %v2926, %v2939
        %v2941 = vcombine.low %v2933, %v2940
        %2943 = vst [vmem:[%s305] sm:$0xff] %v2941
        %v2944 = vmul.f32 %v2461, %v2461
        %v2945 = vmul.f32 %v2462, %v2462
        %v2946 = vmul.f32 %v2463, %v2463
        %v2947 = vmul.f32 %v2464, %v2464
        %v2948 = vmul.f32 %v2465, %v2465
        %v2949 = vmul.f32 %v2466, %v2466
        %v2950 = vmul.f32 %v2467, %v2467
        %v2951 = vmul.f32 %v2468, %v2468
        %v2952 = vmul.f32 %v2469, %v2469
        %v2953 = vmul.f32 %v2470, %v2470
        %v2954 = vmul.f32 %v2471, %v2471
        %v2955 = vmul.f32 %v2472, %v2472
        %v2956 = vmul.f32 %v2473, %v2473
        %v2957 = vmul.f32 %v2474, %v2474
        %v2958 = vmul.f32 %v2475, %v2475
        %v2959 = vmul.f32 %v2476, %v2476
        %v2960 = vmul.f32 %v2477, %v2477
        %v2961 = vmul.f32 %v2478, %v2478
        %v2962 = vmul.f32 %v2479, %v2479
        %v2963 = vmul.f32 %v2480, %v2480
        %v2964 = vmul.f32 %v2481, %v2481
        %v2965 = vmul.f32 %v2482, %v2482
        %v2966 = vmul.f32 %v2483, %v2483
        %v2967 = vmul.f32 %v2484, %v2484
        %v2968 = vmul.f32 %v2485, %v2485
        %v2969 = vmul.f32 %v2486, %v2486
        %v2970 = vmul.f32 %v2487, %v2487
        %v2971 = vmul.f32 %v2488, %v2488
        %v2972 = vmul.f32 %v2489, %v2489
        %v2973 = vmul.f32 %v2490, %v2490
        %v2974 = vmul.f32 %v2491, %v2491
        %v2975 = vmul.f32 %v2492, %v2492
        %v2976 = vmul.f32 %v2493, %v2493
        %v2977 = vmul.f32 %v2494, %v2494
        %v2978 = vmul.f32 %v2495, %v2495
        %v2979 = vmul.f32 %v2496, %v2496
        %v2980 = vmul.f32 %v2497, %v2497
        %v2981 = vmul.f32 %v2498, %v2498
        %v2982 = vmul.f32 %v2499, %v2499
        %v2983 = vmul.f32 %v2500, %v2500
        %v2984 = vmul.f32 %v2501, %v2501
        %v2985 = vmul.f32 %v2502, %v2502
        %v2986 = vmul.f32 %v2503, %v2503
        %v2987 = vmul.f32 %v2504, %v2504
        %v2988 = vmul.f32 %v2505, %v2505
        %v2989 = vmul.f32 %v2506, %v2506
        %v2990 = vmul.f32 %v2507, %v2507
        %v2991 = vmul.f32 %v2508, %v2508
        %v2992 = vmul.f32 %v2509, %v2509
        %v2993 = vmul.f32 %v2510, %v2510
        %v2994 = vmul.f32 %v2511, %v2511
        %v2995 = vmul.f32 %v2512, %v2512
        %v2996 = vmul.f32 %v2513, %v2513
        %v2997 = vmul.f32 %v2514, %v2514
        %v2998 = vmul.f32 %v2515, %v2515
        %v2999 = vmul.f32 %v2516, %v2516
        %v3000 = vmul.f32 %v2517, %v2517
        %v3001 = vmul.f32 %v2518, %v2518
        %v3002 = vmul.f32 %v2519, %v2519
        %v3003 = vmul.f32 %v2520, %v2520
        %v3004 = vmul.f32 %v2521, %v2521
        %v3005 = vmul.f32 %v2522, %v2522
        %v3006 = vmul.f32 %v2523, %v2523
        %v3007 = vmul.f32 %v2524, %v2524
        %v3008 = vmul.f32 %v2525, %v2525
        %v3009 = vmul.f32 %v2526, %v2526
        %v3010 = vmul.f32 %v2527, %v2527
        %v3011 = vmul.f32 %v2528, %v2528
        %v3012 = vmul.f32 %v2529, %v2529
        %v3013 = vmul.f32 %v2530, %v2530
        %v3014 = vmul.f32 %v2531, %v2531
        %v3015 = vmul.f32 %v2532, %v2532
        %v3016 = vmul.f32 %v2533, %v2533
        %v3017 = vmul.f32 %v2534, %v2534
        %v3018 = vmul.f32 %v2535, %v2535
        %v3019 = vmul.f32 %v2536, %v2536
        %v3020 = vmul.f32 %v2537, %v2537
        %v3021 = vmul.f32 %v2538, %v2538
        %v3022 = vmul.f32 %v2539, %v2539
        %v3023 = vmul.f32 %v2540, %v2540
        %v3024 = vmul.f32 %v2541, %v2541
        %v3025 = vmul.f32 %v2542, %v2542
        %v3026 = vmul.f32 %v2543, %v2543
        %v3027 = vmul.f32 %v2544, %v2544
        %v3028 = vmul.f32 %v2545, %v2545
        %v3029 = vmul.f32 %v2546, %v2546
        %v3030 = vmul.f32 %v2547, %v2547
        %v3031 = vmul.f32 %v2548, %v2548
        %v3032 = vmul.f32 %v2549, %v2549
        %v3033 = vmul.f32 %v2550, %v2550
        %v3034 = vmul.f32 %v2551, %v2551
        %v3035 = vmul.f32 %v2552, %v2552
        %v3036 = vmul.f32 %v2553, %v2553
        %v3037 = vmul.f32 %v2554, %v2554
        %v3038 = vmul.f32 %v2555, %v2555
        %v3039 = vmul.f32 %v2556, %v2556
        %v3040 = vmul.f32 %v2557, %v2557
        %v3041 = vmul.f32 %v2558, %v2558
        %v3042 = vmul.f32 %v2559, %v2559
        %v3043 = vmul.f32 %v2560, %v2560
        %v3044 = vmul.f32 %v2561, %v2561
        %v3045 = vmul.f32 %v2562, %v2562
        %v3046 = vmul.f32 %v2563, %v2563
        %v3047 = vmul.f32 %v2564, %v2564
        %v3048 = vmul.f32 %v2565, %v2565
        %v3049 = vmul.f32 %v2566, %v2566
        %v3050 = vmul.f32 %v2567, %v2567
        %v3051 = vmul.f32 %v2568, %v2568
        %v3052 = vmul.f32 %v2569, %v2569
        %v3053 = vmul.f32 %v2570, %v2570
        %v3054 = vmul.f32 %v2571, %v2571
        %v3055 = vmul.f32 %v2572, %v2572
        %v3056 = vmul.f32 %v2573, %v2573
        %v3057 = vmul.f32 %v2574, %v2574
        %v3058 = vmul.f32 %v2575, %v2575
        %v3059 = vmul.f32 %v2576, %v2576
        %v3060 = vmul.f32 %v2577, %v2577
        %v3061 = vmul.f32 %v2578, %v2578
        %v3062 = vmul.f32 %v2579, %v2579
        %v3063 = vmul.f32 %v2580, %v2580
        %v3064 = vmul.f32 %v2581, %v2581
        %v3065 = vmul.f32 %v2582, %v2582
        %v3066 = vmul.f32 %v2583, %v2583
        %v3067 = vmul.f32 %v2584, %v2584
        %v3068 = vmul.f32 %v2585, %v2585
        %v3069 = vmul.f32 %v2586, %v2586
        %v3070 = vmul.f32 %v2587, %v2587
        %v3071 = vmul.f32 %v2588, %v2588
        %v3072 = vadd.f32 %v2944, %v2952
        %v3073 = vadd.f32 %v3072, %v2960
        %v3074 = vadd.f32 %v3073, %v2968
        %v3075 = vadd.f32 %v3074, %v2976
        %v3076 = vadd.f32 %v3075, %v2984
        %v3077 = vadd.f32 %v3076, %v2992
        %v3078 = vadd.f32 %v3077, %v3000
        %v3079 = vadd.f32 %v3078, %v3008
        %v3080 = vadd.f32 %v3079, %v3016
        %v3081 = vadd.f32 %v3080, %v3024
        %v3082 = vadd.f32 %v3081, %v3032
        %v3083 = vadd.f32 %v3082, %v3040
        %v3084 = vadd.f32 %v3083, %v3048
        %v3085 = vadd.f32 %v3084, %v3056
        %v3086 = vadd.f32 %v3085, %v3064
        %v3087 = vrot.slane %v3086, 4
        %v3088 = vadd.f32 %v3086, %v3087
        %v3089 = vrot.slane %v3088, 2
        %v3090 = vadd.f32 %v3088, %v3089
        %v3091 = vrot.slane %v3090, 1
        %v3092 = vadd.f32 %v3090, %v3091
        %v3093 = vadd.f32 %v2945, %v2953
        %v3094 = vadd.f32 %v3093, %v2961
        %v3095 = vadd.f32 %v3094, %v2969
        %v3096 = vadd.f32 %v3095, %v2977
        %v3097 = vadd.f32 %v3096, %v2985
        %v3098 = vadd.f32 %v3097, %v2993
        %v3099 = vadd.f32 %v3098, %v3001
        %v3100 = vadd.f32 %v3099, %v3009
        %v3101 = vadd.f32 %v3100, %v3017
        %v3102 = vadd.f32 %v3101, %v3025
        %v3103 = vadd.f32 %v3102, %v3033
        %v3104 = vadd.f32 %v3103, %v3041
        %v3105 = vadd.f32 %v3104, %v3049
        %v3106 = vadd.f32 %v3105, %v3057
        %v3107 = vadd.f32 %v3106, %v3065
        %v3108 = vrot.slane %v3107, 4
        %v3109 = vadd.f32 %v3107, %v3108
        %v3110 = vrot.slane %v3109, 2
        %v3111 = vadd.f32 %v3109, %v3110
        %v3112 = vrot.slane %v3111, 1
        %v3113 = vadd.f32 %v3111, %v3112
        %v3114 = vadd.f32 %v2946, %v2954
        %v3115 = vadd.f32 %v3114, %v2962
        %v3116 = vadd.f32 %v3115, %v2970
        %v3117 = vadd.f32 %v3116, %v2978
        %v3118 = vadd.f32 %v3117, %v2986
        %v3119 = vadd.f32 %v3118, %v2994
        %v3120 = vadd.f32 %v3119, %v3002
        %v3121 = vadd.f32 %v3120, %v3010
        %v3122 = vadd.f32 %v3121, %v3018
        %v3123 = vadd.f32 %v3122, %v3026
        %v3124 = vadd.f32 %v3123, %v3034
        %v3125 = vadd.f32 %v3124, %v3042
        %v3126 = vadd.f32 %v3125, %v3050
        %v3127 = vadd.f32 %v3126, %v3058
        %v3128 = vadd.f32 %v3127, %v3066
        %v3129 = vrot.slane %v3128, 4
        %v3130 = vadd.f32 %v3128, %v3129
        %v3131 = vrot.slane %v3130, 2
        %v3132 = vadd.f32 %v3130, %v3131
        %v3133 = vrot.slane %v3132, 1
        %v3134 = vadd.f32 %v3132, %v3133
        %v3135 = vadd.f32 %v2947, %v2955
        %v3136 = vadd.f32 %v3135, %v2963
        %v3137 = vadd.f32 %v3136, %v2971
        %v3138 = vadd.f32 %v3137, %v2979
        %v3139 = vadd.f32 %v3138, %v2987
        %v3140 = vadd.f32 %v3139, %v2995
        %v3141 = vadd.f32 %v3140, %v3003
        %v3142 = vadd.f32 %v3141, %v3011
        %v3143 = vadd.f32 %v3142, %v3019
        %v3144 = vadd.f32 %v3143, %v3027
        %v3145 = vadd.f32 %v3144, %v3035
        %v3146 = vadd.f32 %v3145, %v3043
        %v3147 = vadd.f32 %v3146, %v3051
        %v3148 = vadd.f32 %v3147, %v3059
        %v3149 = vadd.f32 %v3148, %v3067
        %v3150 = vrot.slane %v3149, 4
        %v3151 = vadd.f32 %v3149, %v3150
        %v3152 = vrot.slane %v3151, 2
        %v3153 = vadd.f32 %v3151, %v3152
        %v3154 = vrot.slane %v3153, 1
        %v3155 = vadd.f32 %v3153, %v3154
        %v3156 = vadd.f32 %v2948, %v2956
        %v3157 = vadd.f32 %v3156, %v2964
        %v3158 = vadd.f32 %v3157, %v2972
        %v3159 = vadd.f32 %v3158, %v2980
        %v3160 = vadd.f32 %v3159, %v2988
        %v3161 = vadd.f32 %v3160, %v2996
        %v3162 = vadd.f32 %v3161, %v3004
        %v3163 = vadd.f32 %v3162, %v3012
        %v3164 = vadd.f32 %v3163, %v3020
        %v3165 = vadd.f32 %v3164, %v3028
        %v3166 = vadd.f32 %v3165, %v3036
        %v3167 = vadd.f32 %v3166, %v3044
        %v3168 = vadd.f32 %v3167, %v3052
        %v3169 = vadd.f32 %v3168, %v3060
        %v3170 = vadd.f32 %v3169, %v3068
        %v3171 = vrot.slane %v3170, 4
        %v3172 = vadd.f32 %v3170, %v3171
        %v3173 = vrot.slane %v3172, 2
        %v3174 = vadd.f32 %v3172, %v3173
        %v3175 = vrot.slane %v3174, 1
        %v3176 = vadd.f32 %v3174, %v3175
        %v3177 = vadd.f32 %v2949, %v2957
        %v3178 = vadd.f32 %v3177, %v2965
        %v3179 = vadd.f32 %v3178, %v2973
        %v3180 = vadd.f32 %v3179, %v2981
        %v3181 = vadd.f32 %v3180, %v2989
        %v3182 = vadd.f32 %v3181, %v2997
        %v3183 = vadd.f32 %v3182, %v3005
        %v3184 = vadd.f32 %v3183, %v3013
        %v3185 = vadd.f32 %v3184, %v3021
        %v3186 = vadd.f32 %v3185, %v3029
        %v3187 = vadd.f32 %v3186, %v3037
        %v3188 = vadd.f32 %v3187, %v3045
        %v3189 = vadd.f32 %v3188, %v3053
        %v3190 = vadd.f32 %v3189, %v3061
        %v3191 = vadd.f32 %v3190, %v3069
        %v3192 = vrot.slane %v3191, 4
        %v3193 = vadd.f32 %v3191, %v3192
        %v3194 = vrot.slane %v3193, 2
        %v3195 = vadd.f32 %v3193, %v3194
        %v3196 = vrot.slane %v3195, 1
        %v3197 = vadd.f32 %v3195, %v3196
        %v3198 = vadd.f32 %v2950, %v2958
        %v3199 = vadd.f32 %v3198, %v2966
        %v3200 = vadd.f32 %v3199, %v2974
        %v3201 = vadd.f32 %v3200, %v2982
        %v3202 = vadd.f32 %v3201, %v2990
        %v3203 = vadd.f32 %v3202, %v2998
        %v3204 = vadd.f32 %v3203, %v3006
        %v3205 = vadd.f32 %v3204, %v3014
        %v3206 = vadd.f32 %v3205, %v3022
        %v3207 = vadd.f32 %v3206, %v3030
        %v3208 = vadd.f32 %v3207, %v3038
        %v3209 = vadd.f32 %v3208, %v3046
        %v3210 = vadd.f32 %v3209, %v3054
        %v3211 = vadd.f32 %v3210, %v3062
        %v3212 = vadd.f32 %v3211, %v3070
        %v3213 = vrot.slane %v3212, 4
        %v3214 = vadd.f32 %v3212, %v3213
        %v3215 = vrot.slane %v3214, 2
        %v3216 = vadd.f32 %v3214, %v3215
        %v3217 = vrot.slane %v3216, 1
        %v3218 = vadd.f32 %v3216, %v3217
        %v3219 = vadd.f32 %v2951, %v2959
        %v3220 = vadd.f32 %v3219, %v2967
        %v3221 = vadd.f32 %v3220, %v2975
        %v3222 = vadd.f32 %v3221, %v2983
        %v3223 = vadd.f32 %v3222, %v2991
        %v3224 = vadd.f32 %v3223, %v2999
        %v3225 = vadd.f32 %v3224, %v3007
        %v3226 = vadd.f32 %v3225, %v3015
        %v3227 = vadd.f32 %v3226, %v3023
        %v3228 = vadd.f32 %v3227, %v3031
        %v3229 = vadd.f32 %v3228, %v3039
        %v3230 = vadd.f32 %v3229, %v3047
        %v3231 = vadd.f32 %v3230, %v3055
        %v3232 = vadd.f32 %v3231, %v3063
        %v3233 = vadd.f32 %v3232, %v3071
        %v3234 = vrot.slane %v3233, 4
        %v3235 = vadd.f32 %v3233, %v3234
        %v3236 = vrot.slane %v3235, 2
        %v3237 = vadd.f32 %v3235, %v3236
        %v3238 = vrot.slane %v3237, 1
        %v3239 = vadd.f32 %v3237, %v3238
        %v3248 = vcombine.low %v3092, %v3113
        %v3249 = vcombine.low %v3134, %v3155
        %v3250 = vcombine.low %v3176, %v3197
        %v3251 = vcombine.low %v3218, %v3239
        %v3253 = vunpack.c.l.s4 1966171168
        %v3254 = vunpack.c.0.s8 %v3253
        %v3255 = vlaneseq
        %v3256 = vshrl.u32 %v3255, 7
        %v3257 = vsub.s32 %v3254, %v3256
        %v3258 = vrot.slane %v3248, %v3257
        %v3260 = vunpack.c.l.s4 1966171168
        %v3261 = vunpack.c.0.s8 %v3260
        %v3262 = vlaneseq
        %v3263 = vshrl.u32 %v3262, 7
        %v3264 = vsub.s32 %v3261, %v3263
        %v3265 = vrot.slane %v3249, %v3264
        %v3267 = vunpack.c.l.s4 1966171168
        %v3268 = vunpack.c.0.s8 %v3267
        %v3269 = vlaneseq
        %v3270 = vshrl.u32 %v3269, 7
        %v3271 = vsub.s32 %v3268, %v3270
        %v3272 = vrot.slane %v3250, %v3271
        %v3274 = vunpack.c.l.s4 1966171168
        %v3275 = vunpack.c.0.s8 %v3274
        %v3276 = vlaneseq
        %v3277 = vshrl.u32 %v3276, 7
        %v3278 = vsub.s32 %v3275, %v3277
        %v3279 = vrot.slane %v3251, %v3278
        %v3280 = vcombine.low %v3258, %v3265
        %v3281 = vcombine.low %v3272, %v3279
        %v3283 = vunpack.c.l.s4 1966171168
        %v3284 = vunpack.c.0.s8 %v3283
        %v3285 = vlaneseq
        %v3286 = vshrl.u32 %v3285, 7
        %v3287 = vsub.s32 %v3284, %v3286
        %v3288 = vrot.slane %v3280, %v3287
        %v3290 = vunpack.c.l.s4 1966171168
        %v3291 = vunpack.c.0.s8 %v3290
        %v3292 = vlaneseq
        %v3293 = vshrl.u32 %v3292, 7
        %v3294 = vsub.s32 %v3291, %v3293
        %v3295 = vrot.slane %v3281, %v3294
        %v3296 = vcombine.low %v3288, %v3295
        %3298 = vst [vmem:[%s312] sm:$0xff] %v3296
        %s3299 = sand.u32 %s92, 1
        %s3300 = scalar_lea.sflag [#allocation4], %s3299
        %s3301 = sand.u32 %s92, 1
        %s3302 = smul.addr %s3301, 512
        %s3303 = scalar_lea.vmem [#allocation7], %s3302
        %s3304 = sand.u32 %s32, 1
        %s3305 = scalar_lea.sflag [#allocation9], %s3304
        %s3306 = sand.u32 %s118, 1
        %s3307 = smul.addr %s3306, 512
        %s3308 = scalar_lea.vmem [#allocation8], %s3307
        %s3309 = sand.u32 %s32, 1
        %s3310 = scalar_lea.sflag [#allocation9], %s3309
        %s3311 = sand.u32 %s144, 1
        %s3312 = smul.addr %s3311, 8
        %s3313 = scalar_lea.vmem [#allocation10], %s3312
        %s3314 = sand.u32 %s170, 1
        %s3315 = scalar_lea.sflag [#allocation12], %s3314
        %s3316 = sand.u32 %s170, 1
        %s3317 = smul.addr %s3316, 8
        %s3318 = scalar_lea.vmem [#allocation11], %s3317
        // Predicated region
        $region37: #{tpu_custom_call.1} parent=27 // pred_check
          %p3319 = pneg %p102
        $region38: #{tpu_custom_call.1} parent=27 // pred_check_branch
          %3321 = sbr.rel (%p3319) target = $region40
        $region39: #{tpu_custom_call.1} parent=27 // pred_region
          %s3322 = smul.u32 16, %s32
          %s3324 = ssub.s32 8192, 8192
          %3325 = vsyncadd %s3300, %s3324
          %s3326 = smul.addr %s3322, 8
          %s3327 = smul.addr %s3326, 64
          %s3328 = scalar_lea.hbm %s2, %s3327
          %s3329 = sshll.u32 %s3303, 4
          %s3330 = int_to_ptr.vmem [resolvable:$true] %s3329
          %3335 = dma.vmem_to_hbm [thread:$0]  %s3330, 8192, %s3328, %s3300, 512, 512, 32
        $region40: #{tpu_custom_call.1} parent=27 // pred_fallthru
          _
        // Predicated region
        $region41: #{tpu_custom_call.1} parent=27 // pred_check
          %p3336 = pneg %p128
        $region42: #{tpu_custom_call.1} parent=27 // pred_check_branch
          %3338 = sbr.rel (%p3336) target = $region44
        $region43: #{tpu_custom_call.1} parent=27 // pred_region
          %s3339 = smul.u32 16, %s32
          %s3341 = ssub.s32 8192, 8192
          %3342 = vsyncadd %s3305, %s3341
          %s3343 = smul.addr %s3339, 8
          %s3344 = smul.addr %s3343, 64
          %s3345 = scalar_lea.hbm %s3, %s3344
          %s3346 = sshll.u32 %s3308, 4
          %s3347 = int_to_ptr.vmem [resolvable:$true] %s3346
          %3352 = dma.vmem_to_hbm [thread:$0]  %s3347, 8192, %s3345, %s3305, 512, 512, 32
        $region44: #{tpu_custom_call.1} parent=27 // pred_fallthru
          _
        // Predicated region
        $region45: #{tpu_custom_call.1} parent=27 // pred_check
          %p3353 = pneg %p154
        $region46: #{tpu_custom_call.1} parent=27 // pred_check_branch
          %3355 = sbr.rel (%p3353) target = $region48
        $region47: #{tpu_custom_call.1} parent=27 // pred_region
          %s3357 = ssub.s32 128, 128
          %3358 = vsyncadd %s3310, %s3357
          %s3359 = smul.addr %s32, 8
          %s3360 = smul.addr %s3359, 16
          %s3361 = scalar_lea.hbm %s4, %s3360
          %s3363 = sshll.u32 %s3313, 4
          %s3364 = int_to_ptr.vmem [resolvable:$true] %s3363
          %3366 = dma.vmem_to_hbm [thread:$0]  %s3364, 128, %s3361, %s3310
        $region48: #{tpu_custom_call.1} parent=27 // pred_fallthru
          _
        // Predicated region
        $region49: #{tpu_custom_call.1} parent=27 // pred_check
          %p3367 = pneg %p180
        $region50: #{tpu_custom_call.1} parent=27 // pred_check_branch
          %3369 = sbr.rel (%p3367) target = $region52
        $region51: #{tpu_custom_call.1} parent=27 // pred_region
          %s3371 = ssub.s32 128, 128
          %3372 = vsyncadd %s3315, %s3371
          %s3373 = smul.addr %s32, 8
          %s3374 = smul.addr %s3373, 16
          %s3375 = scalar_lea.hbm %s5, %s3374
          %s3377 = sshll.u32 %s3318, 4
          %s3378 = int_to_ptr.vmem [resolvable:$true] %s3377
          %3380 = dma.vmem_to_hbm [thread:$0]  %s3378, 128, %s3375, %s3315
        $region52: #{tpu_custom_call.1} parent=27 // pred_fallthru
          _
      $region28: #{tpu_custom_call.1} parent=5 // pred_fallthru
        _
      %p3381 = scmp.le.s32.totalorder 2, %s27
      // Predicated region
      $region53: #{tpu_custom_call.1} parent=5 // pred_check
        %p3382 = pneg %p3381
      $region54: #{tpu_custom_call.1} parent=5 // pred_check_branch
        %3384 = sbr.rel (%p3382) target = $region56
      $region55: #{tpu_custom_call.1} parent=5 // pred_region
        %s3385 = ssub.s32 %s27, 2
        // Predicated region
        $region57: #{tpu_custom_call.1} parent=55 // pred_check
          %p3386 = pneg %p108
        $region58: #{tpu_custom_call.1} parent=55 // pred_check_branch
          %3388 = sbr.rel (%p3386) target = $region60
        $region59: #{tpu_custom_call.1} parent=55 // pred_region
          %s3389 = sand.u32 %s93, 1
          %s3390 = scalar_lea.sflag [#allocation4], %s3389
          %s3391 = sand.u32 %s93, 1
          %s3392 = smul.addr %s3391, 512
          %s3393 = scalar_lea.vmem [#allocation7], %s3392
          %3394 = dma.done %s3390, 8192
        $region60: #{tpu_custom_call.1} parent=55 // pred_fallthru
          _
        // Predicated region
        $region61: #{tpu_custom_call.1} parent=55 // pred_check
          %p3395 = pneg %p134
        $region62: #{tpu_custom_call.1} parent=55 // pred_check_branch
          %3397 = sbr.rel (%p3395) target = $region64
        $region63: #{tpu_custom_call.1} parent=55 // pred_region
          %s3398 = sand.u32 %s33, 1
          %s3399 = scalar_lea.sflag [#allocation9], %s3398
          %s3400 = sand.u32 %s119, 1
          %s3401 = smul.addr %s3400, 512
          %s3402 = scalar_lea.vmem [#allocation8], %s3401
          %3403 = dma.done %s3399, 8192
        $region64: #{tpu_custom_call.1} parent=55 // pred_fallthru
          _
        // Predicated region
        $region65: #{tpu_custom_call.1} parent=55 // pred_check
          %p3404 = pneg %p160
        $region66: #{tpu_custom_call.1} parent=55 // pred_check_branch
          %3406 = sbr.rel (%p3404) target = $region68
        $region67: #{tpu_custom_call.1} parent=55 // pred_region
          %s3407 = sand.u32 %s33, 1
          %s3408 = scalar_lea.sflag [#allocation9], %s3407
          %s3409 = sand.u32 %s145, 1
          %s3410 = smul.addr %s3409, 8
          %s3411 = scalar_lea.vmem [#allocation10], %s3410
          %3412 = dma.done %s3408, 128
        $region68: #{tpu_custom_call.1} parent=55 // pred_fallthru
          _
        // Predicated region
        $region69: #{tpu_custom_call.1} parent=55 // pred_check
          %p3413 = pneg %p186
        $region70: #{tpu_custom_call.1} parent=55 // pred_check_branch
          %3415 = sbr.rel (%p3413) target = $region72
        $region71: #{tpu_custom_call.1} parent=55 // pred_region
          %s3416 = sand.u32 %s171, 1
          %s3417 = scalar_lea.sflag [#allocation12], %s3416
          %s3418 = sand.u32 %s171, 1
          %s3419 = smul.addr %s3418, 8
          %s3420 = scalar_lea.vmem [#allocation11], %s3419
          %3421 = dma.done %s3417, 128
        $region72: #{tpu_custom_call.1} parent=55 // pred_fallthru
          _
      $region56: #{tpu_custom_call.1} parent=5 // pred_fallthru
        _
    $region6: #{tpu_custom_call.1} parent=1 // loop_footer
      %s31 = sadd.s32 1, %s27
    $region7: #{tpu_custom_call.1} parent=1 // loop_footer_branch
      %26 = sbr.rel target = $region3
    $region8: #{tpu_custom_call.1} parent=1 // loop_exit
      _
    %3422 = vsyncpa [#allocation3], 1
    %s3423 = scalar_lea.sflag [#allocation3], 1
    %3424 = vsyncpa %s3423, 1
    %3425 = vsyncpa [#allocation6], 1
    %s3426 = scalar_lea.sflag [#allocation6], 1
    %3427 = vsyncpa %s3426, 1
    %3428 = vsyncpa [#allocation4], 1
    %s3429 = scalar_lea.sflag [#allocation4], 1
    %3430 = vsyncpa %s3429, 1
    %3431 = vsyncpa [#allocation9], 1
    %s3432 = scalar_lea.sflag [#allocation9], 1
    %3433 = vsyncpa %s3432, 1
    %3434 = vsyncpa [#allocation12], 1
    %s3435 = scalar_lea.sflag [#allocation12], 1
    %3436 = vsyncpa %s3435, 1

</llo_original>
